<compile_context>
chip_gen: v7x
topology: tpu7x:2x2x1
jax: 0.10.0
libtpu: 0.0.40
codegen_flags: <defaults>
</compile_context>

<pallas_src>
import numpy as np
import jax
import jax.numpy as jnp
from jax.experimental import pallas as pl
from jax.experimental.pallas import tpu as pltpu

LEAKY_SLOPE = 0.01  # nn.LeakyReLU default negative_slope


def _leaky(x):
    return jnp.where(x >= 0, x, LEAKY_SLOPE * x)


def _full_spec(shape):
    # Whole-array block (grid=(1,)); block_shape == full dims satisfies tiling rules.
    return pl.BlockSpec(shape, lambda i: (0,) * len(shape))


# ----------------------------- fused whole-network kernel -----------------------------
def make_generator_kernel(T, B, H, n_lstm, n_gru):
    H3, H4, H8 = 3 * H, 4 * H, 8 * H

    def kernel(*refs):
        idx = 0
        x_ref = refs[idx]; idx += 1
        lstm_refs = [refs[idx + 4 * l: idx + 4 * l + 4] for l in range(n_lstm)]
        idx += 4 * n_lstm
        gru_refs = [refs[idx + 4 * l: idx + 4 * l + 4] for l in range(n_gru)]
        idx += 4 * n_gru
        w1_ref, b1_ref, w2_ref, b2_ref = refs[idx: idx + 4]
        idx += 4
        out_ref = refs[idx]          # (B, dict_pad) lane-dense logits
        seq_ref = refs[idx + 1]      # (T*B, 2H) inter-layer sequence buffer (VMEM)
        xp_ref = refs[idx + 2]       # (T*B, 8H) per-layer input-projection buffer (VMEM)

        zero_bh = jnp.zeros((B, H), jnp.float32)
        x_seq = x_ref[...]                                     # (T*B, F0), already flat

        # ---------- bidirectional LSTM stack: fwd & bwd fused into one unrolled loop ----
        for l in range(n_lstm):
            wih_ref, whhf_ref, whhb_ref, b_ref = lstm_refs[l]
            # one input-projection matmul for BOTH directions and ALL timesteps
            xp_ref[:, 0:H8] = (jnp.dot(x_seq, wih_ref[...],
                                       preferred_element_type=jnp.float32) + b_ref[...])
            whh_f = whhf_ref[...]
            whh_b = whhb_ref[...]
            h_f = zero_bh; c_f = zero_bh
            h_b = zero_bh; c_b = zero_bh
            for t in range(T):       # static unroll (T small & known at trace time)
                rb = (T - 1 - t) * B
                gf = xp_ref[t * B:(t + 1) * B, 0:H4] + jnp.dot(
                    h_f, whh_f, preferred_element_type=jnp.float32)
                gb = xp_ref[rb:rb + B, H4:H8] + jnp.dot(
                    h_b, whh_b, preferred_element_type=jnp.float32)
                i_f = jax.nn.sigmoid(gf[:, 0:H]);       i_b = jax.nn.sigmoid(gb[:, 0:H])
                f_f = jax.nn.sigmoid(gf[:, H:2 * H]);   f_b = jax.nn.sigmoid(gb[:, H:2 * H])
                g_f = jnp.tanh(gf[:, 2 * H:3 * H]);     g_b = jnp.tanh(gb[:, 2 * H:3 * H])
                o_f = jax.nn.sigmoid(gf[:, 3 * H:H4]);  o_b = jax.nn.sigmoid(gb[:, 3 * H:H4])
                c_f = f_f * c_f + i_f * g_f
                c_b = f_b * c_b + i_b * g_b
                h_f = o_f * jnp.tanh(c_f)
                h_b = o_b * jnp.tanh(c_b)
                seq_ref[t * B:(t + 1) * B, 0:H] = h_f          # fwd output at time t
                seq_ref[rb:rb + B, H:2 * H] = h_b              # bwd output at time T-1-t
            x_seq = seq_ref[...]                               # (T*B, 2H) for next layer
            # TODO(synk): inter-LSTM-layer nn.Dropout (train mode) omitted -> eval semantics.

        x_seq = _leaky(x_seq)                                  # LeakyReLU on LSTM output

        # -------------------------------- GRU stack -------------------------------------
        h = zero_bh
        for l in range(n_gru):
            wih_ref, whh_ref, bfold_ref, bhn_ref = gru_refs[l]
            # r/z parts of b_hh are folded into bfold in the wrapper; only b_hn stays out
            xp_ref[:, 0:H3] = (jnp.dot(x_seq, wih_ref[...],
                                       preferred_element_type=jnp.float32) + bfold_ref[...])
            whh = whh_ref[...]
            bhn = jnp.broadcast_to(bhn_ref[...], (B, H))       # hoist broadcast out of loop
            h = zero_bh
            for t in range(T):
                hp = jnp.dot(h, whh, preferred_element_type=jnp.float32)   # (B, 3H)
                xi = xp_ref[t * B:(t + 1) * B, 0:H3]
                r = jax.nn.sigmoid(xi[:, 0:H] + hp[:, 0:H])
                z = jax.nn.sigmoid(xi[:, H:2 * H] + hp[:, H:2 * H])
                n = jnp.tanh(xi[:, 2 * H:H3] + r * (hp[:, 2 * H:H3] + bhn))
                h = (1.0 - z) * n + z * h
                if l < n_gru - 1:
                    seq_ref[t * B:(t + 1) * B, 0:H] = h
            if l < n_gru - 1:
                x_seq = seq_ref[:, 0:H]
            # TODO(synk): inter-GRU-layer nn.Dropout (train mode) omitted -> eval semantics.

        # ---------------------------- dense head (last timestep) ------------------------
        h_last = _leaky(h)   # elementwise LeakyReLU commutes with taking out[:, -1]
        d1 = _leaky(jnp.dot(h_last, w1_ref[...],
                            preferred_element_type=jnp.float32) + b1_ref[...])
        # TODO(synk): nn.Dropout(p) constructed in forward() implemented as identity (eval).
        out_ref[...] = (jnp.dot(d1, w2_ref[...],
                                preferred_element_type=jnp.float32) + b2_ref[...])

    return kernel


# --------------------------------- Full forward (wrapper) -------------------------------
def generator_forward(params, x_ids):
    # x_ids: (B, T) int32 token ids
    B, T = x_ids.shape
    H = params["lstm"][0]["fwd"][1].shape[1]                   # torch w_hh: (4H, H)
    emb = jnp.take(params["embedding"], x_ids, axis=0)         # (B, T, E)  gather glue
    E = emb.shape[-1]
    x_tm = jnp.transpose(emb, (1, 0, 2)).reshape(T * B, E)     # time-major, pre-flattened

    inputs = [x_tm]
    for layer in params["lstm"]:
        wf, whf, bif, bhf = layer["fwd"]
        wb, whb, bib, bhb = layer["bwd"]
        wih_cat = jnp.concatenate([wf.T, wb.T], axis=1)                    # (F, 8H)
        b_cat = jnp.concatenate([bif + bhf, bib + bhb]).reshape(1, 8 * H)  # folded biases
        inputs += [wih_cat, whf.T, whb.T, b_cat]
    for (w_ih, w_hh, b_ih, b_hh) in params["gru"]:
        bfold = (b_ih + jnp.concatenate([b_hh[:2 * H], jnp.zeros((H,), jnp.float32)])
                 ).reshape(1, 3 * H)
        bhn = b_hh[2 * H:].reshape(1, H)
        inputs += [w_ih.T, w_hh.T, bfold, bhn]

    d1w, d1b = params["dense1_w"], params["dense1_b"]
    d2w, d2b = params["dense2_w"], params["dense2_b"]
    dict_size = d2w.shape[0]
    dict_pad = ((dict_size + 127) // 128) * 128                # lane-dense final store
    w2p = jnp.zeros((d2w.shape[1], dict_pad), jnp.float32).at[:, :dict_size].set(d2w.T)
    b2p = jnp.zeros((1, dict_pad), jnp.float32).at[:, :dict_size].set(d2b)
    inputs += [d1w.T, d1b.reshape(1, -1), w2p, b2p]

    kernel = make_generator_kernel(T, B, H, len(params["lstm"]), len(params["gru"]))
    out = pl.pallas_call(
        kernel,
        out_shape=jax.ShapeDtypeStruct((B, dict_pad), jnp.float32),
        grid=(1,),
        in_specs=[_full_spec(a.shape) for a in inputs],
        out_specs=_full_spec((B, dict_pad)),
        scratch_shapes=[pltpu.VMEM((T * B, 2 * H), jnp.float32),
                        pltpu.VMEM((T * B, 8 * H), jnp.float32)],
        compiler_params=pltpu.CompilerParams(dimension_semantics=("arbitrary",)),
    )(*inputs)
    return out[:, :dict_size]


# ------------------------------------ Pure-JAX reference --------------------------------
def ref_forward(params, x_ids, hidden_size):
    H = hidden_size
    out = jnp.take(params["embedding"], x_ids, axis=0)        # (B, T, E)
    for layer in params["lstm"]:
        dirs = []
        for d, (w_ih, w_hh, b_ih, b_hh) in enumerate([layer["fwd"], layer["bwd"]]):
            seq = out if d == 0 else out[:, ::-1]
            B, T, _ = seq.shape
            h = jnp.zeros((B, H)); c = jnp.zeros((B, H)); hs = []
            for t in range(T):
                g = seq[:, t] @ w_ih.T + b_ih + h @ w_hh.T + b_hh
                i = jax.nn.sigmoid(g[:, :H]); f = jax.nn.sigmoid(g[:, H:2 * H])
                gg = jnp.tanh(g[:, 2 * H:3 * H]); o = jax.nn.sigmoid(g[:, 3 * H:])
                c = f * c + i * gg; h = o * jnp.tanh(c)
                hs.append(h)
            o_seq = jnp.stack(hs, axis=1)
            if d == 1:
                o_seq = o_seq[:, ::-1]
            dirs.append(o_seq)
        out = jnp.concatenate(dirs, axis=-1)
    out = _leaky(out)
    for (w_ih, w_hh, b_ih, b_hh) in params["gru"]:
        B, T, _ = out.shape
        h = jnp.zeros((B, H)); hs = []
        for t in range(T):
            xi = out[:, t] @ w_ih.T + b_ih
            hp = h @ w_hh.T + b_hh
            r = jax.nn.sigmoid(xi[:, :H] + hp[:, :H])
            z = jax.nn.sigmoid(xi[:, H:2 * H] + hp[:, H:2 * H])
            n = jnp.tanh(xi[:, 2 * H:] + r * hp[:, 2 * H:])
            h = (1.0 - z) * n + z * h
            hs.append(h)
        out = jnp.stack(hs, axis=1)
    out = _leaky(out)
    d1 = _leaky(out[:, -1] @ params["dense1_w"].T + params["dense1_b"])
    return d1 @ params["dense2_w"].T + params["dense2_b"]


# ---------------------------------- Deterministic params --------------------------------
def init_params(key, dict_size, emb_size, hidden_size, n_layers, dense_size):
    keys = iter(jax.random.split(key, 256))

    def u(shape, scale):
        return jax.random.uniform(next(keys), shape, jnp.float32, -scale, scale)

    k = 1.0 / float(np.sqrt(hidden_size))
    params = {"embedding": u((dict_size, emb_size), 1.0)}

    lstm = []
    for l in range(n_layers):
        in_l = emb_size if l == 0 else 2 * hidden_size
        layer = {}
        for d in ("fwd", "bwd"):
            layer[d] = (u((4 * hidden_size, in_l), k),
                        u((4 * hidden_size, hidden_size), k),
                        u((4 * hidden_size,), k),
                        u((4 * hidden_size,), k))
        lstm.append(layer)
    params["lstm"] = lstm

    gru = []
    for l in range(n_layers):
        in_l = 2 * hidden_size if l == 0 else hidden_size
        gru.append((u((3 * hidden_size, in_l), k),
                    u((3 * hidden_size, hidden_size), k),
                    u((3 * hidden_size,), k),
                    u((3 * hidden_size,), k)))
    params["gru"] = gru

    kd1 = 1.0 / float(np.sqrt(hidden_size))
    kd2 = 1.0 / float(np.sqrt(dense_size))
    params["dense1_w"] = u((dense_size, hidden_size), kd1)
    params["dense1_b"] = u((dense_size,), kd1)
    params["dense2_w"] = u((dict_size, dense_size), kd2)
    params["dense2_b"] = u((dict_size,), kd2)
    return params


if __name__ == "__main__":
    dict_size, emb_size, hidden_size = 50, 16, 32
    n_layers, dense_size, dropout = 1, 24, 0.0
    B, T = 2, 8

    key = jax.random.PRNGKey(0)
    params = init_params(key, dict_size, emb_size, hidden_size, n_layers, dense_size)
    x_ids = jax.random.randint(jax.random.fold_in(key, 999), (B, T), 0, dict_size,
                               dtype=jnp.int32)

    fwd = jax.jit(generator_forward)
    out = fwd(params, x_ids)
    out = jax.block_until_ready(out)
    assert out.shape == (B, dict_size)

    ref = ref_forward(params, x_ids, hidden_size)
    np.testing.assert_allclose(np.asarray(out), np.asarray(ref), rtol=2e-3, atol=2e-3)
    print("KERNEL_OK")
</pallas_src>

<mosaic_0001>
module attributes {stable_mosaic.version = 11 : i64} {
  func.func @kernel(%arg0: i32, %arg1: memref<16x16xf32, #tpu.memory_space<vmem>>, %arg2: memref<16x256xf32, #tpu.memory_space<vmem>>, %arg3: memref<32x128xf32, #tpu.memory_space<vmem>>, %arg4: memref<32x128xf32, #tpu.memory_space<vmem>>, %arg5: memref<1x256xf32, #tpu.memory_space<vmem>>, %arg6: memref<64x96xf32, #tpu.memory_space<vmem>>, %arg7: memref<32x96xf32, #tpu.memory_space<vmem>>, %arg8: memref<1x96xf32, #tpu.memory_space<vmem>>, %arg9: memref<1x32xf32, #tpu.memory_space<vmem>>, %arg10: memref<32x24xf32, #tpu.memory_space<vmem>>, %arg11: memref<1x24xf32, #tpu.memory_space<vmem>>, %arg12: memref<24x128xf32, #tpu.memory_space<vmem>>, %arg13: memref<1x128xf32, #tpu.memory_space<vmem>>, %arg14: memref<2x128xf32, #tpu.memory_space<vmem>>, %arg15: memref<16x64xf32, #tpu.memory_space<vmem>>, %arg16: memref<16x256xf32, #tpu.memory_space<vmem>>) attributes {dimension_semantics = [#tpu.dimension_semantics<arbitrary>], iteration_bounds = array<i64: 1>, scalar_prefetch = 0 : i64, scratch_operands = 2 : i64, tpu.core_type = #tpu.core_type<tc>, window_params = [{pipeline_mode = #tpu.pipeline_mode<synchronous>, transform_indices = @transform_0, window_bounds = array<i64: 16, 16>}, {pipeline_mode = #tpu.pipeline_mode<synchronous>, transform_indices = @transform_1, window_bounds = array<i64: 16, 256>}, {pipeline_mode = #tpu.pipeline_mode<synchronous>, transform_indices = @transform_2, window_bounds = array<i64: 32, 128>}, {pipeline_mode = #tpu.pipeline_mode<synchronous>, transform_indices = @transform_3, window_bounds = array<i64: 32, 128>}, {pipeline_mode = #tpu.pipeline_mode<synchronous>, transform_indices = @transform_4, window_bounds = array<i64: 1, 256>}, {pipeline_mode = #tpu.pipeline_mode<synchronous>, transform_indices = @transform_5, window_bounds = array<i64: 64, 96>}, {pipeline_mode = #tpu.pipeline_mode<synchronous>, transform_indices = @transform_6, window_bounds = array<i64: 32, 96>}, {pipeline_mode = #tpu.pipeline_mode<synchronous>, transform_indices = @transform_7, window_bounds = array<i64: 1, 96>}, {pipeline_mode = #tpu.pipeline_mode<synchronous>, transform_indices = @transform_8, window_bounds = array<i64: 1, 32>}, {pipeline_mode = #tpu.pipeline_mode<synchronous>, transform_indices = @transform_9, window_bounds = array<i64: 32, 24>}, {pipeline_mode = #tpu.pipeline_mode<synchronous>, transform_indices = @transform_10, window_bounds = array<i64: 1, 24>}, {pipeline_mode = #tpu.pipeline_mode<synchronous>, transform_indices = @transform_11, window_bounds = array<i64: 24, 128>}, {pipeline_mode = #tpu.pipeline_mode<synchronous>, transform_indices = @transform_12, window_bounds = array<i64: 1, 128>}, {pipeline_mode = #tpu.pipeline_mode<synchronous>, transform_indices = @transform_13, window_bounds = array<i64: 2, 128>}]} {
    %cst = arith.constant 0.000000e+00 : f32
    %0 = vector.broadcast %cst : f32 to vector<2x32xf32>
    %c0 = arith.constant 0 : index
    %c0_0 = arith.constant 0 : index
    %1 = vector.load %arg1[%c0, %c0_0] : memref<16x16xf32, #tpu.memory_space<vmem>>, vector<16x16xf32>
    %c0_1 = arith.constant 0 : index
    %c0_2 = arith.constant 0 : index
    %2 = vector.load %arg2[%c0_1, %c0_2] : memref<16x256xf32, #tpu.memory_space<vmem>>, vector<16x256xf32>
    %cst_3 = arith.constant dense<0.000000e+00> : vector<16x256xf32>
    %3 = tpu.matmul %1, %2, %cst_3 {dimension_numbers = #tpu.dot_dimension_numbers<[1], [0], [0], [1], [0, 0, 1, 1], [], []>} : vector<16x16xf32>, vector<16x256xf32>, vector<16x256xf32> -> vector<16x256xf32>
    %c0_4 = arith.constant 0 : index
    %c0_5 = arith.constant 0 : index
    %4 = vector.load %arg5[%c0_4, %c0_5] : memref<1x256xf32, #tpu.memory_space<vmem>>, vector<1x256xf32>
    %5 = vector.broadcast %4 : vector<1x256xf32> to vector<16x256xf32>
    %6 = arith.addf %3, %5 : vector<16x256xf32>
    %c0_6 = arith.constant 0 : index
    %c0_7 = arith.constant 0 : index
    %7 = vector.load %arg16[%c0_6, %c0_7] : memref<16x256xf32, #tpu.memory_space<vmem>>, vector<16x256xf32>
    tpu.vector_store %arg16[%c0_6, %c0_7], %6 {strides = array<i32>} : memref<16x256xf32, #tpu.memory_space<vmem>>, vector<16x256xf32>,
    %c0_8 = arith.constant 0 : index
    %c0_9 = arith.constant 0 : index
    %8 = vector.load %arg3[%c0_8, %c0_9] : memref<32x128xf32, #tpu.memory_space<vmem>>, vector<32x128xf32>
    %c0_10 = arith.constant 0 : index
    %c0_11 = arith.constant 0 : index
    %9 = vector.load %arg4[%c0_10, %c0_11] : memref<32x128xf32, #tpu.memory_space<vmem>>, vector<32x128xf32>
    %c0_12 = arith.constant 0 : index
    %c0_13 = arith.constant 0 : index
    %10 = vector.load %arg16[%c0_12, %c0_13] : memref<16x256xf32, #tpu.memory_space<vmem>>, vector<2x128xf32>
    %cst_14 = arith.constant dense<0.000000e+00> : vector<2x128xf32>
    %11 = tpu.matmul %0, %8, %cst_14 {dimension_numbers = #tpu.dot_dimension_numbers<[1], [0], [0], [1], [0, 0, 1, 1], [], []>} : vector<2x32xf32>, vector<32x128xf32>, vector<2x128xf32> -> vector<2x128xf32>
    %12 = arith.addf %10, %11 : vector<2x128xf32>
    %c14 = arith.constant 14 : index
    %c128 = arith.constant 128 : index
    %13 = vector.load %arg16[%c14, %c128] : memref<16x256xf32, #tpu.memory_space<vmem>>, vector<2x128xf32>
    %cst_15 = arith.constant dense<0.000000e+00> : vector<2x128xf32>
    %14 = tpu.matmul %0, %9, %cst_15 {dimension_numbers = #tpu.dot_dimension_numbers<[1], [0], [0], [1], [0, 0, 1, 1], [], []>} : vector<2x32xf32>, vector<32x128xf32>, vector<2x128xf32> -> vector<2x128xf32>
    %15 = arith.addf %13, %14 : vector<2x128xf32>
    %16 = vector.extract_strided_slice %12 {offsets = [0, 0], sizes = [2, 32], strides = [1, 1]} : vector<2x128xf32> to vector<2x32xf32>
    %17 = arith.negf %16 : vector<2x32xf32>
    %18 = math.exp %17 : vector<2x32xf32>
    %cst_16 = arith.constant 1.000000e+00 : f32
    %19 = vector.broadcast %cst_16 : f32 to vector<2x32xf32>
    %20 = arith.addf %19, %18 : vector<2x32xf32>
    %21 = arith.divf %19, %20 : vector<2x32xf32>
    %22 = vector.extract_strided_slice %15 {offsets = [0, 0], sizes = [2, 32], strides = [1, 1]} : vector<2x128xf32> to vector<2x32xf32>
    %23 = arith.negf %22 : vector<2x32xf32>
    %24 = math.exp %23 : vector<2x32xf32>
    %cst_17 = arith.constant 1.000000e+00 : f32
    %25 = vector.broadcast %cst_17 : f32 to vector<2x32xf32>
    %26 = arith.addf %25, %24 : vector<2x32xf32>
    %27 = arith.divf %25, %26 : vector<2x32xf32>
    %28 = vector.extract_strided_slice %12 {offsets = [0, 32], sizes = [2, 32], strides = [1, 1]} : vector<2x128xf32> to vector<2x32xf32>
    %29 = arith.negf %28 : vector<2x32xf32>
    %30 = math.exp %29 : vector<2x32xf32>
    %cst_18 = arith.constant 1.000000e+00 : f32
    %31 = vector.broadcast %cst_18 : f32 to vector<2x32xf32>
    %32 = arith.addf %31, %30 : vector<2x32xf32>
    %33 = arith.divf %31, %32 : vector<2x32xf32>
    %34 = vector.extract_strided_slice %15 {offsets = [0, 32], sizes = [2, 32], strides = [1, 1]} : vector<2x128xf32> to vector<2x32xf32>
    %35 = arith.negf %34 : vector<2x32xf32>
    %36 = math.exp %35 : vector<2x32xf32>
    %cst_19 = arith.constant 1.000000e+00 : f32
    %37 = vector.broadcast %cst_19 : f32 to vector<2x32xf32>
    %38 = arith.addf %37, %36 : vector<2x32xf32>
    %39 = arith.divf %37, %38 : vector<2x32xf32>
    %40 = vector.extract_strided_slice %12 {offsets = [0, 64], sizes = [2, 32], strides = [1, 1]} : vector<2x128xf32> to vector<2x32xf32>
    %41 = math.tanh %40 : vector<2x32xf32>
    %42 = vector.extract_strided_slice %15 {offsets = [0, 64], sizes = [2, 32], strides = [1, 1]} : vector<2x128xf32> to vector<2x32xf32>
    %43 = math.tanh %42 : vector<2x32xf32>
    %44 = vector.extract_strided_slice %12 {offsets = [0, 96], sizes = [2, 32], strides = [1, 1]} : vector<2x128xf32> to vector<2x32xf32>
    %45 = arith.negf %44 : vector<2x32xf32>
    %46 = math.exp %45 : vector<2x32xf32>
    %cst_20 = arith.constant 1.000000e+00 : f32
    %47 = vector.broadcast %cst_20 : f32 to vector<2x32xf32>
    %48 = arith.addf %47, %46 : vector<2x32xf32>
    %49 = arith.divf %47, %48 : vector<2x32xf32>
    %50 = vector.extract_strided_slice %15 {offsets = [0, 96], sizes = [2, 32], strides = [1, 1]} : vector<2x128xf32> to vector<2x32xf32>
    %51 = arith.negf %50 : vector<2x32xf32>
    %52 = math.exp %51 : vector<2x32xf32>
    %cst_21 = arith.constant 1.000000e+00 : f32
    %53 = vector.broadcast %cst_21 : f32 to vector<2x32xf32>
    %54 = arith.addf %53, %52 : vector<2x32xf32>
    %55 = arith.divf %53, %54 : vector<2x32xf32>
    %56 = arith.mulf %33, %0 : vector<2x32xf32>
    %57 = arith.mulf %21, %41 : vector<2x32xf32>
    %58 = arith.addf %56, %57 : vector<2x32xf32>
    %59 = arith.mulf %39, %0 : vector<2x32xf32>
    %60 = arith.mulf %27, %43 : vector<2x32xf32>
    %61 = arith.addf %59, %60 : vector<2x32xf32>
    %62 = math.tanh %58 : vector<2x32xf32>
    %63 = arith.mulf %49, %62 : vector<2x32xf32>
    %64 = math.tanh %61 : vector<2x32xf32>
    %65 = arith.mulf %55, %64 : vector<2x32xf32>
    %c0_22 = arith.constant 0 : index
    %c0_23 = arith.constant 0 : index
    %66 = vector.load %arg15[%c0_22, %c0_23] : memref<16x64xf32, #tpu.memory_space<vmem>>, vector<2x32xf32>
    tpu.vector_store %arg15[%c0_22, %c0_23], %63 {strides = array<i32>} : memref<16x64xf32, #tpu.memory_space<vmem>>, vector<2x32xf32>,
    %c14_24 = arith.constant 14 : index
    %c32 = arith.constant 32 : index
    %67 = vector.load %arg15[%c14_24, %c32] : memref<16x64xf32, #tpu.memory_space<vmem>>, vector<2x32xf32>
    tpu.vector_store %arg15[%c14_24, %c32], %65 {strides = array<i32>} : memref<16x64xf32, #tpu.memory_space<vmem>>, vector<2x32xf32>,
    %c2 = arith.constant 2 : index
    %c0_25 = arith.constant 0 : index
    %68 = vector.load %arg16[%c2, %c0_25] : memref<16x256xf32, #tpu.memory_space<vmem>>, vector<2x128xf32>
    %cst_26 = arith.constant dense<0.000000e+00> : vector<2x128xf32>
    %69 = tpu.matmul %63, %8, %cst_26 {dimension_numbers = #tpu.dot_dimension_numbers<[1], [0], [0], [1], [0, 0, 1, 1], [], []>} : vector<2x32xf32>, vector<32x128xf32>, vector<2x128xf32> -> vector<2x128xf32>
    %70 = arith.addf %68, %69 : vector<2x128xf32>
    %c12 = arith.constant 12 : index
    %c128_27 = arith.constant 128 : index
    %71 = vector.load %arg16[%c12, %c128_27] : memref<16x256xf32, #tpu.memory_space<vmem>>, vector<2x128xf32>
    %cst_28 = arith.constant dense<0.000000e+00> : vector<2x128xf32>
    %72 = tpu.matmul %65, %9, %cst_28 {dimension_numbers = #tpu.dot_dimension_numbers<[1], [0], [0], [1], [0, 0, 1, 1], [], []>} : vector<2x32xf32>, vector<32x128xf32>, vector<2x128xf32> -> vector<2x128xf32>
    %73 = arith.addf %71, %72 : vector<2x128xf32>
    %74 = vector.extract_strided_slice %70 {offsets = [0, 0], sizes = [2, 32], strides = [1, 1]} : vector<2x128xf32> to vector<2x32xf32>
    %75 = arith.negf %74 : vector<2x32xf32>
    %76 = math.exp %75 : vector<2x32xf32>
    %cst_29 = arith.constant 1.000000e+00 : f32
    %77 = vector.broadcast %cst_29 : f32 to vector<2x32xf32>
    %78 = arith.addf %77, %76 : vector<2x32xf32>
    %79 = arith.divf %77, %78 : vector<2x32xf32>
    %80 = vector.extract_strided_slice %73 {offsets = [0, 0], sizes = [2, 32], strides = [1, 1]} : vector<2x128xf32> to vector<2x32xf32>
    %81 = arith.negf %80 : vector<2x32xf32>
    %82 = math.exp %81 : vector<2x32xf32>
    %cst_30 = arith.constant 1.000000e+00 : f32
    %83 = vector.broadcast %cst_30 : f32 to vector<2x32xf32>
    %84 = arith.addf %83, %82 : vector<2x32xf32>
    %85 = arith.divf %83, %84 : vector<2x32xf32>
    %86 = vector.extract_strided_slice %70 {offsets = [0, 32], sizes = [2, 32], strides = [1, 1]} : vector<2x128xf32> to vector<2x32xf32>
    %87 = arith.negf %86 : vector<2x32xf32>
    %88 = math.exp %87 : vector<2x32xf32>
    %cst_31 = arith.constant 1.000000e+00 : f32
    %89 = vector.broadcast %cst_31 : f32 to vector<2x32xf32>
    %90 = arith.addf %89, %88 : vector<2x32xf32>
    %91 = arith.divf %89, %90 : vector<2x32xf32>
    %92 = vector.extract_strided_slice %73 {offsets = [0, 32], sizes = [2, 32], strides = [1, 1]} : vector<2x128xf32> to vector<2x32xf32>
    %93 = arith.negf %92 : vector<2x32xf32>
    %94 = math.exp %93 : vector<2x32xf32>
    %cst_32 = arith.constant 1.000000e+00 : f32
    %95 = vector.broadcast %cst_32 : f32 to vector<2x32xf32>
    %96 = arith.addf %95, %94 : vector<2x32xf32>
    %97 = arith.divf %95, %96 : vector<2x32xf32>
    %98 = vector.extract_strided_slice %70 {offsets = [0, 64], sizes = [2, 32], strides = [1, 1]} : vector<2x128xf32> to vector<2x32xf32>
    %99 = math.tanh %98 : vector<2x32xf32>
    %100 = vector.extract_strided_slice %73 {offsets = [0, 64], sizes = [2, 32], strides = [1, 1]} : vector<2x128xf32> to vector<2x32xf32>
    %101 = math.tanh %100 : vector<2x32xf32>
    %102 = vector.extract_strided_slice %70 {offsets = [0, 96], sizes = [2, 32], strides = [1, 1]} : vector<2x128xf32> to vector<2x32xf32>
    %103 = arith.negf %102 : vector<2x32xf32>
    %104 = math.exp %103 : vector<2x32xf32>
    %cst_33 = arith.constant 1.000000e+00 : f32
    %105 = vector.broadcast %cst_33 : f32 to vector<2x32xf32>
    %106 = arith.addf %105, %104 : vector<2x32xf32>
    %107 = arith.divf %105, %106 : vector<2x32xf32>
    %108 = vector.extract_strided_slice %73 {offsets = [0, 96], sizes = [2, 32], strides = [1, 1]} : vector<2x128xf32> to vector<2x32xf32>
    %109 = arith.negf %108 : vector<2x32xf32>
    %110 = math.exp %109 : vector<2x32xf32>
    %cst_34 = arith.constant 1.000000e+00 : f32
    %111 = vector.broadcast %cst_34 : f32 to vector<2x32xf32>
    %112 = arith.addf %111, %110 : vector<2x32xf32>
    %113 = arith.divf %111, %112 : vector<2x32xf32>
    %114 = arith.mulf %91, %58 : vector<2x32xf32>
    %115 = arith.mulf %79, %99 : vector<2x32xf32>
    %116 = arith.addf %114, %115 : vector<2x32xf32>
    %117 = arith.mulf %97, %61 : vector<2x32xf32>
    %118 = arith.mulf %85, %101 : vector<2x32xf32>
    %119 = arith.addf %117, %118 : vector<2x32xf32>
    %120 = math.tanh %116 : vector<2x32xf32>
    %121 = arith.mulf %107, %120 : vector<2x32xf32>
    %122 = math.tanh %119 : vector<2x32xf32>
    %123 = arith.mulf %113, %122 : vector<2x32xf32>
    %c2_35 = arith.constant 2 : index
    %c0_36 = arith.constant 0 : index
    %124 = vector.load %arg15[%c2_35, %c0_36] : memref<16x64xf32, #tpu.memory_space<vmem>>, vector<2x32xf32>
    tpu.vector_store %arg15[%c2_35, %c0_36], %121 {strides = array<i32>} : memref<16x64xf32, #tpu.memory_space<vmem>>, vector<2x32xf32>,
    %c12_37 = arith.constant 12 : index
    %c32_38 = arith.constant 32 : index
    %125 = vector.load %arg15[%c12_37, %c32_38] : memref<16x64xf32, #tpu.memory_space<vmem>>, vector<2x32xf32>
    tpu.vector_store %arg15[%c12_37, %c32_38], %123 {strides = array<i32>} : memref<16x64xf32, #tpu.memory_space<vmem>>, vector<2x32xf32>,
    %c4 = arith.constant 4 : index
    %c0_39 = arith.constant 0 : index
    %126 = vector.load %arg16[%c4, %c0_39] : memref<16x256xf32, #tpu.memory_space<vmem>>, vector<2x128xf32>
    %cst_40 = arith.constant dense<0.000000e+00> : vector<2x128xf32>
    %127 = tpu.matmul %121, %8, %cst_40 {dimension_numbers = #tpu.dot_dimension_numbers<[1], [0], [0], [1], [0, 0, 1, 1], [], []>} : vector<2x32xf32>, vector<32x128xf32>, vector<2x128xf32> -> vector<2x128xf32>
    %128 = arith.addf %126, %127 : vector<2x128xf32>
    %c10 = arith.constant 10 : index
    %c128_41 = arith.constant 128 : index
    %129 = vector.load %arg16[%c10, %c128_41] : memref<16x256xf32, #tpu.memory_space<vmem>>, vector<2x128xf32>
    %cst_42 = arith.constant dense<0.000000e+00> : vector<2x128xf32>
    %130 = tpu.matmul %123, %9, %cst_42 {dimension_numbers = #tpu.dot_dimension_numbers<[1], [0], [0], [1], [0, 0, 1, 1], [], []>} : vector<2x32xf32>, vector<32x128xf32>, vector<2x128xf32> -> vector<2x128xf32>
    %131 = arith.addf %129, %130 : vector<2x128xf32>
    %132 = vector.extract_strided_slice %128 {offsets = [0, 0], sizes = [2, 32], strides = [1, 1]} : vector<2x128xf32> to vector<2x32xf32>
    %133 = arith.negf %132 : vector<2x32xf32>
    %134 = math.exp %133 : vector<2x32xf32>
    %cst_43 = arith.constant 1.000000e+00 : f32
    %135 = vector.broadcast %cst_43 : f32 to vector<2x32xf32>
    %136 = arith.addf %135, %134 : vector<2x32xf32>
    %137 = arith.divf %135, %136 : vector<2x32xf32>
    %138 = vector.extract_strided_slice %131 {offsets = [0, 0], sizes = [2, 32], strides = [1, 1]} : vector<2x128xf32> to vector<2x32xf32>
    %139 = arith.negf %138 : vector<2x32xf32>
    %140 = math.exp %139 : vector<2x32xf32>
    %cst_44 = arith.constant 1.000000e+00 : f32
    %141 = vector.broadcast %cst_44 : f32 to vector<2x32xf32>
    %142 = arith.addf %141, %140 : vector<2x32xf32>
    %143 = arith.divf %141, %142 : vector<2x32xf32>
    %144 = vector.extract_strided_slice %128 {offsets = [0, 32], sizes = [2, 32], strides = [1, 1]} : vector<2x128xf32> to vector<2x32xf32>
    %145 = arith.negf %144 : vector<2x32xf32>
    %146 = math.exp %145 : vector<2x32xf32>
    %cst_45 = arith.constant 1.000000e+00 : f32
    %147 = vector.broadcast %cst_45 : f32 to vector<2x32xf32>
    %148 = arith.addf %147, %146 : vector<2x32xf32>
    %149 = arith.divf %147, %148 : vector<2x32xf32>
    %150 = vector.extract_strided_slice %131 {offsets = [0, 32], sizes = [2, 32], strides = [1, 1]} : vector<2x128xf32> to vector<2x32xf32>
    %151 = arith.negf %150 : vector<2x32xf32>
    %152 = math.exp %151 : vector<2x32xf32>
    %cst_46 = arith.constant 1.000000e+00 : f32
    %153 = vector.broadcast %cst_46 : f32 to vector<2x32xf32>
    %154 = arith.addf %153, %152 : vector<2x32xf32>
    %155 = arith.divf %153, %154 : vector<2x32xf32>
    %156 = vector.extract_strided_slice %128 {offsets = [0, 64], sizes = [2, 32], strides = [1, 1]} : vector<2x128xf32> to vector<2x32xf32>
    %157 = math.tanh %156 : vector<2x32xf32>
    %158 = vector.extract_strided_slice %131 {offsets = [0, 64], sizes = [2, 32], strides = [1, 1]} : vector<2x128xf32> to vector<2x32xf32>
    %159 = math.tanh %158 : vector<2x32xf32>
    %160 = vector.extract_strided_slice %128 {offsets = [0, 96], sizes = [2, 32], strides = [1, 1]} : vector<2x128xf32> to vector<2x32xf32>
    %161 = arith.negf %160 : vector<2x32xf32>
    %162 = math.exp %161 : vector<2x32xf32>
    %cst_47 = arith.constant 1.000000e+00 : f32
    %163 = vector.broadcast %cst_47 : f32 to vector<2x32xf32>
    %164 = arith.addf %163, %162 : vector<2x32xf32>
    %165 = arith.divf %163, %164 : vector<2x32xf32>
    %166 = vector.extract_strided_slice %131 {offsets = [0, 96], sizes = [2, 32], strides = [1, 1]} : vector<2x128xf32> to vector<2x32xf32>
    %167 = arith.negf %166 : vector<2x32xf32>
    %168 = math.exp %167 : vector<2x32xf32>
    %cst_48 = arith.constant 1.000000e+00 : f32
    %169 = vector.broadcast %cst_48 : f32 to vector<2x32xf32>
    %170 = arith.addf %169, %168 : vector<2x32xf32>
    %171 = arith.divf %169, %170 : vector<2x32xf32>
    %172 = arith.mulf %149, %116 : vector<2x32xf32>
    %173 = arith.mulf %137, %157 : vector<2x32xf32>
    %174 = arith.addf %172, %173 : vector<2x32xf32>
    %175 = arith.mulf %155, %119 : vector<2x32xf32>
    %176 = arith.mulf %143, %159 : vector<2x32xf32>
    %177 = arith.addf %175, %176 : vector<2x32xf32>
    %178 = math.tanh %174 : vector<2x32xf32>
    %179 = arith.mulf %165, %178 : vector<2x32xf32>
    %180 = math.tanh %177 : vector<2x32xf32>
    %181 = arith.mulf %171, %180 : vector<2x32xf32>
    %c4_49 = arith.constant 4 : index
    %c0_50 = arith.constant 0 : index
    %182 = vector.load %arg15[%c4_49, %c0_50] : memref<16x64xf32, #tpu.memory_space<vmem>>, vector<2x32xf32>
    tpu.vector_store %arg15[%c4_49, %c0_50], %179 {strides = array<i32>} : memref<16x64xf32, #tpu.memory_space<vmem>>, vector<2x32xf32>,
    %c10_51 = arith.constant 10 : index
    %c32_52 = arith.constant 32 : index
    %183 = vector.load %arg15[%c10_51, %c32_52] : memref<16x64xf32, #tpu.memory_space<vmem>>, vector<2x32xf32>
    tpu.vector_store %arg15[%c10_51, %c32_52], %181 {strides = array<i32>} : memref<16x64xf32, #tpu.memory_space<vmem>>, vector<2x32xf32>,
    %c6 = arith.constant 6 : index
    %c0_53 = arith.constant 0 : index
    %184 = vector.load %arg16[%c6, %c0_53] : memref<16x256xf32, #tpu.memory_space<vmem>>, vector<2x128xf32>
    %cst_54 = arith.constant dense<0.000000e+00> : vector<2x128xf32>
    %185 = tpu.matmul %179, %8, %cst_54 {dimension_numbers = #tpu.dot_dimension_numbers<[1], [0], [0], [1], [0, 0, 1, 1], [], []>} : vector<2x32xf32>, vector<32x128xf32>, vector<2x128xf32> -> vector<2x128xf32>
    %186 = arith.addf %184, %185 : vector<2x128xf32>
    %c8 = arith.constant 8 : index
    %c128_55 = arith.constant 128 : index
    %187 = vector.load %arg16[%c8, %c128_55] : memref<16x256xf32, #tpu.memory_space<vmem>>, vector<2x128xf32>
    %cst_56 = arith.constant dense<0.000000e+00> : vector<2x128xf32>
    %188 = tpu.matmul %181, %9, %cst_56 {dimension_numbers = #tpu.dot_dimension_numbers<[1], [0], [0], [1], [0, 0, 1, 1], [], []>} : vector<2x32xf32>, vector<32x128xf32>, vector<2x128xf32> -> vector<2x128xf32>
    %189 = arith.addf %187, %188 : vector<2x128xf32>
    %190 = vector.extract_strided_slice %186 {offsets = [0, 0], sizes = [2, 32], strides = [1, 1]} : vector<2x128xf32> to vector<2x32xf32>
    %191 = arith.negf %190 : vector<2x32xf32>
    %192 = math.exp %191 : vector<2x32xf32>
    %cst_57 = arith.constant 1.000000e+00 : f32
    %193 = vector.broadcast %cst_57 : f32 to vector<2x32xf32>
    %194 = arith.addf %193, %192 : vector<2x32xf32>
    %195 = arith.divf %193, %194 : vector<2x32xf32>
    %196 = vector.extract_strided_slice %189 {offsets = [0, 0], sizes = [2, 32], strides = [1, 1]} : vector<2x128xf32> to vector<2x32xf32>
    %197 = arith.negf %196 : vector<2x32xf32>
    %198 = math.exp %197 : vector<2x32xf32>
    %cst_58 = arith.constant 1.000000e+00 : f32
    %199 = vector.broadcast %cst_58 : f32 to vector<2x32xf32>
    %200 = arith.addf %199, %198 : vector<2x32xf32>
    %201 = arith.divf %199, %200 : vector<2x32xf32>
    %202 = vector.extract_strided_slice %186 {offsets = [0, 32], sizes = [2, 32], strides = [1, 1]} : vector<2x128xf32> to vector<2x32xf32>
    %203 = arith.negf %202 : vector<2x32xf32>
    %204 = math.exp %203 : vector<2x32xf32>
    %cst_59 = arith.constant 1.000000e+00 : f32
    %205 = vector.broadcast %cst_59 : f32 to vector<2x32xf32>
    %206 = arith.addf %205, %204 : vector<2x32xf32>
    %207 = arith.divf %205, %206 : vector<2x32xf32>
    %208 = vector.extract_strided_slice %189 {offsets = [0, 32], sizes = [2, 32], strides = [1, 1]} : vector<2x128xf32> to vector<2x32xf32>
    %209 = arith.negf %208 : vector<2x32xf32>
    %210 = math.exp %209 : vector<2x32xf32>
    %cst_60 = arith.constant 1.000000e+00 : f32
    %211 = vector.broadcast %cst_60 : f32 to vector<2x32xf32>
    %212 = arith.addf %211, %210 : vector<2x32xf32>
    %213 = arith.divf %211, %212 : vector<2x32xf32>
    %214 = vector.extract_strided_slice %186 {offsets = [0, 64], sizes = [2, 32], strides = [1, 1]} : vector<2x128xf32> to vector<2x32xf32>
    %215 = math.tanh %214 : vector<2x32xf32>
    %216 = vector.extract_strided_slice %189 {offsets = [0, 64], sizes = [2, 32], strides = [1, 1]} : vector<2x128xf32> to vector<2x32xf32>
    %217 = math.tanh %216 : vector<2x32xf32>
    %218 = vector.extract_strided_slice %186 {offsets = [0, 96], sizes = [2, 32], strides = [1, 1]} : vector<2x128xf32> to vector<2x32xf32>
    %219 = arith.negf %218 : vector<2x32xf32>
    %220 = math.exp %219 : vector<2x32xf32>
    %cst_61 = arith.constant 1.000000e+00 : f32
    %221 = vector.broadcast %cst_61 : f32 to vector<2x32xf32>
    %222 = arith.addf %221, %220 : vector<2x32xf32>
    %223 = arith.divf %221, %222 : vector<2x32xf32>
    %224 = vector.extract_strided_slice %189 {offsets = [0, 96], sizes = [2, 32], strides = [1, 1]} : vector<2x128xf32> to vector<2x32xf32>
    %225 = arith.negf %224 : vector<2x32xf32>
    %226 = math.exp %225 : vector<2x32xf32>
    %cst_62 = arith.constant 1.000000e+00 : f32
    %227 = vector.broadcast %cst_62 : f32 to vector<2x32xf32>
    %228 = arith.addf %227, %226 : vector<2x32xf32>
    %229 = arith.divf %227, %228 : vector<2x32xf32>
    %230 = arith.mulf %207, %174 : vector<2x32xf32>
    %231 = arith.mulf %195, %215 : vector<2x32xf32>
    %232 = arith.addf %230, %231 : vector<2x32xf32>
    %233 = arith.mulf %213, %177 : vector<2x32xf32>
    %234 = arith.mulf %201, %217 : vector<2x32xf32>
    %235 = arith.addf %233, %234 : vector<2x32xf32>
    %236 = math.tanh %232 : vector<2x32xf32>
    %237 = arith.mulf %223, %236 : vector<2x32xf32>
    %238 = math.tanh %235 : vector<2x32xf32>
    %239 = arith.mulf %229, %238 : vector<2x32xf32>
    %c6_63 = arith.constant 6 : index
    %c0_64 = arith.constant 0 : index
    %240 = vector.load %arg15[%c6_63, %c0_64] : memref<16x64xf32, #tpu.memory_space<vmem>>, vector<2x32xf32>
    tpu.vector_store %arg15[%c6_63, %c0_64], %237 {strides = array<i32>} : memref<16x64xf32, #tpu.memory_space<vmem>>, vector<2x32xf32>,
    %c8_65 = arith.constant 8 : index
    %c32_66 = arith.constant 32 : index
    %241 = vector.load %arg15[%c8_65, %c32_66] : memref<16x64xf32, #tpu.memory_space<vmem>>, vector<2x32xf32>
    tpu.vector_store %arg15[%c8_65, %c32_66], %239 {strides = array<i32>} : memref<16x64xf32, #tpu.memory_space<vmem>>, vector<2x32xf32>,
    %c8_67 = arith.constant 8 : index
    %c0_68 = arith.constant 0 : index
    %242 = vector.load %arg16[%c8_67, %c0_68] : memref<16x256xf32, #tpu.memory_space<vmem>>, vector<2x128xf32>
    %cst_69 = arith.constant dense<0.000000e+00> : vector<2x128xf32>
    %243 = tpu.matmul %237, %8, %cst_69 {dimension_numbers = #tpu.dot_dimension_numbers<[1], [0], [0], [1], [0, 0, 1, 1], [], []>} : vector<2x32xf32>, vector<32x128xf32>, vector<2x128xf32> -> vector<2x128xf32>
    %244 = arith.addf %242, %243 : vector<2x128xf32>
    %c6_70 = arith.constant 6 : index
    %c128_71 = arith.constant 128 : index
    %245 = vector.load %arg16[%c6_70, %c128_71] : memref<16x256xf32, #tpu.memory_space<vmem>>, vector<2x128xf32>
    %cst_72 = arith.constant dense<0.000000e+00> : vector<2x128xf32>
    %246 = tpu.matmul %239, %9, %cst_72 {dimension_numbers = #tpu.dot_dimension_numbers<[1], [0], [0], [1], [0, 0, 1, 1], [], []>} : vector<2x32xf32>, vector<32x128xf32>, vector<2x128xf32> -> vector<2x128xf32>
    %247 = arith.addf %245, %246 : vector<2x128xf32>
    %248 = vector.extract_strided_slice %244 {offsets = [0, 0], sizes = [2, 32], strides = [1, 1]} : vector<2x128xf32> to vector<2x32xf32>
    %249 = arith.negf %248 : vector<2x32xf32>
    %250 = math.exp %249 : vector<2x32xf32>
    %cst_73 = arith.constant 1.000000e+00 : f32
    %251 = vector.broadcast %cst_73 : f32 to vector<2x32xf32>
    %252 = arith.addf %251, %250 : vector<2x32xf32>
    %253 = arith.divf %251, %252 : vector<2x32xf32>
    %254 = vector.extract_strided_slice %247 {offsets = [0, 0], sizes = [2, 32], strides = [1, 1]} : vector<2x128xf32> to vector<2x32xf32>
    %255 = arith.negf %254 : vector<2x32xf32>
    %256 = math.exp %255 : vector<2x32xf32>
    %cst_74 = arith.constant 1.000000e+00 : f32
    %257 = vector.broadcast %cst_74 : f32 to vector<2x32xf32>
    %258 = arith.addf %257, %256 : vector<2x32xf32>
    %259 = arith.divf %257, %258 : vector<2x32xf32>
    %260 = vector.extract_strided_slice %244 {offsets = [0, 32], sizes = [2, 32], strides = [1, 1]} : vector<2x128xf32> to vector<2x32xf32>
    %261 = arith.negf %260 : vector<2x32xf32>
    %262 = math.exp %261 : vector<2x32xf32>
    %cst_75 = arith.constant 1.000000e+00 : f32
    %263 = vector.broadcast %cst_75 : f32 to vector<2x32xf32>
    %264 = arith.addf %263, %262 : vector<2x32xf32>
    %265 = arith.divf %263, %264 : vector<2x32xf32>
    %266 = vector.extract_strided_slice %247 {offsets = [0, 32], sizes = [2, 32], strides = [1, 1]} : vector<2x128xf32> to vector<2x32xf32>
    %267 = arith.negf %266 : vector<2x32xf32>
    %268 = math.exp %267 : vector<2x32xf32>
    %cst_76 = arith.constant 1.000000e+00 : f32
    %269 = vector.broadcast %cst_76 : f32 to vector<2x32xf32>
    %270 = arith.addf %269, %268 : vector<2x32xf32>
    %271 = arith.divf %269, %270 : vector<2x32xf32>
    %272 = vector.extract_strided_slice %244 {offsets = [0, 64], sizes = [2, 32], strides = [1, 1]} : vector<2x128xf32> to vector<2x32xf32>
    %273 = math.tanh %272 : vector<2x32xf32>
    %274 = vector.extract_strided_slice %247 {offsets = [0, 64], sizes = [2, 32], strides = [1, 1]} : vector<2x128xf32> to vector<2x32xf32>
    %275 = math.tanh %274 : vector<2x32xf32>
    %276 = vector.extract_strided_slice %244 {offsets = [0, 96], sizes = [2, 32], strides = [1, 1]} : vector<2x128xf32> to vector<2x32xf32>
    %277 = arith.negf %276 : vector<2x32xf32>
    %278 = math.exp %277 : vector<2x32xf32>
    %cst_77 = arith.constant 1.000000e+00 : f32
    %279 = vector.broadcast %cst_77 : f32 to vector<2x32xf32>
    %280 = arith.addf %279, %278 : vector<2x32xf32>
    %281 = arith.divf %279, %280 : vector<2x32xf32>
    %282 = vector.extract_strided_slice %247 {offsets = [0, 96], sizes = [2, 32], strides = [1, 1]} : vector<2x128xf32> to vector<2x32xf32>
    %283 = arith.negf %282 : vector<2x32xf32>
    %284 = math.exp %283 : vector<2x32xf32>
    %cst_78 = arith.constant 1.000000e+00 : f32
    %285 = vector.broadcast %cst_78 : f32 to vector<2x32xf32>
    %286 = arith.addf %285, %284 : vector<2x32xf32>
    %287 = arith.divf %285, %286 : vector<2x32xf32>
    %288 = arith.mulf %265, %232 : vector<2x32xf32>
    %289 = arith.mulf %253, %273 : vector<2x32xf32>
    %290 = arith.addf %288, %289 : vector<2x32xf32>
    %291 = arith.mulf %271, %235 : vector<2x32xf32>
    %292 = arith.mulf %259, %275 : vector<2x32xf32>
    %293 = arith.addf %291, %292 : vector<2x32xf32>
    %294 = math.tanh %290 : vector<2x32xf32>
    %295 = arith.mulf %281, %294 : vector<2x32xf32>
    %296 = math.tanh %293 : vector<2x32xf32>
    %297 = arith.mulf %287, %296 : vector<2x32xf32>
    %c8_79 = arith.constant 8 : index
    %c0_80 = arith.constant 0 : index
    %298 = vector.load %arg15[%c8_79, %c0_80] : memref<16x64xf32, #tpu.memory_space<vmem>>, vector<2x32xf32>
    tpu.vector_store %arg15[%c8_79, %c0_80], %295 {strides = array<i32>} : memref<16x64xf32, #tpu.memory_space<vmem>>, vector<2x32xf32>,
    %c6_81 = arith.constant 6 : index
    %c32_82 = arith.constant 32 : index
    %299 = vector.load %arg15[%c6_81, %c32_82] : memref<16x64xf32, #tpu.memory_space<vmem>>, vector<2x32xf32>
    tpu.vector_store %arg15[%c6_81, %c32_82], %297 {strides = array<i32>} : memref<16x64xf32, #tpu.memory_space<vmem>>, vector<2x32xf32>,
    %c10_83 = arith.constant 10 : index
    %c0_84 = arith.constant 0 : index
    %300 = vector.load %arg16[%c10_83, %c0_84] : memref<16x256xf32, #tpu.memory_space<vmem>>, vector<2x128xf32>
    %cst_85 = arith.constant dense<0.000000e+00> : vector<2x128xf32>
    %301 = tpu.matmul %295, %8, %cst_85 {dimension_numbers = #tpu.dot_dimension_numbers<[1], [0], [0], [1], [0, 0, 1, 1], [], []>} : vector<2x32xf32>, vector<32x128xf32>, vector<2x128xf32> -> vector<2x128xf32>
    %302 = arith.addf %300, %301 : vector<2x128xf32>
    %c4_86 = arith.constant 4 : index
    %c128_87 = arith.constant 128 : index
    %303 = vector.load %arg16[%c4_86, %c128_87] : memref<16x256xf32, #tpu.memory_space<vmem>>, vector<2x128xf32>
    %cst_88 = arith.constant dense<0.000000e+00> : vector<2x128xf32>
    %304 = tpu.matmul %297, %9, %cst_88 {dimension_numbers = #tpu.dot_dimension_numbers<[1], [0], [0], [1], [0, 0, 1, 1], [], []>} : vector<2x32xf32>, vector<32x128xf32>, vector<2x128xf32> -> vector<2x128xf32>
    %305 = arith.addf %303, %304 : vector<2x128xf32>
    %306 = vector.extract_strided_slice %302 {offsets = [0, 0], sizes = [2, 32], strides = [1, 1]} : vector<2x128xf32> to vector<2x32xf32>
    %307 = arith.negf %306 : vector<2x32xf32>
    %308 = math.exp %307 : vector<2x32xf32>
    %cst_89 = arith.constant 1.000000e+00 : f32
    %309 = vector.broadcast %cst_89 : f32 to vector<2x32xf32>
    %310 = arith.addf %309, %308 : vector<2x32xf32>
    %311 = arith.divf %309, %310 : vector<2x32xf32>
    %312 = vector.extract_strided_slice %305 {offsets = [0, 0], sizes = [2, 32], strides = [1, 1]} : vector<2x128xf32> to vector<2x32xf32>
    %313 = arith.negf %312 : vector<2x32xf32>
    %314 = math.exp %313 : vector<2x32xf32>
    %cst_90 = arith.constant 1.000000e+00 : f32
    %315 = vector.broadcast %cst_90 : f32 to vector<2x32xf32>
    %316 = arith.addf %315, %314 : vector<2x32xf32>
    %317 = arith.divf %315, %316 : vector<2x32xf32>
    %318 = vector.extract_strided_slice %302 {offsets = [0, 32], sizes = [2, 32], strides = [1, 1]} : vector<2x128xf32> to vector<2x32xf32>
    %319 = arith.negf %318 : vector<2x32xf32>
    %320 = math.exp %319 : vector<2x32xf32>
    %cst_91 = arith.constant 1.000000e+00 : f32
    %321 = vector.broadcast %cst_91 : f32 to vector<2x32xf32>
    %322 = arith.addf %321, %320 : vector<2x32xf32>
    %323 = arith.divf %321, %322 : vector<2x32xf32>
    %324 = vector.extract_strided_slice %305 {offsets = [0, 32], sizes = [2, 32], strides = [1, 1]} : vector<2x128xf32> to vector<2x32xf32>
    %325 = arith.negf %324 : vector<2x32xf32>
    %326 = math.exp %325 : vector<2x32xf32>
    %cst_92 = arith.constant 1.000000e+00 : f32
    %327 = vector.broadcast %cst_92 : f32 to vector<2x32xf32>
    %328 = arith.addf %327, %326 : vector<2x32xf32>
    %329 = arith.divf %327, %328 : vector<2x32xf32>
    %330 = vector.extract_strided_slice %302 {offsets = [0, 64], sizes = [2, 32], strides = [1, 1]} : vector<2x128xf32> to vector<2x32xf32>
    %331 = math.tanh %330 : vector<2x32xf32>
    %332 = vector.extract_strided_slice %305 {offsets = [0, 64], sizes = [2, 32], strides = [1, 1]} : vector<2x128xf32> to vector<2x32xf32>
    %333 = math.tanh %332 : vector<2x32xf32>
    %334 = vector.extract_strided_slice %302 {offsets = [0, 96], sizes = [2, 32], strides = [1, 1]} : vector<2x128xf32> to vector<2x32xf32>
    %335 = arith.negf %334 : vector<2x32xf32>
    %336 = math.exp %335 : vector<2x32xf32>
    %cst_93 = arith.constant 1.000000e+00 : f32
    %337 = vector.broadcast %cst_93 : f32 to vector<2x32xf32>
    %338 = arith.addf %337, %336 : vector<2x32xf32>
    %339 = arith.divf %337, %338 : vector<2x32xf32>
    %340 = vector.extract_strided_slice %305 {offsets = [0, 96], sizes = [2, 32], strides = [1, 1]} : vector<2x128xf32> to vector<2x32xf32>
    %341 = arith.negf %340 : vector<2x32xf32>
    %342 = math.exp %341 : vector<2x32xf32>
    %cst_94 = arith.constant 1.000000e+00 : f32
    %343 = vector.broadcast %cst_94 : f32 to vector<2x32xf32>
    %344 = arith.addf %343, %342 : vector<2x32xf32>
    %345 = arith.divf %343, %344 : vector<2x32xf32>
    %346 = arith.mulf %323, %290 : vector<2x32xf32>
    %347 = arith.mulf %311, %331 : vector<2x32xf32>
    %348 = arith.addf %346, %347 : vector<2x32xf32>
    %349 = arith.mulf %329, %293 : vector<2x32xf32>
    %350 = arith.mulf %317, %333 : vector<2x32xf32>
    %351 = arith.addf %349, %350 : vector<2x32xf32>
    %352 = math.tanh %348 : vector<2x32xf32>
    %353 = arith.mulf %339, %352 : vector<2x32xf32>
    %354 = math.tanh %351 : vector<2x32xf32>
    %355 = arith.mulf %345, %354 : vector<2x32xf32>
    %c10_95 = arith.constant 10 : index
    %c0_96 = arith.constant 0 : index
    %356 = vector.load %arg15[%c10_95, %c0_96] : memref<16x64xf32, #tpu.memory_space<vmem>>, vector<2x32xf32>
    tpu.vector_store %arg15[%c10_95, %c0_96], %353 {strides = array<i32>} : memref<16x64xf32, #tpu.memory_space<vmem>>, vector<2x32xf32>,
    %c4_97 = arith.constant 4 : index
    %c32_98 = arith.constant 32 : index
    %357 = vector.load %arg15[%c4_97, %c32_98] : memref<16x64xf32, #tpu.memory_space<vmem>>, vector<2x32xf32>
    tpu.vector_store %arg15[%c4_97, %c32_98], %355 {strides = array<i32>} : memref<16x64xf32, #tpu.memory_space<vmem>>, vector<2x32xf32>,
    %c12_99 = arith.constant 12 : index
    %c0_100 = arith.constant 0 : index
    %358 = vector.load %arg16[%c12_99, %c0_100] : memref<16x256xf32, #tpu.memory_space<vmem>>, vector<2x128xf32>
    %cst_101 = arith.constant dense<0.000000e+00> : vector<2x128xf32>
    %359 = tpu.matmul %353, %8, %cst_101 {dimension_numbers = #tpu.dot_dimension_numbers<[1], [0], [0], [1], [0, 0, 1, 1], [], []>} : vector<2x32xf32>, vector<32x128xf32>, vector<2x128xf32> -> vector<2x128xf32>
    %360 = arith.addf %358, %359 : vector<2x128xf32>
    %c2_102 = arith.constant 2 : index
    %c128_103 = arith.constant 128 : index
    %361 = vector.load %arg16[%c2_102, %c128_103] : memref<16x256xf32, #tpu.memory_space<vmem>>, vector<2x128xf32>
    %cst_104 = arith.constant dense<0.000000e+00> : vector<2x128xf32>
    %362 = tpu.matmul %355, %9, %cst_104 {dimension_numbers = #tpu.dot_dimension_numbers<[1], [0], [0], [1], [0, 0, 1, 1], [], []>} : vector<2x32xf32>, vector<32x128xf32>, vector<2x128xf32> -> vector<2x128xf32>
    %363 = arith.addf %361, %362 : vector<2x128xf32>
    %364 = vector.extract_strided_slice %360 {offsets = [0, 0], sizes = [2, 32], strides = [1, 1]} : vector<2x128xf32> to vector<2x32xf32>
    %365 = arith.negf %364 : vector<2x32xf32>
    %366 = math.exp %365 : vector<2x32xf32>
    %cst_105 = arith.constant 1.000000e+00 : f32
    %367 = vector.broadcast %cst_105 : f32 to vector<2x32xf32>
    %368 = arith.addf %367, %366 : vector<2x32xf32>
    %369 = arith.divf %367, %368 : vector<2x32xf32>
    %370 = vector.extract_strided_slice %363 {offsets = [0, 0], sizes = [2, 32], strides = [1, 1]} : vector<2x128xf32> to vector<2x32xf32>
    %371 = arith.negf %370 : vector<2x32xf32>
    %372 = math.exp %371 : vector<2x32xf32>
    %cst_106 = arith.constant 1.000000e+00 : f32
    %373 = vector.broadcast %cst_106 : f32 to vector<2x32xf32>
    %374 = arith.addf %373, %372 : vector<2x32xf32>
    %375 = arith.divf %373, %374 : vector<2x32xf32>
    %376 = vector.extract_strided_slice %360 {offsets = [0, 32], sizes = [2, 32], strides = [1, 1]} : vector<2x128xf32> to vector<2x32xf32>
    %377 = arith.negf %376 : vector<2x32xf32>
    %378 = math.exp %377 : vector<2x32xf32>
    %cst_107 = arith.constant 1.000000e+00 : f32
    %379 = vector.broadcast %cst_107 : f32 to vector<2x32xf32>
    %380 = arith.addf %379, %378 : vector<2x32xf32>
    %381 = arith.divf %379, %380 : vector<2x32xf32>
    %382 = vector.extract_strided_slice %363 {offsets = [0, 32], sizes = [2, 32], strides = [1, 1]} : vector<2x128xf32> to vector<2x32xf32>
    %383 = arith.negf %382 : vector<2x32xf32>
    %384 = math.exp %383 : vector<2x32xf32>
    %cst_108 = arith.constant 1.000000e+00 : f32
    %385 = vector.broadcast %cst_108 : f32 to vector<2x32xf32>
    %386 = arith.addf %385, %384 : vector<2x32xf32>
    %387 = arith.divf %385, %386 : vector<2x32xf32>
    %388 = vector.extract_strided_slice %360 {offsets = [0, 64], sizes = [2, 32], strides = [1, 1]} : vector<2x128xf32> to vector<2x32xf32>
    %389 = math.tanh %388 : vector<2x32xf32>
    %390 = vector.extract_strided_slice %363 {offsets = [0, 64], sizes = [2, 32], strides = [1, 1]} : vector<2x128xf32> to vector<2x32xf32>
    %391 = math.tanh %390 : vector<2x32xf32>
    %392 = vector.extract_strided_slice %360 {offsets = [0, 96], sizes = [2, 32], strides = [1, 1]} : vector<2x128xf32> to vector<2x32xf32>
    %393 = arith.negf %392 : vector<2x32xf32>
    %394 = math.exp %393 : vector<2x32xf32>
    %cst_109 = arith.constant 1.000000e+00 : f32
    %395 = vector.broadcast %cst_109 : f32 to vector<2x32xf32>
    %396 = arith.addf %395, %394 : vector<2x32xf32>
    %397 = arith.divf %395, %396 : vector<2x32xf32>
    %398 = vector.extract_strided_slice %363 {offsets = [0, 96], sizes = [2, 32], strides = [1, 1]} : vector<2x128xf32> to vector<2x32xf32>
    %399 = arith.negf %398 : vector<2x32xf32>
    %400 = math.exp %399 : vector<2x32xf32>
    %cst_110 = arith.constant 1.000000e+00 : f32
    %401 = vector.broadcast %cst_110 : f32 to vector<2x32xf32>
    %402 = arith.addf %401, %400 : vector<2x32xf32>
    %403 = arith.divf %401, %402 : vector<2x32xf32>
    %404 = arith.mulf %381, %348 : vector<2x32xf32>
    %405 = arith.mulf %369, %389 : vector<2x32xf32>
    %406 = arith.addf %404, %405 : vector<2x32xf32>
    %407 = arith.mulf %387, %351 : vector<2x32xf32>
    %408 = arith.mulf %375, %391 : vector<2x32xf32>
    %409 = arith.addf %407, %408 : vector<2x32xf32>
    %410 = math.tanh %406 : vector<2x32xf32>
    %411 = arith.mulf %397, %410 : vector<2x32xf32>
    %412 = math.tanh %409 : vector<2x32xf32>
    %413 = arith.mulf %403, %412 : vector<2x32xf32>
    %c12_111 = arith.constant 12 : index
    %c0_112 = arith.constant 0 : index
    %414 = vector.load %arg15[%c12_111, %c0_112] : memref<16x64xf32, #tpu.memory_space<vmem>>, vector<2x32xf32>
    tpu.vector_store %arg15[%c12_111, %c0_112], %411 {strides = array<i32>} : memref<16x64xf32, #tpu.memory_space<vmem>>, vector<2x32xf32>,
    %c2_113 = arith.constant 2 : index
    %c32_114 = arith.constant 32 : index
    %415 = vector.load %arg15[%c2_113, %c32_114] : memref<16x64xf32, #tpu.memory_space<vmem>>, vector<2x32xf32>
    tpu.vector_store %arg15[%c2_113, %c32_114], %413 {strides = array<i32>} : memref<16x64xf32, #tpu.memory_space<vmem>>, vector<2x32xf32>,
    %c14_115 = arith.constant 14 : index
    %c0_116 = arith.constant 0 : index
    %416 = vector.load %arg16[%c14_115, %c0_116] : memref<16x256xf32, #tpu.memory_space<vmem>>, vector<2x128xf32>
    %cst_117 = arith.constant dense<0.000000e+00> : vector<2x128xf32>
    %417 = tpu.matmul %411, %8, %cst_117 {dimension_numbers = #tpu.dot_dimension_numbers<[1], [0], [0], [1], [0, 0, 1, 1], [], []>} : vector<2x32xf32>, vector<32x128xf32>, vector<2x128xf32> -> vector<2x128xf32>
    %418 = arith.addf %416, %417 : vector<2x128xf32>
    %c0_118 = arith.constant 0 : index
    %c128_119 = arith.constant 128 : index
    %419 = vector.load %arg16[%c0_118, %c128_119] : memref<16x256xf32, #tpu.memory_space<vmem>>, vector<2x128xf32>
    %cst_120 = arith.constant dense<0.000000e+00> : vector<2x128xf32>
    %420 = tpu.matmul %413, %9, %cst_120 {dimension_numbers = #tpu.dot_dimension_numbers<[1], [0], [0], [1], [0, 0, 1, 1], [], []>} : vector<2x32xf32>, vector<32x128xf32>, vector<2x128xf32> -> vector<2x128xf32>
    %421 = arith.addf %419, %420 : vector<2x128xf32>
    %422 = vector.extract_strided_slice %418 {offsets = [0, 0], sizes = [2, 32], strides = [1, 1]} : vector<2x128xf32> to vector<2x32xf32>
    %423 = arith.negf %422 : vector<2x32xf32>
    %424 = math.exp %423 : vector<2x32xf32>
    %cst_121 = arith.constant 1.000000e+00 : f32
    %425 = vector.broadcast %cst_121 : f32 to vector<2x32xf32>
    %426 = arith.addf %425, %424 : vector<2x32xf32>
    %427 = arith.divf %425, %426 : vector<2x32xf32>
    %428 = vector.extract_strided_slice %421 {offsets = [0, 0], sizes = [2, 32], strides = [1, 1]} : vector<2x128xf32> to vector<2x32xf32>
    %429 = arith.negf %428 : vector<2x32xf32>
    %430 = math.exp %429 : vector<2x32xf32>
    %cst_122 = arith.constant 1.000000e+00 : f32
    %431 = vector.broadcast %cst_122 : f32 to vector<2x32xf32>
    %432 = arith.addf %431, %430 : vector<2x32xf32>
    %433 = arith.divf %431, %432 : vector<2x32xf32>
    %434 = vector.extract_strided_slice %418 {offsets = [0, 32], sizes = [2, 32], strides = [1, 1]} : vector<2x128xf32> to vector<2x32xf32>
    %435 = arith.negf %434 : vector<2x32xf32>
    %436 = math.exp %435 : vector<2x32xf32>
    %cst_123 = arith.constant 1.000000e+00 : f32
    %437 = vector.broadcast %cst_123 : f32 to vector<2x32xf32>
    %438 = arith.addf %437, %436 : vector<2x32xf32>
    %439 = arith.divf %437, %438 : vector<2x32xf32>
    %440 = vector.extract_strided_slice %421 {offsets = [0, 32], sizes = [2, 32], strides = [1, 1]} : vector<2x128xf32> to vector<2x32xf32>
    %441 = arith.negf %440 : vector<2x32xf32>
    %442 = math.exp %441 : vector<2x32xf32>
    %cst_124 = arith.constant 1.000000e+00 : f32
    %443 = vector.broadcast %cst_124 : f32 to vector<2x32xf32>
    %444 = arith.addf %443, %442 : vector<2x32xf32>
    %445 = arith.divf %443, %444 : vector<2x32xf32>
    %446 = vector.extract_strided_slice %418 {offsets = [0, 64], sizes = [2, 32], strides = [1, 1]} : vector<2x128xf32> to vector<2x32xf32>
    %447 = math.tanh %446 : vector<2x32xf32>
    %448 = vector.extract_strided_slice %421 {offsets = [0, 64], sizes = [2, 32], strides = [1, 1]} : vector<2x128xf32> to vector<2x32xf32>
    %449 = math.tanh %448 : vector<2x32xf32>
    %450 = vector.extract_strided_slice %418 {offsets = [0, 96], sizes = [2, 32], strides = [1, 1]} : vector<2x128xf32> to vector<2x32xf32>
    %451 = arith.negf %450 : vector<2x32xf32>
    %452 = math.exp %451 : vector<2x32xf32>
    %cst_125 = arith.constant 1.000000e+00 : f32
    %453 = vector.broadcast %cst_125 : f32 to vector<2x32xf32>
    %454 = arith.addf %453, %452 : vector<2x32xf32>
    %455 = arith.divf %453, %454 : vector<2x32xf32>
    %456 = vector.extract_strided_slice %421 {offsets = [0, 96], sizes = [2, 32], strides = [1, 1]} : vector<2x128xf32> to vector<2x32xf32>
    %457 = arith.negf %456 : vector<2x32xf32>
    %458 = math.exp %457 : vector<2x32xf32>
    %cst_126 = arith.constant 1.000000e+00 : f32
    %459 = vector.broadcast %cst_126 : f32 to vector<2x32xf32>
    %460 = arith.addf %459, %458 : vector<2x32xf32>
    %461 = arith.divf %459, %460 : vector<2x32xf32>
    %462 = arith.mulf %439, %406 : vector<2x32xf32>
    %463 = arith.mulf %427, %447 : vector<2x32xf32>
    %464 = arith.addf %462, %463 : vector<2x32xf32>
    %465 = arith.mulf %445, %409 : vector<2x32xf32>
    %466 = arith.mulf %433, %449 : vector<2x32xf32>
    %467 = arith.addf %465, %466 : vector<2x32xf32>
    %468 = math.tanh %464 : vector<2x32xf32>
    %469 = arith.mulf %455, %468 : vector<2x32xf32>
    %470 = math.tanh %467 : vector<2x32xf32>
    %471 = arith.mulf %461, %470 : vector<2x32xf32>
    %c14_127 = arith.constant 14 : index
    %c0_128 = arith.constant 0 : index
    %472 = vector.load %arg15[%c14_127, %c0_128] : memref<16x64xf32, #tpu.memory_space<vmem>>, vector<2x32xf32>
    tpu.vector_store %arg15[%c14_127, %c0_128], %469 {strides = array<i32>} : memref<16x64xf32, #tpu.memory_space<vmem>>, vector<2x32xf32>,
    %c0_129 = arith.constant 0 : index
    %c32_130 = arith.constant 32 : index
    %473 = vector.load %arg15[%c0_129, %c32_130] : memref<16x64xf32, #tpu.memory_space<vmem>>, vector<2x32xf32>
    tpu.vector_store %arg15[%c0_129, %c32_130], %471 {strides = array<i32>} : memref<16x64xf32, #tpu.memory_space<vmem>>, vector<2x32xf32>,
    %c0_131 = arith.constant 0 : index
    %c0_132 = arith.constant 0 : index
    %474 = vector.load %arg15[%c0_131, %c0_132] : memref<16x64xf32, #tpu.memory_space<vmem>>, vector<16x64xf32>
    %cst_133 = arith.constant 0.000000e+00 : f32
    %475 = vector.broadcast %cst_133 : f32 to vector<16x64xf32>
    %476 = arith.cmpf oge, %474, %475 : vector<16x64xf32>
    %cst_134 = arith.constant 0.00999999977 : f32
    %477 = vector.broadcast %cst_134 : f32 to vector<16x64xf32>
    %478 = arith.mulf %477, %474 : vector<16x64xf32>
    %479 = arith.select %476, %474, %478 : vector<16x64xi1>, vector<16x64xf32>
    %c0_135 = arith.constant 0 : index
    %c0_136 = arith.constant 0 : index
    %480 = vector.load %arg6[%c0_135, %c0_136] : memref<64x96xf32, #tpu.memory_space<vmem>>, vector<64x96xf32>
    %cst_137 = arith.constant dense<0.000000e+00> : vector<16x96xf32>
    %481 = tpu.matmul %479, %480, %cst_137 {dimension_numbers = #tpu.dot_dimension_numbers<[1], [0], [0], [1], [0, 0, 1, 1], [], []>} : vector<16x64xf32>, vector<64x96xf32>, vector<16x96xf32> -> vector<16x96xf32>
    %c0_138 = arith.constant 0 : index
    %c0_139 = arith.constant 0 : index
    %482 = vector.load %arg8[%c0_138, %c0_139] : memref<1x96xf32, #tpu.memory_space<vmem>>, vector<1x96xf32>
    %483 = vector.broadcast %482 : vector<1x96xf32> to vector<16x96xf32>
    %484 = arith.addf %481, %483 : vector<16x96xf32>
    %c0_140 = arith.constant 0 : index
    %c0_141 = arith.constant 0 : index
    %485 = vector.load %arg16[%c0_140, %c0_141] : memref<16x256xf32, #tpu.memory_space<vmem>>, vector<16x96xf32>
    tpu.vector_store %arg16[%c0_140, %c0_141], %484 {strides = array<i32>} : memref<16x256xf32, #tpu.memory_space<vmem>>, vector<16x96xf32>,
    %c0_142 = arith.constant 0 : index
    %c0_143 = arith.constant 0 : index
    %486 = vector.load %arg7[%c0_142, %c0_143] : memref<32x96xf32, #tpu.memory_space<vmem>>, vector<32x96xf32>
    %c0_144 = arith.constant 0 : index
    %c0_145 = arith.constant 0 : index
    %487 = vector.load %arg9[%c0_144, %c0_145] : memref<1x32xf32, #tpu.memory_space<vmem>>, vector<1x32xf32>
    %488 = vector.shape_cast %487 : vector<1x32xf32> to vector<1x32xf32>
    %489 = vector.broadcast %488 : vector<1x32xf32> to vector<2x32xf32>
    %cst_146 = arith.constant dense<0.000000e+00> : vector<2x96xf32>
    %490 = tpu.matmul %0, %486, %cst_146 {dimension_numbers = #tpu.dot_dimension_numbers<[1], [0], [0], [1], [0, 0, 1, 1], [], []>} : vector<2x32xf32>, vector<32x96xf32>, vector<2x96xf32> -> vector<2x96xf32>
    %c0_147 = arith.constant 0 : index
    %c0_148 = arith.constant 0 : index
    %491 = vector.load %arg16[%c0_147, %c0_148] : memref<16x256xf32, #tpu.memory_space<vmem>>, vector<2x96xf32>
    %492 = vector.extract_strided_slice %491 {offsets = [0, 0], sizes = [2, 32], strides = [1, 1]} : vector<2x96xf32> to vector<2x32xf32>
    %493 = vector.extract_strided_slice %490 {offsets = [0, 0], sizes = [2, 32], strides = [1, 1]} : vector<2x96xf32> to vector<2x32xf32>
    %494 = arith.addf %492, %493 : vector<2x32xf32>
    %495 = arith.negf %494 : vector<2x32xf32>
    %496 = math.exp %495 : vector<2x32xf32>
    %cst_149 = arith.constant 1.000000e+00 : f32
    %497 = vector.broadcast %cst_149 : f32 to vector<2x32xf32>
    %498 = arith.addf %497, %496 : vector<2x32xf32>
    %499 = arith.divf %497, %498 : vector<2x32xf32>
    %500 = vector.extract_strided_slice %491 {offsets = [0, 32], sizes = [2, 32], strides = [1, 1]} : vector<2x96xf32> to vector<2x32xf32>
    %501 = vector.extract_strided_slice %490 {offsets = [0, 32], sizes = [2, 32], strides = [1, 1]} : vector<2x96xf32> to vector<2x32xf32>
    %502 = arith.addf %500, %501 : vector<2x32xf32>
    %503 = arith.negf %502 : vector<2x32xf32>
    %504 = math.exp %503 : vector<2x32xf32>
    %cst_150 = arith.constant 1.000000e+00 : f32
    %505 = vector.broadcast %cst_150 : f32 to vector<2x32xf32>
    %506 = arith.addf %505, %504 : vector<2x32xf32>
    %507 = arith.divf %505, %506 : vector<2x32xf32>
    %508 = vector.extract_strided_slice %491 {offsets = [0, 64], sizes = [2, 32], strides = [1, 1]} : vector<2x96xf32> to vector<2x32xf32>
    %509 = vector.extract_strided_slice %490 {offsets = [0, 64], sizes = [2, 32], strides = [1, 1]} : vector<2x96xf32> to vector<2x32xf32>
    %510 = arith.addf %509, %489 : vector<2x32xf32>
    %511 = arith.mulf %499, %510 : vector<2x32xf32>
    %512 = arith.addf %508, %511 : vector<2x32xf32>
    %513 = math.tanh %512 : vector<2x32xf32>
    %cst_151 = arith.constant 1.000000e+00 : f32
    %514 = vector.broadcast %cst_151 : f32 to vector<2x32xf32>
    %515 = arith.subf %514, %507 : vector<2x32xf32>
    %516 = arith.mulf %515, %513 : vector<2x32xf32>
    %517 = arith.mulf %507, %0 : vector<2x32xf32>
    %518 = arith.addf %516, %517 : vector<2x32xf32>
    %cst_152 = arith.constant dense<0.000000e+00> : vector<2x96xf32>
    %519 = tpu.matmul %518, %486, %cst_152 {dimension_numbers = #tpu.dot_dimension_numbers<[1], [0], [0], [1], [0, 0, 1, 1], [], []>} : vector<2x32xf32>, vector<32x96xf32>, vector<2x96xf32> -> vector<2x96xf32>
    %c2_153 = arith.constant 2 : index
    %c0_154 = arith.constant 0 : index
    %520 = vector.load %arg16[%c2_153, %c0_154] : memref<16x256xf32, #tpu.memory_space<vmem>>, vector<2x96xf32>
    %521 = vector.extract_strided_slice %520 {offsets = [0, 0], sizes = [2, 32], strides = [1, 1]} : vector<2x96xf32> to vector<2x32xf32>
    %522 = vector.extract_strided_slice %519 {offsets = [0, 0], sizes = [2, 32], strides = [1, 1]} : vector<2x96xf32> to vector<2x32xf32>
    %523 = arith.addf %521, %522 : vector<2x32xf32>
    %524 = arith.negf %523 : vector<2x32xf32>
    %525 = math.exp %524 : vector<2x32xf32>
    %cst_155 = arith.constant 1.000000e+00 : f32
    %526 = vector.broadcast %cst_155 : f32 to vector<2x32xf32>
    %527 = arith.addf %526, %525 : vector<2x32xf32>
    %528 = arith.divf %526, %527 : vector<2x32xf32>
    %529 = vector.extract_strided_slice %520 {offsets = [0, 32], sizes = [2, 32], strides = [1, 1]} : vector<2x96xf32> to vector<2x32xf32>
    %530 = vector.extract_strided_slice %519 {offsets = [0, 32], sizes = [2, 32], strides = [1, 1]} : vector<2x96xf32> to vector<2x32xf32>
    %531 = arith.addf %529, %530 : vector<2x32xf32>
    %532 = arith.negf %531 : vector<2x32xf32>
    %533 = math.exp %532 : vector<2x32xf32>
    %cst_156 = arith.constant 1.000000e+00 : f32
    %534 = vector.broadcast %cst_156 : f32 to vector<2x32xf32>
    %535 = arith.addf %534, %533 : vector<2x32xf32>
    %536 = arith.divf %534, %535 : vector<2x32xf32>
    %537 = vector.extract_strided_slice %520 {offsets = [0, 64], sizes = [2, 32], strides = [1, 1]} : vector<2x96xf32> to vector<2x32xf32>
    %538 = vector.extract_strided_slice %519 {offsets = [0, 64], sizes = [2, 32], strides = [1, 1]} : vector<2x96xf32> to vector<2x32xf32>
    %539 = arith.addf %538, %489 : vector<2x32xf32>
    %540 = arith.mulf %528, %539 : vector<2x32xf32>
    %541 = arith.addf %537, %540 : vector<2x32xf32>
    %542 = math.tanh %541 : vector<2x32xf32>
    %cst_157 = arith.constant 1.000000e+00 : f32
    %543 = vector.broadcast %cst_157 : f32 to vector<2x32xf32>
    %544 = arith.subf %543, %536 : vector<2x32xf32>
    %545 = arith.mulf %544, %542 : vector<2x32xf32>
    %546 = arith.mulf %536, %518 : vector<2x32xf32>
    %547 = arith.addf %545, %546 : vector<2x32xf32>
    %cst_158 = arith.constant dense<0.000000e+00> : vector<2x96xf32>
    %548 = tpu.matmul %547, %486, %cst_158 {dimension_numbers = #tpu.dot_dimension_numbers<[1], [0], [0], [1], [0, 0, 1, 1], [], []>} : vector<2x32xf32>, vector<32x96xf32>, vector<2x96xf32> -> vector<2x96xf32>
    %c4_159 = arith.constant 4 : index
    %c0_160 = arith.constant 0 : index
    %549 = vector.load %arg16[%c4_159, %c0_160] : memref<16x256xf32, #tpu.memory_space<vmem>>, vector<2x96xf32>
    %550 = vector.extract_strided_slice %549 {offsets = [0, 0], sizes = [2, 32], strides = [1, 1]} : vector<2x96xf32> to vector<2x32xf32>
    %551 = vector.extract_strided_slice %548 {offsets = [0, 0], sizes = [2, 32], strides = [1, 1]} : vector<2x96xf32> to vector<2x32xf32>
    %552 = arith.addf %550, %551 : vector<2x32xf32>
    %553 = arith.negf %552 : vector<2x32xf32>
    %554 = math.exp %553 : vector<2x32xf32>
    %cst_161 = arith.constant 1.000000e+00 : f32
    %555 = vector.broadcast %cst_161 : f32 to vector<2x32xf32>
    %556 = arith.addf %555, %554 : vector<2x32xf32>
    %557 = arith.divf %555, %556 : vector<2x32xf32>
    %558 = vector.extract_strided_slice %549 {offsets = [0, 32], sizes = [2, 32], strides = [1, 1]} : vector<2x96xf32> to vector<2x32xf32>
    %559 = vector.extract_strided_slice %548 {offsets = [0, 32], sizes = [2, 32], strides = [1, 1]} : vector<2x96xf32> to vector<2x32xf32>
    %560 = arith.addf %558, %559 : vector<2x32xf32>
    %561 = arith.negf %560 : vector<2x32xf32>
    %562 = math.exp %561 : vector<2x32xf32>
    %cst_162 = arith.constant 1.000000e+00 : f32
    %563 = vector.broadcast %cst_162 : f32 to vector<2x32xf32>
    %564 = arith.addf %563, %562 : vector<2x32xf32>
    %565 = arith.divf %563, %564 : vector<2x32xf32>
    %566 = vector.extract_strided_slice %549 {offsets = [0, 64], sizes = [2, 32], strides = [1, 1]} : vector<2x96xf32> to vector<2x32xf32>
    %567 = vector.extract_strided_slice %548 {offsets = [0, 64], sizes = [2, 32], strides = [1, 1]} : vector<2x96xf32> to vector<2x32xf32>
    %568 = arith.addf %567, %489 : vector<2x32xf32>
    %569 = arith.mulf %557, %568 : vector<2x32xf32>
    %570 = arith.addf %566, %569 : vector<2x32xf32>
    %571 = math.tanh %570 : vector<2x32xf32>
    %cst_163 = arith.constant 1.000000e+00 : f32
    %572 = vector.broadcast %cst_163 : f32 to vector<2x32xf32>
    %573 = arith.subf %572, %565 : vector<2x32xf32>
    %574 = arith.mulf %573, %571 : vector<2x32xf32>
    %575 = arith.mulf %565, %547 : vector<2x32xf32>
    %576 = arith.addf %574, %575 : vector<2x32xf32>
    %cst_164 = arith.constant dense<0.000000e+00> : vector<2x96xf32>
    %577 = tpu.matmul %576, %486, %cst_164 {dimension_numbers = #tpu.dot_dimension_numbers<[1], [0], [0], [1], [0, 0, 1, 1], [], []>} : vector<2x32xf32>, vector<32x96xf32>, vector<2x96xf32> -> vector<2x96xf32>
    %c6_165 = arith.constant 6 : index
    %c0_166 = arith.constant 0 : index
    %578 = vector.load %arg16[%c6_165, %c0_166] : memref<16x256xf32, #tpu.memory_space<vmem>>, vector<2x96xf32>
    %579 = vector.extract_strided_slice %578 {offsets = [0, 0], sizes = [2, 32], strides = [1, 1]} : vector<2x96xf32> to vector<2x32xf32>
    %580 = vector.extract_strided_slice %577 {offsets = [0, 0], sizes = [2, 32], strides = [1, 1]} : vector<2x96xf32> to vector<2x32xf32>
    %581 = arith.addf %579, %580 : vector<2x32xf32>
    %582 = arith.negf %581 : vector<2x32xf32>
    %583 = math.exp %582 : vector<2x32xf32>
    %cst_167 = arith.constant 1.000000e+00 : f32
    %584 = vector.broadcast %cst_167 : f32 to vector<2x32xf32>
    %585 = arith.addf %584, %583 : vector<2x32xf32>
    %586 = arith.divf %584, %585 : vector<2x32xf32>
    %587 = vector.extract_strided_slice %578 {offsets = [0, 32], sizes = [2, 32], strides = [1, 1]} : vector<2x96xf32> to vector<2x32xf32>
    %588 = vector.extract_strided_slice %577 {offsets = [0, 32], sizes = [2, 32], strides = [1, 1]} : vector<2x96xf32> to vector<2x32xf32>
    %589 = arith.addf %587, %588 : vector<2x32xf32>
    %590 = arith.negf %589 : vector<2x32xf32>
    %591 = math.exp %590 : vector<2x32xf32>
    %cst_168 = arith.constant 1.000000e+00 : f32
    %592 = vector.broadcast %cst_168 : f32 to vector<2x32xf32>
    %593 = arith.addf %592, %591 : vector<2x32xf32>
    %594 = arith.divf %592, %593 : vector<2x32xf32>
    %595 = vector.extract_strided_slice %578 {offsets = [0, 64], sizes = [2, 32], strides = [1, 1]} : vector<2x96xf32> to vector<2x32xf32>
    %596 = vector.extract_strided_slice %577 {offsets = [0, 64], sizes = [2, 32], strides = [1, 1]} : vector<2x96xf32> to vector<2x32xf32>
    %597 = arith.addf %596, %489 : vector<2x32xf32>
    %598 = arith.mulf %586, %597 : vector<2x32xf32>
    %599 = arith.addf %595, %598 : vector<2x32xf32>
    %600 = math.tanh %599 : vector<2x32xf32>
    %cst_169 = arith.constant 1.000000e+00 : f32
    %601 = vector.broadcast %cst_169 : f32 to vector<2x32xf32>
    %602 = arith.subf %601, %594 : vector<2x32xf32>
    %603 = arith.mulf %602, %600 : vector<2x32xf32>
    %604 = arith.mulf %594, %576 : vector<2x32xf32>
    %605 = arith.addf %603, %604 : vector<2x32xf32>
    %cst_170 = arith.constant dense<0.000000e+00> : vector<2x96xf32>
    %606 = tpu.matmul %605, %486, %cst_170 {dimension_numbers = #tpu.dot_dimension_numbers<[1], [0], [0], [1], [0, 0, 1, 1], [], []>} : vector<2x32xf32>, vector<32x96xf32>, vector<2x96xf32> -> vector<2x96xf32>
    %c8_171 = arith.constant 8 : index
    %c0_172 = arith.constant 0 : index
    %607 = vector.load %arg16[%c8_171, %c0_172] : memref<16x256xf32, #tpu.memory_space<vmem>>, vector<2x96xf32>
    %608 = vector.extract_strided_slice %607 {offsets = [0, 0], sizes = [2, 32], strides = [1, 1]} : vector<2x96xf32> to vector<2x32xf32>
    %609 = vector.extract_strided_slice %606 {offsets = [0, 0], sizes = [2, 32], strides = [1, 1]} : vector<2x96xf32> to vector<2x32xf32>
    %610 = arith.addf %608, %609 : vector<2x32xf32>
    %611 = arith.negf %610 : vector<2x32xf32>
    %612 = math.exp %611 : vector<2x32xf32>
    %cst_173 = arith.constant 1.000000e+00 : f32
    %613 = vector.broadcast %cst_173 : f32 to vector<2x32xf32>
    %614 = arith.addf %613, %612 : vector<2x32xf32>
    %615 = arith.divf %613, %614 : vector<2x32xf32>
    %616 = vector.extract_strided_slice %607 {offsets = [0, 32], sizes = [2, 32], strides = [1, 1]} : vector<2x96xf32> to vector<2x32xf32>
    %617 = vector.extract_strided_slice %606 {offsets = [0, 32], sizes = [2, 32], strides = [1, 1]} : vector<2x96xf32> to vector<2x32xf32>
    %618 = arith.addf %616, %617 : vector<2x32xf32>
    %619 = arith.negf %618 : vector<2x32xf32>
    %620 = math.exp %619 : vector<2x32xf32>
    %cst_174 = arith.constant 1.000000e+00 : f32
    %621 = vector.broadcast %cst_174 : f32 to vector<2x32xf32>
    %622 = arith.addf %621, %620 : vector<2x32xf32>
    %623 = arith.divf %621, %622 : vector<2x32xf32>
    %624 = vector.extract_strided_slice %607 {offsets = [0, 64], sizes = [2, 32], strides = [1, 1]} : vector<2x96xf32> to vector<2x32xf32>
    %625 = vector.extract_strided_slice %606 {offsets = [0, 64], sizes = [2, 32], strides = [1, 1]} : vector<2x96xf32> to vector<2x32xf32>
    %626 = arith.addf %625, %489 : vector<2x32xf32>
    %627 = arith.mulf %615, %626 : vector<2x32xf32>
    %628 = arith.addf %624, %627 : vector<2x32xf32>
    %629 = math.tanh %628 : vector<2x32xf32>
    %cst_175 = arith.constant 1.000000e+00 : f32
    %630 = vector.broadcast %cst_175 : f32 to vector<2x32xf32>
    %631 = arith.subf %630, %623 : vector<2x32xf32>
    %632 = arith.mulf %631, %629 : vector<2x32xf32>
    %633 = arith.mulf %623, %605 : vector<2x32xf32>
    %634 = arith.addf %632, %633 : vector<2x32xf32>
    %cst_176 = arith.constant dense<0.000000e+00> : vector<2x96xf32>
    %635 = tpu.matmul %634, %486, %cst_176 {dimension_numbers = #tpu.dot_dimension_numbers<[1], [0], [0], [1], [0, 0, 1, 1], [], []>} : vector<2x32xf32>, vector<32x96xf32>, vector<2x96xf32> -> vector<2x96xf32>
    %c10_177 = arith.constant 10 : index
    %c0_178 = arith.constant 0 : index
    %636 = vector.load %arg16[%c10_177, %c0_178] : memref<16x256xf32, #tpu.memory_space<vmem>>, vector<2x96xf32>
    %637 = vector.extract_strided_slice %636 {offsets = [0, 0], sizes = [2, 32], strides = [1, 1]} : vector<2x96xf32> to vector<2x32xf32>
    %638 = vector.extract_strided_slice %635 {offsets = [0, 0], sizes = [2, 32], strides = [1, 1]} : vector<2x96xf32> to vector<2x32xf32>
    %639 = arith.addf %637, %638 : vector<2x32xf32>
    %640 = arith.negf %639 : vector<2x32xf32>
    %641 = math.exp %640 : vector<2x32xf32>
    %cst_179 = arith.constant 1.000000e+00 : f32
    %642 = vector.broadcast %cst_179 : f32 to vector<2x32xf32>
    %643 = arith.addf %642, %641 : vector<2x32xf32>
    %644 = arith.divf %642, %643 : vector<2x32xf32>
    %645 = vector.extract_strided_slice %636 {offsets = [0, 32], sizes = [2, 32], strides = [1, 1]} : vector<2x96xf32> to vector<2x32xf32>
    %646 = vector.extract_strided_slice %635 {offsets = [0, 32], sizes = [2, 32], strides = [1, 1]} : vector<2x96xf32> to vector<2x32xf32>
    %647 = arith.addf %645, %646 : vector<2x32xf32>
    %648 = arith.negf %647 : vector<2x32xf32>
    %649 = math.exp %648 : vector<2x32xf32>
    %cst_180 = arith.constant 1.000000e+00 : f32
    %650 = vector.broadcast %cst_180 : f32 to vector<2x32xf32>
    %651 = arith.addf %650, %649 : vector<2x32xf32>
    %652 = arith.divf %650, %651 : vector<2x32xf32>
    %653 = vector.extract_strided_slice %636 {offsets = [0, 64], sizes = [2, 32], strides = [1, 1]} : vector<2x96xf32> to vector<2x32xf32>
    %654 = vector.extract_strided_slice %635 {offsets = [0, 64], sizes = [2, 32], strides = [1, 1]} : vector<2x96xf32> to vector<2x32xf32>
    %655 = arith.addf %654, %489 : vector<2x32xf32>
    %656 = arith.mulf %644, %655 : vector<2x32xf32>
    %657 = arith.addf %653, %656 : vector<2x32xf32>
    %658 = math.tanh %657 : vector<2x32xf32>
    %cst_181 = arith.constant 1.000000e+00 : f32
    %659 = vector.broadcast %cst_181 : f32 to vector<2x32xf32>
    %660 = arith.subf %659, %652 : vector<2x32xf32>
    %661 = arith.mulf %660, %658 : vector<2x32xf32>
    %662 = arith.mulf %652, %634 : vector<2x32xf32>
    %663 = arith.addf %661, %662 : vector<2x32xf32>
    %cst_182 = arith.constant dense<0.000000e+00> : vector<2x96xf32>
    %664 = tpu.matmul %663, %486, %cst_182 {dimension_numbers = #tpu.dot_dimension_numbers<[1], [0], [0], [1], [0, 0, 1, 1], [], []>} : vector<2x32xf32>, vector<32x96xf32>, vector<2x96xf32> -> vector<2x96xf32>
    %c12_183 = arith.constant 12 : index
    %c0_184 = arith.constant 0 : index
    %665 = vector.load %arg16[%c12_183, %c0_184] : memref<16x256xf32, #tpu.memory_space<vmem>>, vector<2x96xf32>
    %666 = vector.extract_strided_slice %665 {offsets = [0, 0], sizes = [2, 32], strides = [1, 1]} : vector<2x96xf32> to vector<2x32xf32>
    %667 = vector.extract_strided_slice %664 {offsets = [0, 0], sizes = [2, 32], strides = [1, 1]} : vector<2x96xf32> to vector<2x32xf32>
    %668 = arith.addf %666, %667 : vector<2x32xf32>
    %669 = arith.negf %668 : vector<2x32xf32>
    %670 = math.exp %669 : vector<2x32xf32>
    %cst_185 = arith.constant 1.000000e+00 : f32
    %671 = vector.broadcast %cst_185 : f32 to vector<2x32xf32>
    %672 = arith.addf %671, %670 : vector<2x32xf32>
    %673 = arith.divf %671, %672 : vector<2x32xf32>
    %674 = vector.extract_strided_slice %665 {offsets = [0, 32], sizes = [2, 32], strides = [1, 1]} : vector<2x96xf32> to vector<2x32xf32>
    %675 = vector.extract_strided_slice %664 {offsets = [0, 32], sizes = [2, 32], strides = [1, 1]} : vector<2x96xf32> to vector<2x32xf32>
    %676 = arith.addf %674, %675 : vector<2x32xf32>
    %677 = arith.negf %676 : vector<2x32xf32>
    %678 = math.exp %677 : vector<2x32xf32>
    %cst_186 = arith.constant 1.000000e+00 : f32
    %679 = vector.broadcast %cst_186 : f32 to vector<2x32xf32>
    %680 = arith.addf %679, %678 : vector<2x32xf32>
    %681 = arith.divf %679, %680 : vector<2x32xf32>
    %682 = vector.extract_strided_slice %665 {offsets = [0, 64], sizes = [2, 32], strides = [1, 1]} : vector<2x96xf32> to vector<2x32xf32>
    %683 = vector.extract_strided_slice %664 {offsets = [0, 64], sizes = [2, 32], strides = [1, 1]} : vector<2x96xf32> to vector<2x32xf32>
    %684 = arith.addf %683, %489 : vector<2x32xf32>
    %685 = arith.mulf %673, %684 : vector<2x32xf32>
    %686 = arith.addf %682, %685 : vector<2x32xf32>
    %687 = math.tanh %686 : vector<2x32xf32>
    %cst_187 = arith.constant 1.000000e+00 : f32
    %688 = vector.broadcast %cst_187 : f32 to vector<2x32xf32>
    %689 = arith.subf %688, %681 : vector<2x32xf32>
    %690 = arith.mulf %689, %687 : vector<2x32xf32>
    %691 = arith.mulf %681, %663 : vector<2x32xf32>
    %692 = arith.addf %690, %691 : vector<2x32xf32>
    %cst_188 = arith.constant dense<0.000000e+00> : vector<2x96xf32>
    %693 = tpu.matmul %692, %486, %cst_188 {dimension_numbers = #tpu.dot_dimension_numbers<[1], [0], [0], [1], [0, 0, 1, 1], [], []>} : vector<2x32xf32>, vector<32x96xf32>, vector<2x96xf32> -> vector<2x96xf32>
    %c14_189 = arith.constant 14 : index
    %c0_190 = arith.constant 0 : index
    %694 = vector.load %arg16[%c14_189, %c0_190] : memref<16x256xf32, #tpu.memory_space<vmem>>, vector<2x96xf32>
    %695 = vector.extract_strided_slice %694 {offsets = [0, 0], sizes = [2, 32], strides = [1, 1]} : vector<2x96xf32> to vector<2x32xf32>
    %696 = vector.extract_strided_slice %693 {offsets = [0, 0], sizes = [2, 32], strides = [1, 1]} : vector<2x96xf32> to vector<2x32xf32>
    %697 = arith.addf %695, %696 : vector<2x32xf32>
    %698 = arith.negf %697 : vector<2x32xf32>
    %699 = math.exp %698 : vector<2x32xf32>
    %cst_191 = arith.constant 1.000000e+00 : f32
    %700 = vector.broadcast %cst_191 : f32 to vector<2x32xf32>
    %701 = arith.addf %700, %699 : vector<2x32xf32>
    %702 = arith.divf %700, %701 : vector<2x32xf32>
    %703 = vector.extract_strided_slice %694 {offsets = [0, 32], sizes = [2, 32], strides = [1, 1]} : vector<2x96xf32> to vector<2x32xf32>
    %704 = vector.extract_strided_slice %693 {offsets = [0, 32], sizes = [2, 32], strides = [1, 1]} : vector<2x96xf32> to vector<2x32xf32>
    %705 = arith.addf %703, %704 : vector<2x32xf32>
    %706 = arith.negf %705 : vector<2x32xf32>
    %707 = math.exp %706 : vector<2x32xf32>
    %cst_192 = arith.constant 1.000000e+00 : f32
    %708 = vector.broadcast %cst_192 : f32 to vector<2x32xf32>
    %709 = arith.addf %708, %707 : vector<2x32xf32>
    %710 = arith.divf %708, %709 : vector<2x32xf32>
    %711 = vector.extract_strided_slice %694 {offsets = [0, 64], sizes = [2, 32], strides = [1, 1]} : vector<2x96xf32> to vector<2x32xf32>
    %712 = vector.extract_strided_slice %693 {offsets = [0, 64], sizes = [2, 32], strides = [1, 1]} : vector<2x96xf32> to vector<2x32xf32>
    %713 = arith.addf %712, %489 : vector<2x32xf32>
    %714 = arith.mulf %702, %713 : vector<2x32xf32>
    %715 = arith.addf %711, %714 : vector<2x32xf32>
    %716 = math.tanh %715 : vector<2x32xf32>
    %cst_193 = arith.constant 1.000000e+00 : f32
    %717 = vector.broadcast %cst_193 : f32 to vector<2x32xf32>
    %718 = arith.subf %717, %710 : vector<2x32xf32>
    %719 = arith.mulf %718, %716 : vector<2x32xf32>
    %720 = arith.mulf %710, %692 : vector<2x32xf32>
    %721 = arith.addf %719, %720 : vector<2x32xf32>
    %cst_194 = arith.constant 0.000000e+00 : f32
    %722 = vector.broadcast %cst_194 : f32 to vector<2x32xf32>
    %723 = arith.cmpf oge, %721, %722 : vector<2x32xf32>
    %cst_195 = arith.constant 0.00999999977 : f32
    %724 = vector.broadcast %cst_195 : f32 to vector<2x32xf32>
    %725 = arith.mulf %724, %721 : vector<2x32xf32>
    %726 = arith.select %723, %721, %725 : vector<2x32xi1>, vector<2x32xf32>
    %c0_196 = arith.constant 0 : index
    %c0_197 = arith.constant 0 : index
    %727 = vector.load %arg10[%c0_196, %c0_197] : memref<32x24xf32, #tpu.memory_space<vmem>>, vector<32x24xf32>
    %cst_198 = arith.constant dense<0.000000e+00> : vector<2x24xf32>
    %728 = tpu.matmul %726, %727, %cst_198 {dimension_numbers = #tpu.dot_dimension_numbers<[1], [0], [0], [1], [0, 0, 1, 1], [], []>} : vector<2x32xf32>, vector<32x24xf32>, vector<2x24xf32> -> vector<2x24xf32>
    %c0_199 = arith.constant 0 : index
    %c0_200 = arith.constant 0 : index
    %729 = vector.load %arg11[%c0_199, %c0_200] : memref<1x24xf32, #tpu.memory_space<vmem>>, vector<1x24xf32>
    %730 = vector.broadcast %729 : vector<1x24xf32> to vector<2x24xf32>
    %731 = arith.addf %728, %730 : vector<2x24xf32>
    %cst_201 = arith.constant 0.000000e+00 : f32
    %732 = vector.broadcast %cst_201 : f32 to vector<2x24xf32>
    %733 = arith.cmpf oge, %731, %732 : vector<2x24xf32>
    %cst_202 = arith.constant 0.00999999977 : f32
    %734 = vector.broadcast %cst_202 : f32 to vector<2x24xf32>
    %735 = arith.mulf %734, %731 : vector<2x24xf32>
    %736 = arith.select %733, %731, %735 : vector<2x24xi1>, vector<2x24xf32>
    %c0_203 = arith.constant 0 : index
    %c0_204 = arith.constant 0 : index
    %737 = vector.load %arg12[%c0_203, %c0_204] : memref<24x128xf32, #tpu.memory_space<vmem>>, vector<24x128xf32>
    %cst_205 = arith.constant dense<0.000000e+00> : vector<2x128xf32>
    %738 = tpu.matmul %736, %737, %cst_205 {dimension_numbers = #tpu.dot_dimension_numbers<[1], [0], [0], [1], [0, 0, 1, 1], [], []>} : vector<2x24xf32>, vector<24x128xf32>, vector<2x128xf32> -> vector<2x128xf32>
    %c0_206 = arith.constant 0 : index
    %c0_207 = arith.constant 0 : index
    %739 = vector.load %arg13[%c0_206, %c0_207] : memref<1x128xf32, #tpu.memory_space<vmem>>, vector<1x128xf32>
    %740 = vector.broadcast %739 : vector<1x128xf32> to vector<2x128xf32>
    %741 = arith.addf %738, %740 : vector<2x128xf32>
    %c0_208 = arith.constant 0 : index
    %c0_209 = arith.constant 0 : index
    %742 = vector.load %arg14[%c0_208, %c0_209] : memref<2x128xf32, #tpu.memory_space<vmem>>, vector<2x128xf32>
    tpu.vector_store %arg14[%c0_208, %c0_209], %741 {strides = array<i32>} : memref<2x128xf32, #tpu.memory_space<vmem>>, vector<2x128xf32>,
    return
  }
  func.func @transform_0(%arg0: i32) -> (i32, i32) {
    %c0_i32 = arith.constant 0 : i32
    %c0_i32_0 = arith.constant 0 : i32
    %c0_i32_1 = arith.constant 0 : i32
    return %c0_i32, %c0_i32_0 : i32, i32
  }
  func.func @transform_1(%arg0: i32) -> (i32, i32) {
    %c0_i32 = arith.constant 0 : i32
    %c0_i32_0 = arith.constant 0 : i32
    %c0_i32_1 = arith.constant 0 : i32
    return %c0_i32, %c0_i32_0 : i32, i32
  }
  func.func @transform_2(%arg0: i32) -> (i32, i32) {
    %c0_i32 = arith.constant 0 : i32
    %c0_i32_0 = arith.constant 0 : i32
    %c0_i32_1 = arith.constant 0 : i32
    return %c0_i32, %c0_i32_0 : i32, i32
  }
  func.func @transform_3(%arg0: i32) -> (i32, i32) {
    %c0_i32 = arith.constant 0 : i32
    %c0_i32_0 = arith.constant 0 : i32
    %c0_i32_1 = arith.constant 0 : i32
    return %c0_i32, %c0_i32_0 : i32, i32
  }
  func.func @transform_4(%arg0: i32) -> (i32, i32) {
    %c0_i32 = arith.constant 0 : i32
    %c0_i32_0 = arith.constant 0 : i32
    %c0_i32_1 = arith.constant 0 : i32
    return %c0_i32, %c0_i32_0 : i32, i32
  }
  func.func @transform_5(%arg0: i32) -> (i32, i32) {
    %c0_i32 = arith.constant 0 : i32
    %c0_i32_0 = arith.constant 0 : i32
    %c0_i32_1 = arith.constant 0 : i32
    return %c0_i32, %c0_i32_0 : i32, i32
  }
  func.func @transform_6(%arg0: i32) -> (i32, i32) {
    %c0_i32 = arith.constant 0 : i32
    %c0_i32_0 = arith.constant 0 : i32
    %c0_i32_1 = arith.constant 0 : i32
    return %c0_i32, %c0_i32_0 : i32, i32
  }
  func.func @transform_7(%arg0: i32) -> (i32, i32) {
    %c0_i32 = arith.constant 0 : i32
    %c0_i32_0 = arith.constant 0 : i32
    %c0_i32_1 = arith.constant 0 : i32
    return %c0_i32, %c0_i32_0 : i32, i32
  }
  func.func @transform_8(%arg0: i32) -> (i32, i32) {
    %c0_i32 = arith.constant 0 : i32
    %c0_i32_0 = arith.constant 0 : i32
    %c0_i32_1 = arith.constant 0 : i32
    return %c0_i32, %c0_i32_0 : i32, i32
  }
  func.func @transform_9(%arg0: i32) -> (i32, i32) {
    %c0_i32 = arith.constant 0 : i32
    %c0_i32_0 = arith.constant 0 : i32
    %c0_i32_1 = arith.constant 0 : i32
    return %c0_i32, %c0_i32_0 : i32, i32
  }
  func.func @transform_10(%arg0: i32) -> (i32, i32) {
    %c0_i32 = arith.constant 0 : i32
    %c0_i32_0 = arith.constant 0 : i32
    %c0_i32_1 = arith.constant 0 : i32
    return %c0_i32, %c0_i32_0 : i32, i32
  }
  func.func @transform_11(%arg0: i32) -> (i32, i32) {
    %c0_i32 = arith.constant 0 : i32
    %c0_i32_0 = arith.constant 0 : i32
    %c0_i32_1 = arith.constant 0 : i32
    return %c0_i32, %c0_i32_0 : i32, i32
  }
  func.func @transform_12(%arg0: i32) -> (i32, i32) {
    %c0_i32 = arith.constant 0 : i32
    %c0_i32_0 = arith.constant 0 : i32
    %c0_i32_1 = arith.constant 0 : i32
    return %c0_i32, %c0_i32_0 : i32, i32
  }
  func.func @transform_13(%arg0: i32) -> (i32, i32) {
    %c0_i32 = arith.constant 0 : i32
    %c0_i32_0 = arith.constant 0 : i32
    %c0_i32_1 = arith.constant 0 : i32
    return %c0_i32, %c0_i32_0 : i32, i32
  }
}

</mosaic_0001>

<llo_original>
// kernel: generator_forward.1
$region0: #{generator_forward.1}
  #allocation0 [shape = 'u32[]', space=smem, size = 0x4, offset = 0x4, fixed_abs, tag = 'smem constant byte address 0x4 - core index']
  #allocation1 [shape = 'u32[144,128]{1,0:T(1,128)}', space=vmem, size = 0x12000, scoped, tag = 'internal scratch']
  #allocation2 [shape = 'f32[16,64]{1,0:T(8,128)}', space=vmem, size = 0x2000, scoped, tag = 'scratch operand']
  #allocation3 [shape = 'f32[16,256]{1,0:T(8,128)}', space=vmem, size = 0x4000, scoped, tag = 'scratch operand']
  %s0 = inlined_call_operand.vmem [shape: f32[16,16], index: 0, kind: input, shape index: {}]
  %s1 = inlined_call_operand.vmem [shape: f32[16,256], index: 1, kind: input, shape index: {}]
  %s2 = inlined_call_operand.vmem [shape: f32[32,128], index: 2, kind: input, shape index: {}]
  %s3 = inlined_call_operand.vmem [shape: f32[32,128], index: 3, kind: input, shape index: {}]
  %s4 = inlined_call_operand.vmem [shape: f32[1,256], index: 4, kind: input, shape index: {}]
  %s5 = inlined_call_operand.vmem [shape: f32[64,96], index: 5, kind: input, shape index: {}]
  %s6 = inlined_call_operand.vmem [shape: f32[32,96], index: 6, kind: input, shape index: {}]
  %s7 = inlined_call_operand.vmem [shape: f32[1,96], index: 7, kind: input, shape index: {}]
  %s8 = inlined_call_operand.vmem [shape: f32[1,32], index: 8, kind: input, shape index: {}]
  %s9 = inlined_call_operand.vmem [shape: f32[32,24], index: 9, kind: input, shape index: {}]
  %s10 = inlined_call_operand.vmem [shape: f32[1,24], index: 10, kind: input, shape index: {}]
  %s11 = inlined_call_operand.vmem [shape: f32[24,128], index: 11, kind: input, shape index: {}]
  %s12 = inlined_call_operand.vmem [shape: f32[1,128], index: 12, kind: input, shape index: {}]
  %s13 = inlined_call_operand.hbm [shape: f32[2,128], index: 13, kind: output, shape index: {}]
  %s14 = sld [smem:[#allocation0]]
  $region62: #{generator_forward.1} parent=0
    _
  %s16 = ssub.s32 1, %s14
  %s17 = scalar_select 0, %s16, %s14
  $region1: #{generator_forward.1} parent=0
    #allocation4 [shape = 'u8[1024]{0}', space=vmem, size = 0x400, scoped, tag = 'output window, operand 0, single buffered']
    #allocation5 [shape = 's32[1]{0}', space=sflag, size = 0x4, scoped, tag = 'scoped memory for generator_forward.1']
    %18 = vsyncpa [#allocation5], 0
    // Predicated region
    $region2: #{generator_forward.1} parent=1 // pred_check
      _
    $region3: #{generator_forward.1} parent=1 // pred_check_branch
      %20 = sbr.rel (0) target = $region5
    $region4: #{generator_forward.1} parent=1 // pred_region
      _
    $region5: #{generator_forward.1} parent=1 // pred_fallthru
      _
    // Predicated region
    $region6: #{generator_forward.1} parent=1 // pred_check
      _
    $region7: #{generator_forward.1} parent=1 // pred_check_branch
      %22 = sbr.rel (0) target = $region9
    $region8: #{generator_forward.1} parent=1 // pred_region
      _
    $region9: #{generator_forward.1} parent=1 // pred_fallthru
      _
    // Predicated region
    $region10: #{generator_forward.1} parent=1 // pred_check
      _
    $region11: #{generator_forward.1} parent=1 // pred_check_branch
      %24 = sbr.rel (0) target = $region13
    $region12: #{generator_forward.1} parent=1 // pred_region
      _
    $region13: #{generator_forward.1} parent=1 // pred_fallthru
      _
    // Predicated region
    $region14: #{generator_forward.1} parent=1 // pred_check
      _
    $region15: #{generator_forward.1} parent=1 // pred_check_branch
      %26 = sbr.rel (0) target = $region17
    $region16: #{generator_forward.1} parent=1 // pred_region
      _
    $region17: #{generator_forward.1} parent=1 // pred_fallthru
      _
    // Predicated region
    $region18: #{generator_forward.1} parent=1 // pred_check
      _
    $region19: #{generator_forward.1} parent=1 // pred_check_branch
      %28 = sbr.rel (0) target = $region21
    $region20: #{generator_forward.1} parent=1 // pred_region
      _
    $region21: #{generator_forward.1} parent=1 // pred_fallthru
      _
    // Predicated region
    $region22: #{generator_forward.1} parent=1 // pred_check
      _
    $region23: #{generator_forward.1} parent=1 // pred_check_branch
      %30 = sbr.rel (0) target = $region25
    $region24: #{generator_forward.1} parent=1 // pred_region
      _
    $region25: #{generator_forward.1} parent=1 // pred_fallthru
      _
    // Predicated region
    $region26: #{generator_forward.1} parent=1 // pred_check
      _
    $region27: #{generator_forward.1} parent=1 // pred_check_branch
      %32 = sbr.rel (0) target = $region29
    $region28: #{generator_forward.1} parent=1 // pred_region
      _
    $region29: #{generator_forward.1} parent=1 // pred_fallthru
      _
    // Predicated region
    $region30: #{generator_forward.1} parent=1 // pred_check
      _
    $region31: #{generator_forward.1} parent=1 // pred_check_branch
      %34 = sbr.rel (0) target = $region33
    $region32: #{generator_forward.1} parent=1 // pred_region
      _
    $region33: #{generator_forward.1} parent=1 // pred_fallthru
      _
    // Predicated region
    $region34: #{generator_forward.1} parent=1 // pred_check
      _
    $region35: #{generator_forward.1} parent=1 // pred_check_branch
      %36 = sbr.rel (0) target = $region37
    $region36: #{generator_forward.1} parent=1 // pred_region
      _
    $region37: #{generator_forward.1} parent=1 // pred_fallthru
      _
    // Predicated region
    $region38: #{generator_forward.1} parent=1 // pred_check
      _
    $region39: #{generator_forward.1} parent=1 // pred_check_branch
      %38 = sbr.rel (0) target = $region41
    $region40: #{generator_forward.1} parent=1 // pred_region
      _
    $region41: #{generator_forward.1} parent=1 // pred_fallthru
      _
    // Predicated region
    $region42: #{generator_forward.1} parent=1 // pred_check
      _
    $region43: #{generator_forward.1} parent=1 // pred_check_branch
      %40 = sbr.rel (0) target = $region45
    $region44: #{generator_forward.1} parent=1 // pred_region
      _
    $region45: #{generator_forward.1} parent=1 // pred_fallthru
      _
    // Predicated region
    $region46: #{generator_forward.1} parent=1 // pred_check
      _
    $region47: #{generator_forward.1} parent=1 // pred_check_branch
      %42 = sbr.rel (0) target = $region49
    $region48: #{generator_forward.1} parent=1 // pred_region
      _
    $region49: #{generator_forward.1} parent=1 // pred_fallthru
      _
    // Predicated region
    $region50: #{generator_forward.1} parent=1 // pred_check
      _
    $region51: #{generator_forward.1} parent=1 // pred_check_branch
      %44 = sbr.rel (0) target = $region53
    $region52: #{generator_forward.1} parent=1 // pred_region
      _
    $region53: #{generator_forward.1} parent=1 // pred_fallthru
      _
    %v45 = vld [vmem:[%s0] sm:$0xff]
    %v46 = vld [vmem:[%s0 + $0x8] sm:$0xff]
    %v47 = vld [vmem:[%s1] sm:$0xff]
    %v48 = vld [vmem:[%s1 + $0x8] sm:$0xff]
    %v49 = vld [vmem:[%s1 + $0x10] sm:$0xff]
    %v50 = vld [vmem:[%s1 + $0x18] sm:$0xff]
    %v51 = vld [vmem:[%s4] sm:$0x3]
    %v53 = vlaneseq
    %v54 = vshrl.u32 %v53, 7
    %v55 = vsub.s32 0, %v54
    %v56 = vrot.slane %v51, %v55
    %v57 = vlaneseq
    %v58 = vshrl.u32 %v57, 7
    %v59 = vsub.s32 1, %v58
    %v60 = vrot.slane %v51, %v59
    %vm63 = vcmask 130048
    %v65 = vsel %vm63, %v45, 0
    %v68 = vsel %vm63, %v46, 0
    %70 = vmatprep.subr.mxu0 %v48
    %71 = vmatpush1.msra.mxu0 %v47
    %72 = vmatprep.subr.mxu0 %v50
    %73 = vmatpush1.msra.mxu0 %v49
    %74 = vmatprep.subr.mxu0 0.0
    %75 = vmatpush1.msra.mxu0 0.0
    %76 = vmatprep.subr.mxu0 0.0
    %77 = vmatpush1.msra.mxu0 0.0
    %78 = vmatprep.subr.mxu0 0.0
    %79 = vmatpush1.msra.mxu0 0.0
    %80 = vmatprep.subr.mxu0 0.0
    %81 = vmatpush1.msra.mxu0 0.0
    %82 = vmatprep.subr.mxu0 0.0
    %83 = vmatpush1.msra.mxu0 0.0
    %84 = vmatprep.subr.mxu0 0.0
    %85 = vmatpush1.msra.mxu0 0.0
    %86 = vmatprep.subr.mxu0 0.0
    %87 = vmatpush1.msra.mxu0 0.0
    %88 = vmatprep.subr.mxu0 0.0
    %89 = vmatpush1.msra.mxu0 0.0
    %90 = vmatprep.subr.mxu0 0.0
    %91 = vmatpush1.msra.mxu0 0.0
    %92 = vmatprep.subr.mxu0 0.0
    %93 = vmatpush1.msra.mxu0 0.0
    %94 = vmatprep.subr.mxu0 0.0
    %95 = vmatpush1.msra.mxu0 0.0
    %96 = vmatprep.subr.mxu0 0.0
    %97 = vmatpush1.msra.mxu0 0.0
    %98 = vmatprep.subr.mxu0 0.0
    %99 = vmatpush1.msra.mxu0 0.0
    %100 = vmatprep.subr.mxu0 0.0
    %101 = vmatpush1.msra.mxu0 0.0
    %102 = vmatprep.subr.mxu0 0.0
    %103 = vmatpush1.msra.mxu0 0.0
    %104 = vmatprep.subr.mxu0 0.0
    %105 = vmatpush1.msra.mxu0 0.0
    %106 = vmatprep.subr.mxu0 0.0
    %107 = vmatpush1.msra.mxu0 0.0
    %108 = vmatprep.subr.mxu0 0.0
    %109 = vmatpush1.msra.mxu0 0.0
    %110 = vmatprep.subr.mxu0 0.0
    %111 = vmatpush1.msra.mxu0 0.0
    %112 = vmatprep.subr.mxu0 0.0
    %113 = vmatpush1.msra.mxu0 0.0
    %114 = vmatprep.subr.mxu0 0.0
    %115 = vmatpush1.msra.mxu0 0.0
    %116 = vmatprep.subr.mxu0 0.0
    %117 = vmatpush1.msra.mxu0 0.0
    %118 = vmatprep.subr.mxu0 0.0
    %119 = vmatpush1.msra.mxu0 0.0
    %120 = vmatprep.subr.mxu0 0.0
    %121 = vmatpush1.msra.mxu0 0.0
    %122 = vmatprep.subr.mxu0 0.0
    %123 = vmatpush1.msra.mxu0 0.0
    %124 = vmatprep.subr.mxu0 0.0
    %125 = vmatpush1.msra.mxu0 0.0
    %126 = vmatprep.subr.mxu0 0.0
    %127 = vmatpush1.msra.mxu0 0.0
    %128 = vmatprep.subr.mxu0 0.0
    %129 = vmatpush1.msra.mxu0 0.0
    %130 = vmatprep.subr.mxu0 0.0
    %131 = vmatpush1.msra.mxu0 0.0
    %132 = vmatprep.subr.mxu0 0.0
    %133 = vmatpush1.msra.mxu0 0.0
    %134 = vmatprep.mubr.f32.mxu0 0.0
    %135 = vmatmul.mubr.f32.gmra.mrb[0].mxu0 %v65
    %v136 = vpop.f32.mrb[0].mxu0
    %v137 = vadd.f32 %v56, %v136
    %v138 = vpop.f32.mrb[0].mxu0
    %v139 = vadd.f32 %v60, %v138
    %140 = vmatprep.mubr.f32.mxu0 0.0
    %141 = vmatmul.mubr.f32.gmra.mrb[0].mxu0 %v68
    %v142 = vpop.f32.mrb[0].mxu0
    %v143 = vadd.f32 %v56, %v142
    %v144 = vpop.f32.mrb[0].mxu0
    %v145 = vadd.f32 %v60, %v144
    %146 = vdwg.mxu0
    %147 = vst [vmem:[#allocation3] sm:$0xff] %v137
    %148 = vst [vmem:[#allocation3 + $0x8] sm:$0xff] %v139
    %149 = vst [vmem:[#allocation3 + $0x10] sm:$0xff] %v143
    %150 = vst [vmem:[#allocation3 + $0x18] sm:$0xff] %v145
    %v151 = vld [vmem:[%s2] sm:$0xff]
    %v152 = vld [vmem:[%s2 + $0x8] sm:$0xff]
    %v153 = vld [vmem:[%s2 + $0x10] sm:$0xff]
    %v154 = vld [vmem:[%s2 + $0x18] sm:$0xff]
    %v155 = vld [vmem:[%s3] sm:$0xff]
    %v156 = vld [vmem:[%s3 + $0x8] sm:$0xff]
    %v157 = vld [vmem:[%s3 + $0x10] sm:$0xff]
    %v158 = vld [vmem:[%s3 + $0x18] sm:$0xff]
    %v159 = vld [vmem:[#allocation3] sm:$0x3]
    %vm160 = vcmask 261120
    %v162 = vsel %vm160, 0.0, 0
    %164 = vmatprep.subr.mxu0 0.0
    %165 = vmatpush1.msra.mxu0 %v151
    %166 = vmatprep.subr.mxu0 0.0
    %167 = vmatpush1.msra.mxu0 %v152
    %168 = vmatprep.subr.mxu0 0.0
    %169 = vmatpush1.msra.mxu0 %v153
    %170 = vmatprep.subr.mxu0 0.0
    %171 = vmatpush1.msra.mxu0 %v154
    %172 = vmatprep.subr.mxu0 0.0
    %173 = vmatpush1.msra.mxu0 0.0
    %174 = vmatprep.subr.mxu0 0.0
    %175 = vmatpush1.msra.mxu0 0.0
    %176 = vmatprep.subr.mxu0 0.0
    %177 = vmatpush1.msra.mxu0 0.0
    %178 = vmatprep.subr.mxu0 0.0
    %179 = vmatpush1.msra.mxu0 0.0
    %180 = vmatprep.subr.mxu0 0.0
    %181 = vmatpush1.msra.mxu0 0.0
    %182 = vmatprep.subr.mxu0 0.0
    %183 = vmatpush1.msra.mxu0 0.0
    %184 = vmatprep.subr.mxu0 0.0
    %185 = vmatpush1.msra.mxu0 0.0
    %186 = vmatprep.subr.mxu0 0.0
    %187 = vmatpush1.msra.mxu0 0.0
    %188 = vmatprep.subr.mxu0 0.0
    %189 = vmatpush1.msra.mxu0 0.0
    %190 = vmatprep.subr.mxu0 0.0
    %191 = vmatpush1.msra.mxu0 0.0
    %192 = vmatprep.subr.mxu0 0.0
    %193 = vmatpush1.msra.mxu0 0.0
    %194 = vmatprep.subr.mxu0 0.0
    %195 = vmatpush1.msra.mxu0 0.0
    %196 = vmatprep.subr.mxu0 0.0
    %197 = vmatpush1.msra.mxu0 0.0
    %198 = vmatprep.subr.mxu0 0.0
    %199 = vmatpush1.msra.mxu0 0.0
    %200 = vmatprep.subr.mxu0 0.0
    %201 = vmatpush1.msra.mxu0 0.0
    %202 = vmatprep.subr.mxu0 0.0
    %203 = vmatpush1.msra.mxu0 0.0
    %204 = vmatprep.subr.mxu0 0.0
    %205 = vmatpush1.msra.mxu0 0.0
    %206 = vmatprep.subr.mxu0 0.0
    %207 = vmatpush1.msra.mxu0 0.0
    %208 = vmatprep.subr.mxu0 0.0
    %209 = vmatpush1.msra.mxu0 0.0
    %210 = vmatprep.subr.mxu0 0.0
    %211 = vmatpush1.msra.mxu0 0.0
    %212 = vmatprep.subr.mxu0 0.0
    %213 = vmatpush1.msra.mxu0 0.0
    %214 = vmatprep.subr.mxu0 0.0
    %215 = vmatpush1.msra.mxu0 0.0
    %216 = vmatprep.subr.mxu0 0.0
    %217 = vmatpush1.msra.mxu0 0.0
    %218 = vmatprep.subr.mxu0 0.0
    %219 = vmatpush1.msra.mxu0 0.0
    %220 = vmatprep.subr.mxu0 0.0
    %221 = vmatpush1.msra.mxu0 0.0
    %222 = vmatprep.subr.mxu0 0.0
    %223 = vmatpush1.msra.mxu0 0.0
    %224 = vmatprep.subr.mxu0 0.0
    %225 = vmatpush1.msra.mxu0 0.0
    %226 = vmatprep.subr.mxu0 0.0
    %227 = vmatpush1.msra.mxu0 0.0
    %228 = vmatprep.mubr.f32.mxu0 0.0
    %229 = vmatmul.mubr.f32.gmra.mrb[0].mxu0 %v162
    %v230 = vpop.f32.mrb[0].mxu0
    %v231 = vadd.f32 0.0, %v230
    %v232 = vpop.f32.mrb[0].mxu0
    %233 = vdwg.mxu0
    %v234 = vadd.f32 %v159, %v231
    %v235 = vld [vmem:[#allocation3 + $0x18] sm:$0xc0]
    %236 = vmatprep.subr.mxu0 0.0
    %237 = vmatpush1.msra.mxu0 %v155
    %238 = vmatprep.subr.mxu0 0.0
    %239 = vmatpush1.msra.mxu0 %v156
    %240 = vmatprep.subr.mxu0 0.0
    %241 = vmatpush1.msra.mxu0 %v157
    %242 = vmatprep.subr.mxu0 0.0
    %243 = vmatpush1.msra.mxu0 %v158
    %244 = vmatprep.subr.mxu0 0.0
    %245 = vmatpush1.msra.mxu0 0.0
    %246 = vmatprep.subr.mxu0 0.0
    %247 = vmatpush1.msra.mxu0 0.0
    %248 = vmatprep.subr.mxu0 0.0
    %249 = vmatpush1.msra.mxu0 0.0
    %250 = vmatprep.subr.mxu0 0.0
    %251 = vmatpush1.msra.mxu0 0.0
    %252 = vmatprep.subr.mxu0 0.0
    %253 = vmatpush1.msra.mxu0 0.0
    %254 = vmatprep.subr.mxu0 0.0
    %255 = vmatpush1.msra.mxu0 0.0
    %256 = vmatprep.subr.mxu0 0.0
    %257 = vmatpush1.msra.mxu0 0.0
    %258 = vmatprep.subr.mxu0 0.0
    %259 = vmatpush1.msra.mxu0 0.0
    %260 = vmatprep.subr.mxu0 0.0
    %261 = vmatpush1.msra.mxu0 0.0
    %262 = vmatprep.subr.mxu0 0.0
    %263 = vmatpush1.msra.mxu0 0.0
    %264 = vmatprep.subr.mxu0 0.0
    %265 = vmatpush1.msra.mxu0 0.0
    %266 = vmatprep.subr.mxu0 0.0
    %267 = vmatpush1.msra.mxu0 0.0
    %268 = vmatprep.subr.mxu0 0.0
    %269 = vmatpush1.msra.mxu0 0.0
    %270 = vmatprep.subr.mxu0 0.0
    %271 = vmatpush1.msra.mxu0 0.0
    %272 = vmatprep.subr.mxu0 0.0
    %273 = vmatpush1.msra.mxu0 0.0
    %274 = vmatprep.subr.mxu0 0.0
    %275 = vmatpush1.msra.mxu0 0.0
    %276 = vmatprep.subr.mxu0 0.0
    %277 = vmatpush1.msra.mxu0 0.0
    %278 = vmatprep.subr.mxu0 0.0
    %279 = vmatpush1.msra.mxu0 0.0
    %280 = vmatprep.subr.mxu0 0.0
    %281 = vmatpush1.msra.mxu0 0.0
    %282 = vmatprep.subr.mxu0 0.0
    %283 = vmatpush1.msra.mxu0 0.0
    %284 = vmatprep.subr.mxu0 0.0
    %285 = vmatpush1.msra.mxu0 0.0
    %286 = vmatprep.subr.mxu0 0.0
    %287 = vmatpush1.msra.mxu0 0.0
    %288 = vmatprep.subr.mxu0 0.0
    %289 = vmatpush1.msra.mxu0 0.0
    %290 = vmatprep.subr.mxu0 0.0
    %291 = vmatpush1.msra.mxu0 0.0
    %292 = vmatprep.subr.mxu0 0.0
    %293 = vmatpush1.msra.mxu0 0.0
    %294 = vmatprep.subr.mxu0 0.0
    %295 = vmatpush1.msra.mxu0 0.0
    %296 = vmatprep.subr.mxu0 0.0
    %297 = vmatpush1.msra.mxu0 0.0
    %298 = vmatprep.subr.mxu0 0.0
    %299 = vmatpush1.msra.mxu0 0.0
    %300 = vmatprep.mubr.f32.mxu0 0.0
    %301 = vmatmul.mubr.f32.gmra.mrb[0].mxu0 %v162
    %v302 = vpop.f32.mrb[0].mxu0
    %v303 = vadd.f32 0.0, %v302
    %v304 = vpop.f32.mrb[0].mxu0
    %305 = vdwg.mxu0
    %v307 = vrot.slane %v303, 2
    %v309 = vadd.f32 %v235, %v307
    %v310 = vxor.u32 %v234, 2147483648
    %v311 = vmul.f32 %v310, 1.442695
    %v312 = vpow.pop %v311
    %v313 = vadd.f32 %v312, 1.0
    %v314 = vrcp.pop %v313
    %v315 = vmul.f32 1.0, %v314
    %v316 = vxor.u32 %v309, 2147483648
    %v317 = vmul.f32 %v316, 1.442695
    %v318 = vpow.pop %v317
    %v319 = vadd.f32 %v318, 1.0
    %v320 = vrcp.pop %v319
    %v321 = vmul.f32 1.0, %v320
    %v322 = vtanh.pop %v234
    %v323 = vtanh.pop %v309
    %v324 = vmul.f32 %v315, 0.0
    %326 = vrot.lane.b32.xlu0 %v322, 64
    %v327 = vpop.permute.xlu0 %326
    %v329 = vmul.f32 %v315, %v327
    %331 = vrot.lane.b32.xlu0 %v329, 32
    %v332 = vpop.permute.xlu0 %331
    %v334 = vadd.f32 %v324, %v332
    %v335 = vmul.f32 %v321, 0.0
    %337 = vrot.lane.b32.xlu0 %v323, 64
    %v338 = vpop.permute.xlu0 %337
    %v340 = vmul.f32 %v321, %v338
    %342 = vrot.lane.b32.xlu0 %v340, 32
    %v343 = vpop.permute.xlu0 %342
    %v345 = vadd.f32 %v335, %v343
    %v346 = vtanh.pop %v334
    %348 = vrot.lane.b32.xlu0 %v346, 64
    %v349 = vpop.permute.xlu0 %348
    %v351 = vmul.f32 %v315, %v349
    %v352 = vtanh.pop %v345
    %354 = vrot.lane.b32.xlu0 %v352, 64
    %v355 = vpop.permute.xlu0 %354
    %v357 = vmul.f32 %v321, %v355
    %359 = vrot.lane.b32.xlu0 %v351, 32
    %v360 = vpop.permute.xlu0 %359
    %vm362 = vcmask 254976
    %363 = vst.msk [vmem:[#allocation2] sm:$0x3] %vm362, %v360
    %365 = vrot.lane.b32.xlu0 %v357, 64
    %v366 = vpop.permute.xlu0 %365
    %vm368 = vcmask 523526
    %369 = vst.msk [vmem:[#allocation2 + $0x8] sm:$0xc0] %vm368, %v366
    %v370 = vld [vmem:[#allocation3] sm:$0xc]
    %v371 = vsel %vm160, %v360, 0
    %373 = vmatprep.subr.mxu0 0.0
    %374 = vmatpush1.msra.mxu0 %v151
    %375 = vmatprep.subr.mxu0 0.0
    %376 = vmatpush1.msra.mxu0 %v152
    %377 = vmatprep.subr.mxu0 0.0
    %378 = vmatpush1.msra.mxu0 %v153
    %379 = vmatprep.subr.mxu0 0.0
    %380 = vmatpush1.msra.mxu0 %v154
    %381 = vmatprep.subr.mxu0 0.0
    %382 = vmatpush1.msra.mxu0 0.0
    %383 = vmatprep.subr.mxu0 0.0
    %384 = vmatpush1.msra.mxu0 0.0
    %385 = vmatprep.subr.mxu0 0.0
    %386 = vmatpush1.msra.mxu0 0.0
    %387 = vmatprep.subr.mxu0 0.0
    %388 = vmatpush1.msra.mxu0 0.0
    %389 = vmatprep.subr.mxu0 0.0
    %390 = vmatpush1.msra.mxu0 0.0
    %391 = vmatprep.subr.mxu0 0.0
    %392 = vmatpush1.msra.mxu0 0.0
    %393 = vmatprep.subr.mxu0 0.0
    %394 = vmatpush1.msra.mxu0 0.0
    %395 = vmatprep.subr.mxu0 0.0
    %396 = vmatpush1.msra.mxu0 0.0
    %397 = vmatprep.subr.mxu0 0.0
    %398 = vmatpush1.msra.mxu0 0.0
    %399 = vmatprep.subr.mxu0 0.0
    %400 = vmatpush1.msra.mxu0 0.0
    %401 = vmatprep.subr.mxu0 0.0
    %402 = vmatpush1.msra.mxu0 0.0
    %403 = vmatprep.subr.mxu0 0.0
    %404 = vmatpush1.msra.mxu0 0.0
    %405 = vmatprep.subr.mxu0 0.0
    %406 = vmatpush1.msra.mxu0 0.0
    %407 = vmatprep.subr.mxu0 0.0
    %408 = vmatpush1.msra.mxu0 0.0
    %409 = vmatprep.subr.mxu0 0.0
    %410 = vmatpush1.msra.mxu0 0.0
    %411 = vmatprep.subr.mxu0 0.0
    %412 = vmatpush1.msra.mxu0 0.0
    %413 = vmatprep.subr.mxu0 0.0
    %414 = vmatpush1.msra.mxu0 0.0
    %415 = vmatprep.subr.mxu0 0.0
    %416 = vmatpush1.msra.mxu0 0.0
    %417 = vmatprep.subr.mxu0 0.0
    %418 = vmatpush1.msra.mxu0 0.0
    %419 = vmatprep.subr.mxu0 0.0
    %420 = vmatpush1.msra.mxu0 0.0
    %421 = vmatprep.subr.mxu0 0.0
    %422 = vmatpush1.msra.mxu0 0.0
    %423 = vmatprep.subr.mxu0 0.0
    %424 = vmatpush1.msra.mxu0 0.0
    %425 = vmatprep.subr.mxu0 0.0
    %426 = vmatpush1.msra.mxu0 0.0
    %427 = vmatprep.subr.mxu0 0.0
    %428 = vmatpush1.msra.mxu0 0.0
    %429 = vmatprep.subr.mxu0 0.0
    %430 = vmatpush1.msra.mxu0 0.0
    %431 = vmatprep.subr.mxu0 0.0
    %432 = vmatpush1.msra.mxu0 0.0
    %433 = vmatprep.subr.mxu0 0.0
    %434 = vmatpush1.msra.mxu0 0.0
    %435 = vmatprep.subr.mxu0 0.0
    %436 = vmatpush1.msra.mxu0 0.0
    %437 = vmatprep.mubr.f32.mxu0 0.0
    %438 = vmatmul.mubr.f32.gmra.mrb[0].mxu0 %v371
    %v439 = vpop.f32.mrb[0].mxu0
    %v440 = vadd.f32 0.0, %v439
    %v441 = vpop.f32.mrb[0].mxu0
    %442 = vdwg.mxu0
    %v444 = vrot.slane %v440, 6
    %v446 = vadd.f32 %v370, %v444
    %v447 = vld [vmem:[#allocation3 + $0x18] sm:$0x30]
    %v448 = vrot.slane %v357, 6
    %449 = vrot.lane.b32.xlu0 %v448, 32
    %v450 = vpop.permute.xlu0 %449
    %v451 = vsel %vm160, %v450, 0
    %453 = vmatprep.subr.mxu0 0.0
    %454 = vmatpush1.msra.mxu0 %v155
    %455 = vmatprep.subr.mxu0 0.0
    %456 = vmatpush1.msra.mxu0 %v156
    %457 = vmatprep.subr.mxu0 0.0
    %458 = vmatpush1.msra.mxu0 %v157
    %459 = vmatprep.subr.mxu0 0.0
    %460 = vmatpush1.msra.mxu0 %v158
    %461 = vmatprep.subr.mxu0 0.0
    %462 = vmatpush1.msra.mxu0 0.0
    %463 = vmatprep.subr.mxu0 0.0
    %464 = vmatpush1.msra.mxu0 0.0
    %465 = vmatprep.subr.mxu0 0.0
    %466 = vmatpush1.msra.mxu0 0.0
    %467 = vmatprep.subr.mxu0 0.0
    %468 = vmatpush1.msra.mxu0 0.0
    %469 = vmatprep.subr.mxu0 0.0
    %470 = vmatpush1.msra.mxu0 0.0
    %471 = vmatprep.subr.mxu0 0.0
    %472 = vmatpush1.msra.mxu0 0.0
    %473 = vmatprep.subr.mxu0 0.0
    %474 = vmatpush1.msra.mxu0 0.0
    %475 = vmatprep.subr.mxu0 0.0
    %476 = vmatpush1.msra.mxu0 0.0
    %477 = vmatprep.subr.mxu0 0.0
    %478 = vmatpush1.msra.mxu0 0.0
    %479 = vmatprep.subr.mxu0 0.0
    %480 = vmatpush1.msra.mxu0 0.0
    %481 = vmatprep.subr.mxu0 0.0
    %482 = vmatpush1.msra.mxu0 0.0
    %483 = vmatprep.subr.mxu0 0.0
    %484 = vmatpush1.msra.mxu0 0.0
    %485 = vmatprep.subr.mxu0 0.0
    %486 = vmatpush1.msra.mxu0 0.0
    %487 = vmatprep.subr.mxu0 0.0
    %488 = vmatpush1.msra.mxu0 0.0
    %489 = vmatprep.subr.mxu0 0.0
    %490 = vmatpush1.msra.mxu0 0.0
    %491 = vmatprep.subr.mxu0 0.0
    %492 = vmatpush1.msra.mxu0 0.0
    %493 = vmatprep.subr.mxu0 0.0
    %494 = vmatpush1.msra.mxu0 0.0
    %495 = vmatprep.subr.mxu0 0.0
    %496 = vmatpush1.msra.mxu0 0.0
    %497 = vmatprep.subr.mxu0 0.0
    %498 = vmatpush1.msra.mxu0 0.0
    %499 = vmatprep.subr.mxu0 0.0
    %500 = vmatpush1.msra.mxu0 0.0
    %501 = vmatprep.subr.mxu0 0.0
    %502 = vmatpush1.msra.mxu0 0.0
    %503 = vmatprep.subr.mxu0 0.0
    %504 = vmatpush1.msra.mxu0 0.0
    %505 = vmatprep.subr.mxu0 0.0
    %506 = vmatpush1.msra.mxu0 0.0
    %507 = vmatprep.subr.mxu0 0.0
    %508 = vmatpush1.msra.mxu0 0.0
    %509 = vmatprep.subr.mxu0 0.0
    %510 = vmatpush1.msra.mxu0 0.0
    %511 = vmatprep.subr.mxu0 0.0
    %512 = vmatpush1.msra.mxu0 0.0
    %513 = vmatprep.subr.mxu0 0.0
    %514 = vmatpush1.msra.mxu0 0.0
    %515 = vmatprep.subr.mxu0 0.0
    %516 = vmatpush1.msra.mxu0 0.0
    %517 = vmatprep.mubr.f32.mxu0 0.0
    %518 = vmatmul.mubr.f32.gmra.mrb[0].mxu0 %v451
    %v519 = vpop.f32.mrb[0].mxu0
    %v520 = vadd.f32 0.0, %v519
    %v521 = vpop.f32.mrb[0].mxu0
    %522 = vdwg.mxu0
    %v524 = vrot.slane %v520, 4
    %v526 = vadd.f32 %v447, %v524
    %v527 = vxor.u32 %v446, 2147483648
    %v528 = vmul.f32 %v527, 1.442695
    %v529 = vpow.pop %v528
    %v530 = vadd.f32 %v529, 1.0
    %v531 = vrcp.pop %v530
    %v532 = vmul.f32 1.0, %v531
    %v533 = vxor.u32 %v526, 2147483648
    %v534 = vmul.f32 %v533, 1.442695
    %v535 = vpow.pop %v534
    %v536 = vadd.f32 %v535, 1.0
    %v537 = vrcp.pop %v536
    %v538 = vmul.f32 1.0, %v537
    %v539 = vtanh.pop %v446
    %v540 = vtanh.pop %v526
    %v542 = vrot.slane %v334, 6
    %v544 = vmul.f32 %v532, %v542
    %546 = vrot.lane.b32.xlu0 %v539, 64
    %v547 = vpop.permute.xlu0 %546
    %v549 = vmul.f32 %v532, %v547
    %551 = vrot.lane.b32.xlu0 %v549, 32
    %v552 = vpop.permute.xlu0 %551
    %v554 = vadd.f32 %v544, %v552
    %v556 = vrot.slane %v345, 2
    %v558 = vmul.f32 %v538, %v556
    %560 = vrot.lane.b32.xlu0 %v540, 64
    %v561 = vpop.permute.xlu0 %560
    %v563 = vmul.f32 %v538, %v561
    %565 = vrot.lane.b32.xlu0 %v563, 32
    %v566 = vpop.permute.xlu0 %565
    %v568 = vadd.f32 %v558, %v566
    %v569 = vtanh.pop %v554
    %571 = vrot.lane.b32.xlu0 %v569, 64
    %v572 = vpop.permute.xlu0 %571
    %v574 = vmul.f32 %v532, %v572
    %v575 = vtanh.pop %v568
    %577 = vrot.lane.b32.xlu0 %v575, 64
    %v578 = vpop.permute.xlu0 %577
    %v580 = vmul.f32 %v538, %v578
    %582 = vrot.lane.b32.xlu0 %v574, 32
    %v583 = vpop.permute.xlu0 %582
    %vm585 = vcmask 257026
    %586 = vst.msk [vmem:[#allocation2] sm:$0xc] %vm585, %v583
    %588 = vrot.lane.b32.xlu0 %v580, 64
    %v589 = vpop.permute.xlu0 %588
    %vm591 = vcmask 521476
    %592 = vst.msk [vmem:[#allocation2 + $0x8] sm:$0x30] %vm591, %v589
    %v593 = vld [vmem:[#allocation3] sm:$0x30]
    %v594 = vrot.slane %v574, 2
    %595 = vrot.lane.b32.xlu0 %v594, 32
    %v596 = vpop.permute.xlu0 %595
    %v597 = vsel %vm160, %v596, 0
    %599 = vmatprep.subr.mxu0 0.0
    %600 = vmatpush1.msra.mxu0 %v151
    %601 = vmatprep.subr.mxu0 0.0
    %602 = vmatpush1.msra.mxu0 %v152
    %603 = vmatprep.subr.mxu0 0.0
    %604 = vmatpush1.msra.mxu0 %v153
    %605 = vmatprep.subr.mxu0 0.0
    %606 = vmatpush1.msra.mxu0 %v154
    %607 = vmatprep.subr.mxu0 0.0
    %608 = vmatpush1.msra.mxu0 0.0
    %609 = vmatprep.subr.mxu0 0.0
    %610 = vmatpush1.msra.mxu0 0.0
    %611 = vmatprep.subr.mxu0 0.0
    %612 = vmatpush1.msra.mxu0 0.0
    %613 = vmatprep.subr.mxu0 0.0
    %614 = vmatpush1.msra.mxu0 0.0
    %615 = vmatprep.subr.mxu0 0.0
    %616 = vmatpush1.msra.mxu0 0.0
    %617 = vmatprep.subr.mxu0 0.0
    %618 = vmatpush1.msra.mxu0 0.0
    %619 = vmatprep.subr.mxu0 0.0
    %620 = vmatpush1.msra.mxu0 0.0
    %621 = vmatprep.subr.mxu0 0.0
    %622 = vmatpush1.msra.mxu0 0.0
    %623 = vmatprep.subr.mxu0 0.0
    %624 = vmatpush1.msra.mxu0 0.0
    %625 = vmatprep.subr.mxu0 0.0
    %626 = vmatpush1.msra.mxu0 0.0
    %627 = vmatprep.subr.mxu0 0.0
    %628 = vmatpush1.msra.mxu0 0.0
    %629 = vmatprep.subr.mxu0 0.0
    %630 = vmatpush1.msra.mxu0 0.0
    %631 = vmatprep.subr.mxu0 0.0
    %632 = vmatpush1.msra.mxu0 0.0
    %633 = vmatprep.subr.mxu0 0.0
    %634 = vmatpush1.msra.mxu0 0.0
    %635 = vmatprep.subr.mxu0 0.0
    %636 = vmatpush1.msra.mxu0 0.0
    %637 = vmatprep.subr.mxu0 0.0
    %638 = vmatpush1.msra.mxu0 0.0
    %639 = vmatprep.subr.mxu0 0.0
    %640 = vmatpush1.msra.mxu0 0.0
    %641 = vmatprep.subr.mxu0 0.0
    %642 = vmatpush1.msra.mxu0 0.0
    %643 = vmatprep.subr.mxu0 0.0
    %644 = vmatpush1.msra.mxu0 0.0
    %645 = vmatprep.subr.mxu0 0.0
    %646 = vmatpush1.msra.mxu0 0.0
    %647 = vmatprep.subr.mxu0 0.0
    %648 = vmatpush1.msra.mxu0 0.0
    %649 = vmatprep.subr.mxu0 0.0
    %650 = vmatpush1.msra.mxu0 0.0
    %651 = vmatprep.subr.mxu0 0.0
    %652 = vmatpush1.msra.mxu0 0.0
    %653 = vmatprep.subr.mxu0 0.0
    %654 = vmatpush1.msra.mxu0 0.0
    %655 = vmatprep.subr.mxu0 0.0
    %656 = vmatpush1.msra.mxu0 0.0
    %657 = vmatprep.subr.mxu0 0.0
    %658 = vmatpush1.msra.mxu0 0.0
    %659 = vmatprep.subr.mxu0 0.0
    %660 = vmatpush1.msra.mxu0 0.0
    %661 = vmatprep.subr.mxu0 0.0
    %662 = vmatpush1.msra.mxu0 0.0
    %663 = vmatprep.mubr.f32.mxu0 0.0
    %664 = vmatmul.mubr.f32.gmra.mrb[0].mxu0 %v597
    %v665 = vpop.f32.mrb[0].mxu0
    %v666 = vadd.f32 0.0, %v665
    %v667 = vpop.f32.mrb[0].mxu0
    %668 = vdwg.mxu0
    %v670 = vrot.slane %v666, 4
    %v672 = vadd.f32 %v593, %v670
    %v673 = vld [vmem:[#allocation3 + $0x18] sm:$0xc]
    %v674 = vrot.slane %v580, 4
    %675 = vrot.lane.b32.xlu0 %v674, 32
    %v676 = vpop.permute.xlu0 %675
    %v677 = vsel %vm160, %v676, 0
    %679 = vmatprep.subr.mxu0 0.0
    %680 = vmatpush1.msra.mxu0 %v155
    %681 = vmatprep.subr.mxu0 0.0
    %682 = vmatpush1.msra.mxu0 %v156
    %683 = vmatprep.subr.mxu0 0.0
    %684 = vmatpush1.msra.mxu0 %v157
    %685 = vmatprep.subr.mxu0 0.0
    %686 = vmatpush1.msra.mxu0 %v158
    %687 = vmatprep.subr.mxu0 0.0
    %688 = vmatpush1.msra.mxu0 0.0
    %689 = vmatprep.subr.mxu0 0.0
    %690 = vmatpush1.msra.mxu0 0.0
    %691 = vmatprep.subr.mxu0 0.0
    %692 = vmatpush1.msra.mxu0 0.0
    %693 = vmatprep.subr.mxu0 0.0
    %694 = vmatpush1.msra.mxu0 0.0
    %695 = vmatprep.subr.mxu0 0.0
    %696 = vmatpush1.msra.mxu0 0.0
    %697 = vmatprep.subr.mxu0 0.0
    %698 = vmatpush1.msra.mxu0 0.0
    %699 = vmatprep.subr.mxu0 0.0
    %700 = vmatpush1.msra.mxu0 0.0
    %701 = vmatprep.subr.mxu0 0.0
    %702 = vmatpush1.msra.mxu0 0.0
    %703 = vmatprep.subr.mxu0 0.0
    %704 = vmatpush1.msra.mxu0 0.0
    %705 = vmatprep.subr.mxu0 0.0
    %706 = vmatpush1.msra.mxu0 0.0
    %707 = vmatprep.subr.mxu0 0.0
    %708 = vmatpush1.msra.mxu0 0.0
    %709 = vmatprep.subr.mxu0 0.0
    %710 = vmatpush1.msra.mxu0 0.0
    %711 = vmatprep.subr.mxu0 0.0
    %712 = vmatpush1.msra.mxu0 0.0
    %713 = vmatprep.subr.mxu0 0.0
    %714 = vmatpush1.msra.mxu0 0.0
    %715 = vmatprep.subr.mxu0 0.0
    %716 = vmatpush1.msra.mxu0 0.0
    %717 = vmatprep.subr.mxu0 0.0
    %718 = vmatpush1.msra.mxu0 0.0
    %719 = vmatprep.subr.mxu0 0.0
    %720 = vmatpush1.msra.mxu0 0.0
    %721 = vmatprep.subr.mxu0 0.0
    %722 = vmatpush1.msra.mxu0 0.0
    %723 = vmatprep.subr.mxu0 0.0
    %724 = vmatpush1.msra.mxu0 0.0
    %725 = vmatprep.subr.mxu0 0.0
    %726 = vmatpush1.msra.mxu0 0.0
    %727 = vmatprep.subr.mxu0 0.0
    %728 = vmatpush1.msra.mxu0 0.0
    %729 = vmatprep.subr.mxu0 0.0
    %730 = vmatpush1.msra.mxu0 0.0
    %731 = vmatprep.subr.mxu0 0.0
    %732 = vmatpush1.msra.mxu0 0.0
    %733 = vmatprep.subr.mxu0 0.0
    %734 = vmatpush1.msra.mxu0 0.0
    %735 = vmatprep.subr.mxu0 0.0
    %736 = vmatpush1.msra.mxu0 0.0
    %737 = vmatprep.subr.mxu0 0.0
    %738 = vmatpush1.msra.mxu0 0.0
    %739 = vmatprep.subr.mxu0 0.0
    %740 = vmatpush1.msra.mxu0 0.0
    %741 = vmatprep.subr.mxu0 0.0
    %742 = vmatpush1.msra.mxu0 0.0
    %743 = vmatprep.mubr.f32.mxu0 0.0
    %744 = vmatmul.mubr.f32.gmra.mrb[0].mxu0 %v677
    %v745 = vpop.f32.mrb[0].mxu0
    %v746 = vadd.f32 0.0, %v745
    %v747 = vpop.f32.mrb[0].mxu0
    %748 = vdwg.mxu0
    %v750 = vrot.slane %v746, 6
    %v752 = vadd.f32 %v673, %v750
    %v753 = vxor.u32 %v672, 2147483648
    %v754 = vmul.f32 %v753, 1.442695
    %v755 = vpow.pop %v754
    %v756 = vadd.f32 %v755, 1.0
    %v757 = vrcp.pop %v756
    %v758 = vmul.f32 1.0, %v757
    %v759 = vxor.u32 %v752, 2147483648
    %v760 = vmul.f32 %v759, 1.442695
    %v761 = vpow.pop %v760
    %v762 = vadd.f32 %v761, 1.0
    %v763 = vrcp.pop %v762
    %v764 = vmul.f32 1.0, %v763
    %v765 = vtanh.pop %v672
    %v766 = vtanh.pop %v752
    %v768 = vrot.slane %v554, 6
    %v770 = vmul.f32 %v758, %v768
    %772 = vrot.lane.b32.xlu0 %v765, 64
    %v773 = vpop.permute.xlu0 %772
    %v775 = vmul.f32 %v758, %v773
    %777 = vrot.lane.b32.xlu0 %v775, 32
    %v778 = vpop.permute.xlu0 %777
    %v780 = vadd.f32 %v770, %v778
    %v782 = vrot.slane %v568, 2
    %v784 = vmul.f32 %v764, %v782
    %786 = vrot.lane.b32.xlu0 %v766, 64
    %v787 = vpop.permute.xlu0 %786
    %v789 = vmul.f32 %v764, %v787
    %791 = vrot.lane.b32.xlu0 %v789, 32
    %v792 = vpop.permute.xlu0 %791
    %v794 = vadd.f32 %v784, %v792
    %v795 = vtanh.pop %v780
    %797 = vrot.lane.b32.xlu0 %v795, 64
    %v798 = vpop.permute.xlu0 %797
    %v800 = vmul.f32 %v758, %v798
    %v801 = vtanh.pop %v794
    %803 = vrot.lane.b32.xlu0 %v801, 64
    %v804 = vpop.permute.xlu0 %803
    %v806 = vmul.f32 %v764, %v804
    %808 = vrot.lane.b32.xlu0 %v800, 32
    %v809 = vpop.permute.xlu0 %808
    %vm811 = vcmask 259076
    %812 = vst.msk [vmem:[#allocation2] sm:$0x30] %vm811, %v809
    %814 = vrot.lane.b32.xlu0 %v806, 64
    %v815 = vpop.permute.xlu0 %814
    %vm817 = vcmask 519426
    %818 = vst.msk [vmem:[#allocation2 + $0x8] sm:$0xc] %vm817, %v815
    %v819 = vld [vmem:[#allocation3] sm:$0xc0]
    %v820 = vrot.slane %v800, 4
    %821 = vrot.lane.b32.xlu0 %v820, 32
    %v822 = vpop.permute.xlu0 %821
    %v823 = vsel %vm160, %v822, 0
    %825 = vmatprep.subr.mxu0 0.0
    %826 = vmatpush1.msra.mxu0 %v151
    %827 = vmatprep.subr.mxu0 0.0
    %828 = vmatpush1.msra.mxu0 %v152
    %829 = vmatprep.subr.mxu0 0.0
    %830 = vmatpush1.msra.mxu0 %v153
    %831 = vmatprep.subr.mxu0 0.0
    %832 = vmatpush1.msra.mxu0 %v154
    %833 = vmatprep.subr.mxu0 0.0
    %834 = vmatpush1.msra.mxu0 0.0
    %835 = vmatprep.subr.mxu0 0.0
    %836 = vmatpush1.msra.mxu0 0.0
    %837 = vmatprep.subr.mxu0 0.0
    %838 = vmatpush1.msra.mxu0 0.0
    %839 = vmatprep.subr.mxu0 0.0
    %840 = vmatpush1.msra.mxu0 0.0
    %841 = vmatprep.subr.mxu0 0.0
    %842 = vmatpush1.msra.mxu0 0.0
    %843 = vmatprep.subr.mxu0 0.0
    %844 = vmatpush1.msra.mxu0 0.0
    %845 = vmatprep.subr.mxu0 0.0
    %846 = vmatpush1.msra.mxu0 0.0
    %847 = vmatprep.subr.mxu0 0.0
    %848 = vmatpush1.msra.mxu0 0.0
    %849 = vmatprep.subr.mxu0 0.0
    %850 = vmatpush1.msra.mxu0 0.0
    %851 = vmatprep.subr.mxu0 0.0
    %852 = vmatpush1.msra.mxu0 0.0
    %853 = vmatprep.subr.mxu0 0.0
    %854 = vmatpush1.msra.mxu0 0.0
    %855 = vmatprep.subr.mxu0 0.0
    %856 = vmatpush1.msra.mxu0 0.0
    %857 = vmatprep.subr.mxu0 0.0
    %858 = vmatpush1.msra.mxu0 0.0
    %859 = vmatprep.subr.mxu0 0.0
    %860 = vmatpush1.msra.mxu0 0.0
    %861 = vmatprep.subr.mxu0 0.0
    %862 = vmatpush1.msra.mxu0 0.0
    %863 = vmatprep.subr.mxu0 0.0
    %864 = vmatpush1.msra.mxu0 0.0
    %865 = vmatprep.subr.mxu0 0.0
    %866 = vmatpush1.msra.mxu0 0.0
    %867 = vmatprep.subr.mxu0 0.0
    %868 = vmatpush1.msra.mxu0 0.0
    %869 = vmatprep.subr.mxu0 0.0
    %870 = vmatpush1.msra.mxu0 0.0
    %871 = vmatprep.subr.mxu0 0.0
    %872 = vmatpush1.msra.mxu0 0.0
    %873 = vmatprep.subr.mxu0 0.0
    %874 = vmatpush1.msra.mxu0 0.0
    %875 = vmatprep.subr.mxu0 0.0
    %876 = vmatpush1.msra.mxu0 0.0
    %877 = vmatprep.subr.mxu0 0.0
    %878 = vmatpush1.msra.mxu0 0.0
    %879 = vmatprep.subr.mxu0 0.0
    %880 = vmatpush1.msra.mxu0 0.0
    %881 = vmatprep.subr.mxu0 0.0
    %882 = vmatpush1.msra.mxu0 0.0
    %883 = vmatprep.subr.mxu0 0.0
    %884 = vmatpush1.msra.mxu0 0.0
    %885 = vmatprep.subr.mxu0 0.0
    %886 = vmatpush1.msra.mxu0 0.0
    %887 = vmatprep.subr.mxu0 0.0
    %888 = vmatpush1.msra.mxu0 0.0
    %889 = vmatprep.mubr.f32.mxu0 0.0
    %890 = vmatmul.mubr.f32.gmra.mrb[0].mxu0 %v823
    %v891 = vpop.f32.mrb[0].mxu0
    %v892 = vadd.f32 0.0, %v891
    %v893 = vpop.f32.mrb[0].mxu0
    %894 = vdwg.mxu0
    %v896 = vrot.slane %v892, 2
    %v898 = vadd.f32 %v819, %v896
    %v899 = vld [vmem:[#allocation3 + $0x18] sm:$0x3]
    %v900 = vrot.slane %v806, 2
    %901 = vrot.lane.b32.xlu0 %v900, 32
    %v902 = vpop.permute.xlu0 %901
    %v903 = vsel %vm160, %v902, 0
    %905 = vmatprep.subr.mxu0 0.0
    %906 = vmatpush1.msra.mxu0 %v155
    %907 = vmatprep.subr.mxu0 0.0
    %908 = vmatpush1.msra.mxu0 %v156
    %909 = vmatprep.subr.mxu0 0.0
    %910 = vmatpush1.msra.mxu0 %v157
    %911 = vmatprep.subr.mxu0 0.0
    %912 = vmatpush1.msra.mxu0 %v158
    %913 = vmatprep.subr.mxu0 0.0
    %914 = vmatpush1.msra.mxu0 0.0
    %915 = vmatprep.subr.mxu0 0.0
    %916 = vmatpush1.msra.mxu0 0.0
    %917 = vmatprep.subr.mxu0 0.0
    %918 = vmatpush1.msra.mxu0 0.0
    %919 = vmatprep.subr.mxu0 0.0
    %920 = vmatpush1.msra.mxu0 0.0
    %921 = vmatprep.subr.mxu0 0.0
    %922 = vmatpush1.msra.mxu0 0.0
    %923 = vmatprep.subr.mxu0 0.0
    %924 = vmatpush1.msra.mxu0 0.0
    %925 = vmatprep.subr.mxu0 0.0
    %926 = vmatpush1.msra.mxu0 0.0
    %927 = vmatprep.subr.mxu0 0.0
    %928 = vmatpush1.msra.mxu0 0.0
    %929 = vmatprep.subr.mxu0 0.0
    %930 = vmatpush1.msra.mxu0 0.0
    %931 = vmatprep.subr.mxu0 0.0
    %932 = vmatpush1.msra.mxu0 0.0
    %933 = vmatprep.subr.mxu0 0.0
    %934 = vmatpush1.msra.mxu0 0.0
    %935 = vmatprep.subr.mxu0 0.0
    %936 = vmatpush1.msra.mxu0 0.0
    %937 = vmatprep.subr.mxu0 0.0
    %938 = vmatpush1.msra.mxu0 0.0
    %939 = vmatprep.subr.mxu0 0.0
    %940 = vmatpush1.msra.mxu0 0.0
    %941 = vmatprep.subr.mxu0 0.0
    %942 = vmatpush1.msra.mxu0 0.0
    %943 = vmatprep.subr.mxu0 0.0
    %944 = vmatpush1.msra.mxu0 0.0
    %945 = vmatprep.subr.mxu0 0.0
    %946 = vmatpush1.msra.mxu0 0.0
    %947 = vmatprep.subr.mxu0 0.0
    %948 = vmatpush1.msra.mxu0 0.0
    %949 = vmatprep.subr.mxu0 0.0
    %950 = vmatpush1.msra.mxu0 0.0
    %951 = vmatprep.subr.mxu0 0.0
    %952 = vmatpush1.msra.mxu0 0.0
    %953 = vmatprep.subr.mxu0 0.0
    %954 = vmatpush1.msra.mxu0 0.0
    %955 = vmatprep.subr.mxu0 0.0
    %956 = vmatpush1.msra.mxu0 0.0
    %957 = vmatprep.subr.mxu0 0.0
    %958 = vmatpush1.msra.mxu0 0.0
    %959 = vmatprep.subr.mxu0 0.0
    %960 = vmatpush1.msra.mxu0 0.0
    %961 = vmatprep.subr.mxu0 0.0
    %962 = vmatpush1.msra.mxu0 0.0
    %963 = vmatprep.subr.mxu0 0.0
    %964 = vmatpush1.msra.mxu0 0.0
    %965 = vmatprep.subr.mxu0 0.0
    %966 = vmatpush1.msra.mxu0 0.0
    %967 = vmatprep.subr.mxu0 0.0
    %968 = vmatpush1.msra.mxu0 0.0
    %969 = vmatprep.mubr.f32.mxu0 0.0
    %970 = vmatmul.mubr.f32.gmra.mrb[0].mxu0 %v903
    %v971 = vpop.f32.mrb[0].mxu0
    %v972 = vadd.f32 0.0, %v971
    %v973 = vpop.f32.mrb[0].mxu0
    %974 = vdwg.mxu0
    %v975 = vadd.f32 %v899, %v972
    %v976 = vxor.u32 %v898, 2147483648
    %v977 = vmul.f32 %v976, 1.442695
    %v978 = vpow.pop %v977
    %v979 = vadd.f32 %v978, 1.0
    %v980 = vrcp.pop %v979
    %v981 = vmul.f32 1.0, %v980
    %v982 = vxor.u32 %v975, 2147483648
    %v983 = vmul.f32 %v982, 1.442695
    %v984 = vpow.pop %v983
    %v985 = vadd.f32 %v984, 1.0
    %v986 = vrcp.pop %v985
    %v987 = vmul.f32 1.0, %v986
    %v988 = vtanh.pop %v898
    %v989 = vtanh.pop %v975
    %v991 = vrot.slane %v780, 6
    %v993 = vmul.f32 %v981, %v991
    %995 = vrot.lane.b32.xlu0 %v988, 64
    %v996 = vpop.permute.xlu0 %995
    %v998 = vmul.f32 %v981, %v996
    %1000 = vrot.lane.b32.xlu0 %v998, 32
    %v1001 = vpop.permute.xlu0 %1000
    %v1003 = vadd.f32 %v993, %v1001
    %v1005 = vrot.slane %v794, 2
    %v1007 = vmul.f32 %v987, %v1005
    %1009 = vrot.lane.b32.xlu0 %v989, 64
    %v1010 = vpop.permute.xlu0 %1009
    %v1012 = vmul.f32 %v987, %v1010
    %1014 = vrot.lane.b32.xlu0 %v1012, 32
    %v1015 = vpop.permute.xlu0 %1014
    %v1017 = vadd.f32 %v1007, %v1015
    %v1018 = vtanh.pop %v1003
    %1020 = vrot.lane.b32.xlu0 %v1018, 64
    %v1021 = vpop.permute.xlu0 %1020
    %v1023 = vmul.f32 %v981, %v1021
    %v1024 = vtanh.pop %v1017
    %1026 = vrot.lane.b32.xlu0 %v1024, 64
    %v1027 = vpop.permute.xlu0 %1026
    %v1029 = vmul.f32 %v987, %v1027
    %1031 = vrot.lane.b32.xlu0 %v1023, 32
    %v1032 = vpop.permute.xlu0 %1031
    %vm1034 = vcmask 261126
    %1035 = vst.msk [vmem:[#allocation2] sm:$0xc0] %vm1034, %v1032
    %1037 = vrot.lane.b32.xlu0 %v1029, 64
    %v1038 = vpop.permute.xlu0 %1037
    %vm1040 = vcmask 517376
    %1041 = vst.msk [vmem:[#allocation2 + $0x8] sm:$0x3] %vm1040, %v1038
    %v1042 = vld [vmem:[#allocation3 + $0x10] sm:$0x3]
    %v1043 = vrot.slane %v1023, 6
    %1044 = vrot.lane.b32.xlu0 %v1043, 32
    %v1045 = vpop.permute.xlu0 %1044
    %v1046 = vsel %vm160, %v1045, 0
    %1048 = vmatprep.subr.mxu0 0.0
    %1049 = vmatpush1.msra.mxu0 %v151
    %1050 = vmatprep.subr.mxu0 0.0
    %1051 = vmatpush1.msra.mxu0 %v152
    %1052 = vmatprep.subr.mxu0 0.0
    %1053 = vmatpush1.msra.mxu0 %v153
    %1054 = vmatprep.subr.mxu0 0.0
    %1055 = vmatpush1.msra.mxu0 %v154
    %1056 = vmatprep.subr.mxu0 0.0
    %1057 = vmatpush1.msra.mxu0 0.0
    %1058 = vmatprep.subr.mxu0 0.0
    %1059 = vmatpush1.msra.mxu0 0.0
    %1060 = vmatprep.subr.mxu0 0.0
    %1061 = vmatpush1.msra.mxu0 0.0
    %1062 = vmatprep.subr.mxu0 0.0
    %1063 = vmatpush1.msra.mxu0 0.0
    %1064 = vmatprep.subr.mxu0 0.0
    %1065 = vmatpush1.msra.mxu0 0.0
    %1066 = vmatprep.subr.mxu0 0.0
    %1067 = vmatpush1.msra.mxu0 0.0
    %1068 = vmatprep.subr.mxu0 0.0
    %1069 = vmatpush1.msra.mxu0 0.0
    %1070 = vmatprep.subr.mxu0 0.0
    %1071 = vmatpush1.msra.mxu0 0.0
    %1072 = vmatprep.subr.mxu0 0.0
    %1073 = vmatpush1.msra.mxu0 0.0
    %1074 = vmatprep.subr.mxu0 0.0
    %1075 = vmatpush1.msra.mxu0 0.0
    %1076 = vmatprep.subr.mxu0 0.0
    %1077 = vmatpush1.msra.mxu0 0.0
    %1078 = vmatprep.subr.mxu0 0.0
    %1079 = vmatpush1.msra.mxu0 0.0
    %1080 = vmatprep.subr.mxu0 0.0
    %1081 = vmatpush1.msra.mxu0 0.0
    %1082 = vmatprep.subr.mxu0 0.0
    %1083 = vmatpush1.msra.mxu0 0.0
    %1084 = vmatprep.subr.mxu0 0.0
    %1085 = vmatpush1.msra.mxu0 0.0
    %1086 = vmatprep.subr.mxu0 0.0
    %1087 = vmatpush1.msra.mxu0 0.0
    %1088 = vmatprep.subr.mxu0 0.0
    %1089 = vmatpush1.msra.mxu0 0.0
    %1090 = vmatprep.subr.mxu0 0.0
    %1091 = vmatpush1.msra.mxu0 0.0
    %1092 = vmatprep.subr.mxu0 0.0
    %1093 = vmatpush1.msra.mxu0 0.0
    %1094 = vmatprep.subr.mxu0 0.0
    %1095 = vmatpush1.msra.mxu0 0.0
    %1096 = vmatprep.subr.mxu0 0.0
    %1097 = vmatpush1.msra.mxu0 0.0
    %1098 = vmatprep.subr.mxu0 0.0
    %1099 = vmatpush1.msra.mxu0 0.0
    %1100 = vmatprep.subr.mxu0 0.0
    %1101 = vmatpush1.msra.mxu0 0.0
    %1102 = vmatprep.subr.mxu0 0.0
    %1103 = vmatpush1.msra.mxu0 0.0
    %1104 = vmatprep.subr.mxu0 0.0
    %1105 = vmatpush1.msra.mxu0 0.0
    %1106 = vmatprep.subr.mxu0 0.0
    %1107 = vmatpush1.msra.mxu0 0.0
    %1108 = vmatprep.subr.mxu0 0.0
    %1109 = vmatpush1.msra.mxu0 0.0
    %1110 = vmatprep.subr.mxu0 0.0
    %1111 = vmatpush1.msra.mxu0 0.0
    %1112 = vmatprep.mubr.f32.mxu0 0.0
    %1113 = vmatmul.mubr.f32.gmra.mrb[0].mxu0 %v1046
    %v1114 = vpop.f32.mrb[0].mxu0
    %v1115 = vadd.f32 0.0, %v1114
    %v1116 = vpop.f32.mrb[0].mxu0
    %1117 = vdwg.mxu0
    %v1118 = vadd.f32 %v1042, %v1115
    %v1119 = vld [vmem:[#allocation3 + $0x8] sm:$0xc0]
    %1120 = vrot.lane.b32.xlu0 %v1029, 32
    %v1121 = vpop.permute.xlu0 %1120
    %v1122 = vsel %vm160, %v1121, 0
    %1124 = vmatprep.subr.mxu0 0.0
    %1125 = vmatpush1.msra.mxu0 %v155
    %1126 = vmatprep.subr.mxu0 0.0
    %1127 = vmatpush1.msra.mxu0 %v156
    %1128 = vmatprep.subr.mxu0 0.0
    %1129 = vmatpush1.msra.mxu0 %v157
    %1130 = vmatprep.subr.mxu0 0.0
    %1131 = vmatpush1.msra.mxu0 %v158
    %1132 = vmatprep.subr.mxu0 0.0
    %1133 = vmatpush1.msra.mxu0 0.0
    %1134 = vmatprep.subr.mxu0 0.0
    %1135 = vmatpush1.msra.mxu0 0.0
    %1136 = vmatprep.subr.mxu0 0.0
    %1137 = vmatpush1.msra.mxu0 0.0
    %1138 = vmatprep.subr.mxu0 0.0
    %1139 = vmatpush1.msra.mxu0 0.0
    %1140 = vmatprep.subr.mxu0 0.0
    %1141 = vmatpush1.msra.mxu0 0.0
    %1142 = vmatprep.subr.mxu0 0.0
    %1143 = vmatpush1.msra.mxu0 0.0
    %1144 = vmatprep.subr.mxu0 0.0
    %1145 = vmatpush1.msra.mxu0 0.0
    %1146 = vmatprep.subr.mxu0 0.0
    %1147 = vmatpush1.msra.mxu0 0.0
    %1148 = vmatprep.subr.mxu0 0.0
    %1149 = vmatpush1.msra.mxu0 0.0
    %1150 = vmatprep.subr.mxu0 0.0
    %1151 = vmatpush1.msra.mxu0 0.0
    %1152 = vmatprep.subr.mxu0 0.0
    %1153 = vmatpush1.msra.mxu0 0.0
    %1154 = vmatprep.subr.mxu0 0.0
    %1155 = vmatpush1.msra.mxu0 0.0
    %1156 = vmatprep.subr.mxu0 0.0
    %1157 = vmatpush1.msra.mxu0 0.0
    %1158 = vmatprep.subr.mxu0 0.0
    %1159 = vmatpush1.msra.mxu0 0.0
    %1160 = vmatprep.subr.mxu0 0.0
    %1161 = vmatpush1.msra.mxu0 0.0
    %1162 = vmatprep.subr.mxu0 0.0
    %1163 = vmatpush1.msra.mxu0 0.0
    %1164 = vmatprep.subr.mxu0 0.0
    %1165 = vmatpush1.msra.mxu0 0.0
    %1166 = vmatprep.subr.mxu0 0.0
    %1167 = vmatpush1.msra.mxu0 0.0
    %1168 = vmatprep.subr.mxu0 0.0
    %1169 = vmatpush1.msra.mxu0 0.0
    %1170 = vmatprep.subr.mxu0 0.0
    %1171 = vmatpush1.msra.mxu0 0.0
    %1172 = vmatprep.subr.mxu0 0.0
    %1173 = vmatpush1.msra.mxu0 0.0
    %1174 = vmatprep.subr.mxu0 0.0
    %1175 = vmatpush1.msra.mxu0 0.0
    %1176 = vmatprep.subr.mxu0 0.0
    %1177 = vmatpush1.msra.mxu0 0.0
    %1178 = vmatprep.subr.mxu0 0.0
    %1179 = vmatpush1.msra.mxu0 0.0
    %1180 = vmatprep.subr.mxu0 0.0
    %1181 = vmatpush1.msra.mxu0 0.0
    %1182 = vmatprep.subr.mxu0 0.0
    %1183 = vmatpush1.msra.mxu0 0.0
    %1184 = vmatprep.subr.mxu0 0.0
    %1185 = vmatpush1.msra.mxu0 0.0
    %1186 = vmatprep.subr.mxu0 0.0
    %1187 = vmatpush1.msra.mxu0 0.0
    %1188 = vmatprep.mubr.f32.mxu0 0.0
    %1189 = vmatmul.mubr.f32.gmra.mrb[0].mxu0 %v1122
    %v1190 = vpop.f32.mrb[0].mxu0
    %v1191 = vadd.f32 0.0, %v1190
    %v1192 = vpop.f32.mrb[0].mxu0
    %1193 = vdwg.mxu0
    %v1195 = vrot.slane %v1191, 2
    %v1197 = vadd.f32 %v1119, %v1195
    %v1198 = vxor.u32 %v1118, 2147483648
    %v1199 = vmul.f32 %v1198, 1.442695
    %v1200 = vpow.pop %v1199
    %v1201 = vadd.f32 %v1200, 1.0
    %v1202 = vrcp.pop %v1201
    %v1203 = vmul.f32 1.0, %v1202
    %v1204 = vxor.u32 %v1197, 2147483648
    %v1205 = vmul.f32 %v1204, 1.442695
    %v1206 = vpow.pop %v1205
    %v1207 = vadd.f32 %v1206, 1.0
    %v1208 = vrcp.pop %v1207
    %v1209 = vmul.f32 1.0, %v1208
    %v1210 = vtanh.pop %v1118
    %v1211 = vtanh.pop %v1197
    %v1213 = vrot.slane %v1003, 6
    %v1215 = vmul.f32 %v1203, %v1213
    %1217 = vrot.lane.b32.xlu0 %v1210, 64
    %v1218 = vpop.permute.xlu0 %1217
    %v1220 = vmul.f32 %v1203, %v1218
    %1222 = vrot.lane.b32.xlu0 %v1220, 32
    %v1223 = vpop.permute.xlu0 %1222
    %v1225 = vadd.f32 %v1215, %v1223
    %v1227 = vrot.slane %v1017, 2
    %v1229 = vmul.f32 %v1209, %v1227
    %1231 = vrot.lane.b32.xlu0 %v1211, 64
    %v1232 = vpop.permute.xlu0 %1231
    %v1234 = vmul.f32 %v1209, %v1232
    %1236 = vrot.lane.b32.xlu0 %v1234, 32
    %v1237 = vpop.permute.xlu0 %1236
    %v1239 = vadd.f32 %v1229, %v1237
    %v1240 = vtanh.pop %v1225
    %1242 = vrot.lane.b32.xlu0 %v1240, 64
    %v1243 = vpop.permute.xlu0 %1242
    %v1245 = vmul.f32 %v1203, %v1243
    %v1246 = vtanh.pop %v1239
    %1248 = vrot.lane.b32.xlu0 %v1246, 64
    %v1249 = vpop.permute.xlu0 %1248
    %v1251 = vmul.f32 %v1209, %v1249
    %1253 = vrot.lane.b32.xlu0 %v1245, 32
    %v1254 = vpop.permute.xlu0 %1253
    %1256 = vst.msk [vmem:[#allocation2 + $0x8] sm:$0x3] %vm362, %v1254
    %1258 = vrot.lane.b32.xlu0 %v1251, 64
    %v1259 = vpop.permute.xlu0 %1258
    %1261 = vst.msk [vmem:[#allocation2] sm:$0xc0] %vm368, %v1259
    %v1262 = vld [vmem:[#allocation3 + $0x10] sm:$0xc]
    %v1263 = vsel %vm160, %v1254, 0
    %1265 = vmatprep.subr.mxu0 0.0
    %1266 = vmatpush1.msra.mxu0 %v151
    %1267 = vmatprep.subr.mxu0 0.0
    %1268 = vmatpush1.msra.mxu0 %v152
    %1269 = vmatprep.subr.mxu0 0.0
    %1270 = vmatpush1.msra.mxu0 %v153
    %1271 = vmatprep.subr.mxu0 0.0
    %1272 = vmatpush1.msra.mxu0 %v154
    %1273 = vmatprep.subr.mxu0 0.0
    %1274 = vmatpush1.msra.mxu0 0.0
    %1275 = vmatprep.subr.mxu0 0.0
    %1276 = vmatpush1.msra.mxu0 0.0
    %1277 = vmatprep.subr.mxu0 0.0
    %1278 = vmatpush1.msra.mxu0 0.0
    %1279 = vmatprep.subr.mxu0 0.0
    %1280 = vmatpush1.msra.mxu0 0.0
    %1281 = vmatprep.subr.mxu0 0.0
    %1282 = vmatpush1.msra.mxu0 0.0
    %1283 = vmatprep.subr.mxu0 0.0
    %1284 = vmatpush1.msra.mxu0 0.0
    %1285 = vmatprep.subr.mxu0 0.0
    %1286 = vmatpush1.msra.mxu0 0.0
    %1287 = vmatprep.subr.mxu0 0.0
    %1288 = vmatpush1.msra.mxu0 0.0
    %1289 = vmatprep.subr.mxu0 0.0
    %1290 = vmatpush1.msra.mxu0 0.0
    %1291 = vmatprep.subr.mxu0 0.0
    %1292 = vmatpush1.msra.mxu0 0.0
    %1293 = vmatprep.subr.mxu0 0.0
    %1294 = vmatpush1.msra.mxu0 0.0
    %1295 = vmatprep.subr.mxu0 0.0
    %1296 = vmatpush1.msra.mxu0 0.0
    %1297 = vmatprep.subr.mxu0 0.0
    %1298 = vmatpush1.msra.mxu0 0.0
    %1299 = vmatprep.subr.mxu0 0.0
    %1300 = vmatpush1.msra.mxu0 0.0
    %1301 = vmatprep.subr.mxu0 0.0
    %1302 = vmatpush1.msra.mxu0 0.0
    %1303 = vmatprep.subr.mxu0 0.0
    %1304 = vmatpush1.msra.mxu0 0.0
    %1305 = vmatprep.subr.mxu0 0.0
    %1306 = vmatpush1.msra.mxu0 0.0
    %1307 = vmatprep.subr.mxu0 0.0
    %1308 = vmatpush1.msra.mxu0 0.0
    %1309 = vmatprep.subr.mxu0 0.0
    %1310 = vmatpush1.msra.mxu0 0.0
    %1311 = vmatprep.subr.mxu0 0.0
    %1312 = vmatpush1.msra.mxu0 0.0
    %1313 = vmatprep.subr.mxu0 0.0
    %1314 = vmatpush1.msra.mxu0 0.0
    %1315 = vmatprep.subr.mxu0 0.0
    %1316 = vmatpush1.msra.mxu0 0.0
    %1317 = vmatprep.subr.mxu0 0.0
    %1318 = vmatpush1.msra.mxu0 0.0
    %1319 = vmatprep.subr.mxu0 0.0
    %1320 = vmatpush1.msra.mxu0 0.0
    %1321 = vmatprep.subr.mxu0 0.0
    %1322 = vmatpush1.msra.mxu0 0.0
    %1323 = vmatprep.subr.mxu0 0.0
    %1324 = vmatpush1.msra.mxu0 0.0
    %1325 = vmatprep.subr.mxu0 0.0
    %1326 = vmatpush1.msra.mxu0 0.0
    %1327 = vmatprep.subr.mxu0 0.0
    %1328 = vmatpush1.msra.mxu0 0.0
    %1329 = vmatprep.mubr.f32.mxu0 0.0
    %1330 = vmatmul.mubr.f32.gmra.mrb[0].mxu0 %v1263
    %v1331 = vpop.f32.mrb[0].mxu0
    %v1332 = vadd.f32 0.0, %v1331
    %v1333 = vpop.f32.mrb[0].mxu0
    %1334 = vdwg.mxu0
    %v1336 = vrot.slane %v1332, 6
    %v1338 = vadd.f32 %v1262, %v1336
    %v1339 = vld [vmem:[#allocation3 + $0x8] sm:$0x30]
    %v1340 = vrot.slane %v1251, 6
    %1341 = vrot.lane.b32.xlu0 %v1340, 32
    %v1342 = vpop.permute.xlu0 %1341
    %v1343 = vsel %vm160, %v1342, 0
    %1345 = vmatprep.subr.mxu0 0.0
    %1346 = vmatpush1.msra.mxu0 %v155
    %1347 = vmatprep.subr.mxu0 0.0
    %1348 = vmatpush1.msra.mxu0 %v156
    %1349 = vmatprep.subr.mxu0 0.0
    %1350 = vmatpush1.msra.mxu0 %v157
    %1351 = vmatprep.subr.mxu0 0.0
    %1352 = vmatpush1.msra.mxu0 %v158
    %1353 = vmatprep.subr.mxu0 0.0
    %1354 = vmatpush1.msra.mxu0 0.0
    %1355 = vmatprep.subr.mxu0 0.0
    %1356 = vmatpush1.msra.mxu0 0.0
    %1357 = vmatprep.subr.mxu0 0.0
    %1358 = vmatpush1.msra.mxu0 0.0
    %1359 = vmatprep.subr.mxu0 0.0
    %1360 = vmatpush1.msra.mxu0 0.0
    %1361 = vmatprep.subr.mxu0 0.0
    %1362 = vmatpush1.msra.mxu0 0.0
    %1363 = vmatprep.subr.mxu0 0.0
    %1364 = vmatpush1.msra.mxu0 0.0
    %1365 = vmatprep.subr.mxu0 0.0
    %1366 = vmatpush1.msra.mxu0 0.0
    %1367 = vmatprep.subr.mxu0 0.0
    %1368 = vmatpush1.msra.mxu0 0.0
    %1369 = vmatprep.subr.mxu0 0.0
    %1370 = vmatpush1.msra.mxu0 0.0
    %1371 = vmatprep.subr.mxu0 0.0
    %1372 = vmatpush1.msra.mxu0 0.0
    %1373 = vmatprep.subr.mxu0 0.0
    %1374 = vmatpush1.msra.mxu0 0.0
    %1375 = vmatprep.subr.mxu0 0.0
    %1376 = vmatpush1.msra.mxu0 0.0
    %1377 = vmatprep.subr.mxu0 0.0
    %1378 = vmatpush1.msra.mxu0 0.0
    %1379 = vmatprep.subr.mxu0 0.0
    %1380 = vmatpush1.msra.mxu0 0.0
    %1381 = vmatprep.subr.mxu0 0.0
    %1382 = vmatpush1.msra.mxu0 0.0
    %1383 = vmatprep.subr.mxu0 0.0
    %1384 = vmatpush1.msra.mxu0 0.0
    %1385 = vmatprep.subr.mxu0 0.0
    %1386 = vmatpush1.msra.mxu0 0.0
    %1387 = vmatprep.subr.mxu0 0.0
    %1388 = vmatpush1.msra.mxu0 0.0
    %1389 = vmatprep.subr.mxu0 0.0
    %1390 = vmatpush1.msra.mxu0 0.0
    %1391 = vmatprep.subr.mxu0 0.0
    %1392 = vmatpush1.msra.mxu0 0.0
    %1393 = vmatprep.subr.mxu0 0.0
    %1394 = vmatpush1.msra.mxu0 0.0
    %1395 = vmatprep.subr.mxu0 0.0
    %1396 = vmatpush1.msra.mxu0 0.0
    %1397 = vmatprep.subr.mxu0 0.0
    %1398 = vmatpush1.msra.mxu0 0.0
    %1399 = vmatprep.subr.mxu0 0.0
    %1400 = vmatpush1.msra.mxu0 0.0
    %1401 = vmatprep.subr.mxu0 0.0
    %1402 = vmatpush1.msra.mxu0 0.0
    %1403 = vmatprep.subr.mxu0 0.0
    %1404 = vmatpush1.msra.mxu0 0.0
    %1405 = vmatprep.subr.mxu0 0.0
    %1406 = vmatpush1.msra.mxu0 0.0
    %1407 = vmatprep.subr.mxu0 0.0
    %1408 = vmatpush1.msra.mxu0 0.0
    %1409 = vmatprep.mubr.f32.mxu0 0.0
    %1410 = vmatmul.mubr.f32.gmra.mrb[0].mxu0 %v1343
    %v1411 = vpop.f32.mrb[0].mxu0
    %v1412 = vadd.f32 0.0, %v1411
    %v1413 = vpop.f32.mrb[0].mxu0
    %1414 = vdwg.mxu0
    %v1416 = vrot.slane %v1412, 4
    %v1418 = vadd.f32 %v1339, %v1416
    %v1419 = vxor.u32 %v1338, 2147483648
    %v1420 = vmul.f32 %v1419, 1.442695
    %v1421 = vpow.pop %v1420
    %v1422 = vadd.f32 %v1421, 1.0
    %v1423 = vrcp.pop %v1422
    %v1424 = vmul.f32 1.0, %v1423
    %v1425 = vxor.u32 %v1418, 2147483648
    %v1426 = vmul.f32 %v1425, 1.442695
    %v1427 = vpow.pop %v1426
    %v1428 = vadd.f32 %v1427, 1.0
    %v1429 = vrcp.pop %v1428
    %v1430 = vmul.f32 1.0, %v1429
    %v1431 = vtanh.pop %v1338
    %v1432 = vtanh.pop %v1418
    %v1434 = vrot.slane %v1225, 6
    %v1436 = vmul.f32 %v1424, %v1434
    %1438 = vrot.lane.b32.xlu0 %v1431, 64
    %v1439 = vpop.permute.xlu0 %1438
    %v1441 = vmul.f32 %v1424, %v1439
    %1443 = vrot.lane.b32.xlu0 %v1441, 32
    %v1444 = vpop.permute.xlu0 %1443
    %v1446 = vadd.f32 %v1436, %v1444
    %v1448 = vrot.slane %v1239, 2
    %v1450 = vmul.f32 %v1430, %v1448
    %1452 = vrot.lane.b32.xlu0 %v1432, 64
    %v1453 = vpop.permute.xlu0 %1452
    %v1455 = vmul.f32 %v1430, %v1453
    %1457 = vrot.lane.b32.xlu0 %v1455, 32
    %v1458 = vpop.permute.xlu0 %1457
    %v1460 = vadd.f32 %v1450, %v1458
    %v1461 = vtanh.pop %v1446
    %1463 = vrot.lane.b32.xlu0 %v1461, 64
    %v1464 = vpop.permute.xlu0 %1463
    %v1466 = vmul.f32 %v1424, %v1464
    %v1467 = vtanh.pop %v1460
    %1469 = vrot.lane.b32.xlu0 %v1467, 64
    %v1470 = vpop.permute.xlu0 %1469
    %v1472 = vmul.f32 %v1430, %v1470
    %1474 = vrot.lane.b32.xlu0 %v1466, 32
    %v1475 = vpop.permute.xlu0 %1474
    %1477 = vst.msk [vmem:[#allocation2 + $0x8] sm:$0xc] %vm585, %v1475
    %1479 = vrot.lane.b32.xlu0 %v1472, 64
    %v1480 = vpop.permute.xlu0 %1479
    %1482 = vst.msk [vmem:[#allocation2] sm:$0x30] %vm591, %v1480
    %v1483 = vld [vmem:[#allocation3 + $0x10] sm:$0x30]
    %v1484 = vrot.slane %v1466, 2
    %1485 = vrot.lane.b32.xlu0 %v1484, 32
    %v1486 = vpop.permute.xlu0 %1485
    %v1487 = vsel %vm160, %v1486, 0
    %1489 = vmatprep.subr.mxu0 0.0
    %1490 = vmatpush1.msra.mxu0 %v151
    %1491 = vmatprep.subr.mxu0 0.0
    %1492 = vmatpush1.msra.mxu0 %v152
    %1493 = vmatprep.subr.mxu0 0.0
    %1494 = vmatpush1.msra.mxu0 %v153
    %1495 = vmatprep.subr.mxu0 0.0
    %1496 = vmatpush1.msra.mxu0 %v154
    %1497 = vmatprep.subr.mxu0 0.0
    %1498 = vmatpush1.msra.mxu0 0.0
    %1499 = vmatprep.subr.mxu0 0.0
    %1500 = vmatpush1.msra.mxu0 0.0
    %1501 = vmatprep.subr.mxu0 0.0
    %1502 = vmatpush1.msra.mxu0 0.0
    %1503 = vmatprep.subr.mxu0 0.0
    %1504 = vmatpush1.msra.mxu0 0.0
    %1505 = vmatprep.subr.mxu0 0.0
    %1506 = vmatpush1.msra.mxu0 0.0
    %1507 = vmatprep.subr.mxu0 0.0
    %1508 = vmatpush1.msra.mxu0 0.0
    %1509 = vmatprep.subr.mxu0 0.0
    %1510 = vmatpush1.msra.mxu0 0.0
    %1511 = vmatprep.subr.mxu0 0.0
    %1512 = vmatpush1.msra.mxu0 0.0
    %1513 = vmatprep.subr.mxu0 0.0
    %1514 = vmatpush1.msra.mxu0 0.0
    %1515 = vmatprep.subr.mxu0 0.0
    %1516 = vmatpush1.msra.mxu0 0.0
    %1517 = vmatprep.subr.mxu0 0.0
    %1518 = vmatpush1.msra.mxu0 0.0
    %1519 = vmatprep.subr.mxu0 0.0
    %1520 = vmatpush1.msra.mxu0 0.0
    %1521 = vmatprep.subr.mxu0 0.0
    %1522 = vmatpush1.msra.mxu0 0.0
    %1523 = vmatprep.subr.mxu0 0.0
    %1524 = vmatpush1.msra.mxu0 0.0
    %1525 = vmatprep.subr.mxu0 0.0
    %1526 = vmatpush1.msra.mxu0 0.0
    %1527 = vmatprep.subr.mxu0 0.0
    %1528 = vmatpush1.msra.mxu0 0.0
    %1529 = vmatprep.subr.mxu0 0.0
    %1530 = vmatpush1.msra.mxu0 0.0
    %1531 = vmatprep.subr.mxu0 0.0
    %1532 = vmatpush1.msra.mxu0 0.0
    %1533 = vmatprep.subr.mxu0 0.0
    %1534 = vmatpush1.msra.mxu0 0.0
    %1535 = vmatprep.subr.mxu0 0.0
    %1536 = vmatpush1.msra.mxu0 0.0
    %1537 = vmatprep.subr.mxu0 0.0
    %1538 = vmatpush1.msra.mxu0 0.0
    %1539 = vmatprep.subr.mxu0 0.0
    %1540 = vmatpush1.msra.mxu0 0.0
    %1541 = vmatprep.subr.mxu0 0.0
    %1542 = vmatpush1.msra.mxu0 0.0
    %1543 = vmatprep.subr.mxu0 0.0
    %1544 = vmatpush1.msra.mxu0 0.0
    %1545 = vmatprep.subr.mxu0 0.0
    %1546 = vmatpush1.msra.mxu0 0.0
    %1547 = vmatprep.subr.mxu0 0.0
    %1548 = vmatpush1.msra.mxu0 0.0
    %1549 = vmatprep.subr.mxu0 0.0
    %1550 = vmatpush1.msra.mxu0 0.0
    %1551 = vmatprep.subr.mxu0 0.0
    %1552 = vmatpush1.msra.mxu0 0.0
    %1553 = vmatprep.mubr.f32.mxu0 0.0
    %1554 = vmatmul.mubr.f32.gmra.mrb[0].mxu0 %v1487
    %v1555 = vpop.f32.mrb[0].mxu0
    %v1556 = vadd.f32 0.0, %v1555
    %v1557 = vpop.f32.mrb[0].mxu0
    %1558 = vdwg.mxu0
    %v1560 = vrot.slane %v1556, 4
    %v1562 = vadd.f32 %v1483, %v1560
    %v1563 = vld [vmem:[#allocation3 + $0x8] sm:$0xc]
    %v1564 = vrot.slane %v1472, 4
    %1565 = vrot.lane.b32.xlu0 %v1564, 32
    %v1566 = vpop.permute.xlu0 %1565
    %v1567 = vsel %vm160, %v1566, 0
    %1569 = vmatprep.subr.mxu0 0.0
    %1570 = vmatpush1.msra.mxu0 %v155
    %1571 = vmatprep.subr.mxu0 0.0
    %1572 = vmatpush1.msra.mxu0 %v156
    %1573 = vmatprep.subr.mxu0 0.0
    %1574 = vmatpush1.msra.mxu0 %v157
    %1575 = vmatprep.subr.mxu0 0.0
    %1576 = vmatpush1.msra.mxu0 %v158
    %1577 = vmatprep.subr.mxu0 0.0
    %1578 = vmatpush1.msra.mxu0 0.0
    %1579 = vmatprep.subr.mxu0 0.0
    %1580 = vmatpush1.msra.mxu0 0.0
    %1581 = vmatprep.subr.mxu0 0.0
    %1582 = vmatpush1.msra.mxu0 0.0
    %1583 = vmatprep.subr.mxu0 0.0
    %1584 = vmatpush1.msra.mxu0 0.0
    %1585 = vmatprep.subr.mxu0 0.0
    %1586 = vmatpush1.msra.mxu0 0.0
    %1587 = vmatprep.subr.mxu0 0.0
    %1588 = vmatpush1.msra.mxu0 0.0
    %1589 = vmatprep.subr.mxu0 0.0
    %1590 = vmatpush1.msra.mxu0 0.0
    %1591 = vmatprep.subr.mxu0 0.0
    %1592 = vmatpush1.msra.mxu0 0.0
    %1593 = vmatprep.subr.mxu0 0.0
    %1594 = vmatpush1.msra.mxu0 0.0
    %1595 = vmatprep.subr.mxu0 0.0
    %1596 = vmatpush1.msra.mxu0 0.0
    %1597 = vmatprep.subr.mxu0 0.0
    %1598 = vmatpush1.msra.mxu0 0.0
    %1599 = vmatprep.subr.mxu0 0.0
    %1600 = vmatpush1.msra.mxu0 0.0
    %1601 = vmatprep.subr.mxu0 0.0
    %1602 = vmatpush1.msra.mxu0 0.0
    %1603 = vmatprep.subr.mxu0 0.0
    %1604 = vmatpush1.msra.mxu0 0.0
    %1605 = vmatprep.subr.mxu0 0.0
    %1606 = vmatpush1.msra.mxu0 0.0
    %1607 = vmatprep.subr.mxu0 0.0
    %1608 = vmatpush1.msra.mxu0 0.0
    %1609 = vmatprep.subr.mxu0 0.0
    %1610 = vmatpush1.msra.mxu0 0.0
    %1611 = vmatprep.subr.mxu0 0.0
    %1612 = vmatpush1.msra.mxu0 0.0
    %1613 = vmatprep.subr.mxu0 0.0
    %1614 = vmatpush1.msra.mxu0 0.0
    %1615 = vmatprep.subr.mxu0 0.0
    %1616 = vmatpush1.msra.mxu0 0.0
    %1617 = vmatprep.subr.mxu0 0.0
    %1618 = vmatpush1.msra.mxu0 0.0
    %1619 = vmatprep.subr.mxu0 0.0
    %1620 = vmatpush1.msra.mxu0 0.0
    %1621 = vmatprep.subr.mxu0 0.0
    %1622 = vmatpush1.msra.mxu0 0.0
    %1623 = vmatprep.subr.mxu0 0.0
    %1624 = vmatpush1.msra.mxu0 0.0
    %1625 = vmatprep.subr.mxu0 0.0
    %1626 = vmatpush1.msra.mxu0 0.0
    %1627 = vmatprep.subr.mxu0 0.0
    %1628 = vmatpush1.msra.mxu0 0.0
    %1629 = vmatprep.subr.mxu0 0.0
    %1630 = vmatpush1.msra.mxu0 0.0
    %1631 = vmatprep.subr.mxu0 0.0
    %1632 = vmatpush1.msra.mxu0 0.0
    %1633 = vmatprep.mubr.f32.mxu0 0.0
    %1634 = vmatmul.mubr.f32.gmra.mrb[0].mxu0 %v1567
    %v1635 = vpop.f32.mrb[0].mxu0
    %v1636 = vadd.f32 0.0, %v1635
    %v1637 = vpop.f32.mrb[0].mxu0
    %1638 = vdwg.mxu0
    %v1640 = vrot.slane %v1636, 6
    %v1642 = vadd.f32 %v1563, %v1640
    %v1643 = vxor.u32 %v1562, 2147483648
    %v1644 = vmul.f32 %v1643, 1.442695
    %v1645 = vpow.pop %v1644
    %v1646 = vadd.f32 %v1645, 1.0
    %v1647 = vrcp.pop %v1646
    %v1648 = vmul.f32 1.0, %v1647
    %v1649 = vxor.u32 %v1642, 2147483648
    %v1650 = vmul.f32 %v1649, 1.442695
    %v1651 = vpow.pop %v1650
    %v1652 = vadd.f32 %v1651, 1.0
    %v1653 = vrcp.pop %v1652
    %v1654 = vmul.f32 1.0, %v1653
    %v1655 = vtanh.pop %v1562
    %v1656 = vtanh.pop %v1642
    %v1658 = vrot.slane %v1446, 6
    %v1660 = vmul.f32 %v1648, %v1658
    %1662 = vrot.lane.b32.xlu0 %v1655, 64
    %v1663 = vpop.permute.xlu0 %1662
    %v1665 = vmul.f32 %v1648, %v1663
    %1667 = vrot.lane.b32.xlu0 %v1665, 32
    %v1668 = vpop.permute.xlu0 %1667
    %v1670 = vadd.f32 %v1660, %v1668
    %v1672 = vrot.slane %v1460, 2
    %v1674 = vmul.f32 %v1654, %v1672
    %1676 = vrot.lane.b32.xlu0 %v1656, 64
    %v1677 = vpop.permute.xlu0 %1676
    %v1679 = vmul.f32 %v1654, %v1677
    %1681 = vrot.lane.b32.xlu0 %v1679, 32
    %v1682 = vpop.permute.xlu0 %1681
    %v1684 = vadd.f32 %v1674, %v1682
    %v1685 = vtanh.pop %v1670
    %1687 = vrot.lane.b32.xlu0 %v1685, 64
    %v1688 = vpop.permute.xlu0 %1687
    %v1690 = vmul.f32 %v1648, %v1688
    %v1691 = vtanh.pop %v1684
    %1693 = vrot.lane.b32.xlu0 %v1691, 64
    %v1694 = vpop.permute.xlu0 %1693
    %v1696 = vmul.f32 %v1654, %v1694
    %1698 = vrot.lane.b32.xlu0 %v1690, 32
    %v1699 = vpop.permute.xlu0 %1698
    %1701 = vst.msk [vmem:[#allocation2 + $0x8] sm:$0x30] %vm811, %v1699
    %1703 = vrot.lane.b32.xlu0 %v1696, 64
    %v1704 = vpop.permute.xlu0 %1703
    %1706 = vst.msk [vmem:[#allocation2] sm:$0xc] %vm817, %v1704
    %v1707 = vld [vmem:[#allocation3 + $0x10] sm:$0xc0]
    %v1708 = vrot.slane %v1690, 4
    %1709 = vrot.lane.b32.xlu0 %v1708, 32
    %v1710 = vpop.permute.xlu0 %1709
    %v1711 = vsel %vm160, %v1710, 0
    %1713 = vmatprep.subr.mxu0 0.0
    %1714 = vmatpush1.msra.mxu0 %v151
    %1715 = vmatprep.subr.mxu0 0.0
    %1716 = vmatpush1.msra.mxu0 %v152
    %1717 = vmatprep.subr.mxu0 0.0
    %1718 = vmatpush1.msra.mxu0 %v153
    %1719 = vmatprep.subr.mxu0 0.0
    %1720 = vmatpush1.msra.mxu0 %v154
    %1721 = vmatprep.subr.mxu0 0.0
    %1722 = vmatpush1.msra.mxu0 0.0
    %1723 = vmatprep.subr.mxu0 0.0
    %1724 = vmatpush1.msra.mxu0 0.0
    %1725 = vmatprep.subr.mxu0 0.0
    %1726 = vmatpush1.msra.mxu0 0.0
    %1727 = vmatprep.subr.mxu0 0.0
    %1728 = vmatpush1.msra.mxu0 0.0
    %1729 = vmatprep.subr.mxu0 0.0
    %1730 = vmatpush1.msra.mxu0 0.0
    %1731 = vmatprep.subr.mxu0 0.0
    %1732 = vmatpush1.msra.mxu0 0.0
    %1733 = vmatprep.subr.mxu0 0.0
    %1734 = vmatpush1.msra.mxu0 0.0
    %1735 = vmatprep.subr.mxu0 0.0
    %1736 = vmatpush1.msra.mxu0 0.0
    %1737 = vmatprep.subr.mxu0 0.0
    %1738 = vmatpush1.msra.mxu0 0.0
    %1739 = vmatprep.subr.mxu0 0.0
    %1740 = vmatpush1.msra.mxu0 0.0
    %1741 = vmatprep.subr.mxu0 0.0
    %1742 = vmatpush1.msra.mxu0 0.0
    %1743 = vmatprep.subr.mxu0 0.0
    %1744 = vmatpush1.msra.mxu0 0.0
    %1745 = vmatprep.subr.mxu0 0.0
    %1746 = vmatpush1.msra.mxu0 0.0
    %1747 = vmatprep.subr.mxu0 0.0
    %1748 = vmatpush1.msra.mxu0 0.0
    %1749 = vmatprep.subr.mxu0 0.0
    %1750 = vmatpush1.msra.mxu0 0.0
    %1751 = vmatprep.subr.mxu0 0.0
    %1752 = vmatpush1.msra.mxu0 0.0
    %1753 = vmatprep.subr.mxu0 0.0
    %1754 = vmatpush1.msra.mxu0 0.0
    %1755 = vmatprep.subr.mxu0 0.0
    %1756 = vmatpush1.msra.mxu0 0.0
    %1757 = vmatprep.subr.mxu0 0.0
    %1758 = vmatpush1.msra.mxu0 0.0
    %1759 = vmatprep.subr.mxu0 0.0
    %1760 = vmatpush1.msra.mxu0 0.0
    %1761 = vmatprep.subr.mxu0 0.0
    %1762 = vmatpush1.msra.mxu0 0.0
    %1763 = vmatprep.subr.mxu0 0.0
    %1764 = vmatpush1.msra.mxu0 0.0
    %1765 = vmatprep.subr.mxu0 0.0
    %1766 = vmatpush1.msra.mxu0 0.0
    %1767 = vmatprep.subr.mxu0 0.0
    %1768 = vmatpush1.msra.mxu0 0.0
    %1769 = vmatprep.subr.mxu0 0.0
    %1770 = vmatpush1.msra.mxu0 0.0
    %1771 = vmatprep.subr.mxu0 0.0
    %1772 = vmatpush1.msra.mxu0 0.0
    %1773 = vmatprep.subr.mxu0 0.0
    %1774 = vmatpush1.msra.mxu0 0.0
    %1775 = vmatprep.subr.mxu0 0.0
    %1776 = vmatpush1.msra.mxu0 0.0
    %1777 = vmatprep.mubr.f32.mxu0 0.0
    %1778 = vmatmul.mubr.f32.gmra.mrb[0].mxu0 %v1711
    %v1779 = vpop.f32.mrb[0].mxu0
    %v1780 = vadd.f32 0.0, %v1779
    %v1781 = vpop.f32.mrb[0].mxu0
    %1782 = vdwg.mxu0
    %v1784 = vrot.slane %v1780, 2
    %v1786 = vadd.f32 %v1707, %v1784
    %v1787 = vld [vmem:[#allocation3 + $0x8] sm:$0x3]
    %v1788 = vrot.slane %v1696, 2
    %1789 = vrot.lane.b32.xlu0 %v1788, 32
    %v1790 = vpop.permute.xlu0 %1789
    %v1791 = vsel %vm160, %v1790, 0
    %1793 = vmatprep.subr.mxu0 0.0
    %1794 = vmatpush1.msra.mxu0 %v155
    %1795 = vmatprep.subr.mxu0 0.0
    %1796 = vmatpush1.msra.mxu0 %v156
    %1797 = vmatprep.subr.mxu0 0.0
    %1798 = vmatpush1.msra.mxu0 %v157
    %1799 = vmatprep.subr.mxu0 0.0
    %1800 = vmatpush1.msra.mxu0 %v158
    %1801 = vmatprep.subr.mxu0 0.0
    %1802 = vmatpush1.msra.mxu0 0.0
    %1803 = vmatprep.subr.mxu0 0.0
    %1804 = vmatpush1.msra.mxu0 0.0
    %1805 = vmatprep.subr.mxu0 0.0
    %1806 = vmatpush1.msra.mxu0 0.0
    %1807 = vmatprep.subr.mxu0 0.0
    %1808 = vmatpush1.msra.mxu0 0.0
    %1809 = vmatprep.subr.mxu0 0.0
    %1810 = vmatpush1.msra.mxu0 0.0
    %1811 = vmatprep.subr.mxu0 0.0
    %1812 = vmatpush1.msra.mxu0 0.0
    %1813 = vmatprep.subr.mxu0 0.0
    %1814 = vmatpush1.msra.mxu0 0.0
    %1815 = vmatprep.subr.mxu0 0.0
    %1816 = vmatpush1.msra.mxu0 0.0
    %1817 = vmatprep.subr.mxu0 0.0
    %1818 = vmatpush1.msra.mxu0 0.0
    %1819 = vmatprep.subr.mxu0 0.0
    %1820 = vmatpush1.msra.mxu0 0.0
    %1821 = vmatprep.subr.mxu0 0.0
    %1822 = vmatpush1.msra.mxu0 0.0
    %1823 = vmatprep.subr.mxu0 0.0
    %1824 = vmatpush1.msra.mxu0 0.0
    %1825 = vmatprep.subr.mxu0 0.0
    %1826 = vmatpush1.msra.mxu0 0.0
    %1827 = vmatprep.subr.mxu0 0.0
    %1828 = vmatpush1.msra.mxu0 0.0
    %1829 = vmatprep.subr.mxu0 0.0
    %1830 = vmatpush1.msra.mxu0 0.0
    %1831 = vmatprep.subr.mxu0 0.0
    %1832 = vmatpush1.msra.mxu0 0.0
    %1833 = vmatprep.subr.mxu0 0.0
    %1834 = vmatpush1.msra.mxu0 0.0
    %1835 = vmatprep.subr.mxu0 0.0
    %1836 = vmatpush1.msra.mxu0 0.0
    %1837 = vmatprep.subr.mxu0 0.0
    %1838 = vmatpush1.msra.mxu0 0.0
    %1839 = vmatprep.subr.mxu0 0.0
    %1840 = vmatpush1.msra.mxu0 0.0
    %1841 = vmatprep.subr.mxu0 0.0
    %1842 = vmatpush1.msra.mxu0 0.0
    %1843 = vmatprep.subr.mxu0 0.0
    %1844 = vmatpush1.msra.mxu0 0.0
    %1845 = vmatprep.subr.mxu0 0.0
    %1846 = vmatpush1.msra.mxu0 0.0
    %1847 = vmatprep.subr.mxu0 0.0
    %1848 = vmatpush1.msra.mxu0 0.0
    %1849 = vmatprep.subr.mxu0 0.0
    %1850 = vmatpush1.msra.mxu0 0.0
    %1851 = vmatprep.subr.mxu0 0.0
    %1852 = vmatpush1.msra.mxu0 0.0
    %1853 = vmatprep.subr.mxu0 0.0
    %1854 = vmatpush1.msra.mxu0 0.0
    %1855 = vmatprep.subr.mxu0 0.0
    %1856 = vmatpush1.msra.mxu0 0.0
    %1857 = vmatprep.mubr.f32.mxu0 0.0
    %1858 = vmatmul.mubr.f32.gmra.mrb[0].mxu0 %v1791
    %v1859 = vpop.f32.mrb[0].mxu0
    %v1860 = vadd.f32 0.0, %v1859
    %v1861 = vpop.f32.mrb[0].mxu0
    %1862 = vdwg.mxu0
    %v1863 = vadd.f32 %v1787, %v1860
    %v1864 = vxor.u32 %v1786, 2147483648
    %v1865 = vmul.f32 %v1864, 1.442695
    %v1866 = vpow.pop %v1865
    %v1867 = vadd.f32 %v1866, 1.0
    %v1868 = vrcp.pop %v1867
    %v1869 = vmul.f32 1.0, %v1868
    %v1870 = vxor.u32 %v1863, 2147483648
    %v1871 = vmul.f32 %v1870, 1.442695
    %v1872 = vpow.pop %v1871
    %v1873 = vadd.f32 %v1872, 1.0
    %v1874 = vrcp.pop %v1873
    %v1875 = vmul.f32 1.0, %v1874
    %v1876 = vtanh.pop %v1786
    %v1877 = vtanh.pop %v1863
    %v1879 = vrot.slane %v1670, 6
    %v1881 = vmul.f32 %v1869, %v1879
    %1883 = vrot.lane.b32.xlu0 %v1876, 64
    %v1884 = vpop.permute.xlu0 %1883
    %v1886 = vmul.f32 %v1869, %v1884
    %1888 = vrot.lane.b32.xlu0 %v1886, 32
    %v1889 = vpop.permute.xlu0 %1888
    %v1891 = vadd.f32 %v1881, %v1889
    %v1893 = vrot.slane %v1684, 2
    %v1895 = vmul.f32 %v1875, %v1893
    %1897 = vrot.lane.b32.xlu0 %v1877, 64
    %v1898 = vpop.permute.xlu0 %1897
    %v1900 = vmul.f32 %v1875, %v1898
    %1902 = vrot.lane.b32.xlu0 %v1900, 32
    %v1903 = vpop.permute.xlu0 %1902
    %v1905 = vadd.f32 %v1895, %v1903
    %v1906 = vtanh.pop %v1891
    %1908 = vrot.lane.b32.xlu0 %v1906, 64
    %v1909 = vpop.permute.xlu0 %1908
    %v1911 = vmul.f32 %v1869, %v1909
    %v1912 = vtanh.pop %v1905
    %1914 = vrot.lane.b32.xlu0 %v1912, 64
    %v1915 = vpop.permute.xlu0 %1914
    %v1917 = vmul.f32 %v1875, %v1915
    %1919 = vrot.lane.b32.xlu0 %v1911, 32
    %v1920 = vpop.permute.xlu0 %1919
    %1922 = vst.msk [vmem:[#allocation2 + $0x8] sm:$0xc0] %vm1034, %v1920
    %1924 = vrot.lane.b32.xlu0 %v1917, 64
    %v1925 = vpop.permute.xlu0 %1924
    %1927 = vst.msk [vmem:[#allocation2] sm:$0x3] %vm1040, %v1925
    %v1928 = vld [vmem:[#allocation2] sm:$0xff]
    %v1929 = vld [vmem:[#allocation2 + $0x8] sm:$0xff]
    %vm1930 = vcmp.ge.f32.partialorder %v1928, 0.0
    %vm1931 = vcmp.ge.f32.partialorder %v1929, 0.0
    %v1932 = vmul.f32 %v1928, 0.01
    %v1933 = vmul.f32 %v1929, 0.01
    %v1934 = vsel %vm1930, %v1928, %v1932
    %v1935 = vsel %vm1931, %v1929, %v1933
    %v1936 = vld [vmem:[%s5] sm:$0xff]
    %v1937 = vld [vmem:[%s5 + $0x8] sm:$0xff]
    %v1938 = vld [vmem:[%s5 + $0x10] sm:$0xff]
    %v1939 = vld [vmem:[%s5 + $0x18] sm:$0xff]
    %v1940 = vld [vmem:[%s5 + $0x20] sm:$0xff]
    %v1941 = vld [vmem:[%s5 + $0x28] sm:$0xff]
    %v1942 = vld [vmem:[%s5 + $0x30] sm:$0xff]
    %v1943 = vld [vmem:[%s5 + $0x38] sm:$0xff]
    %v1944 = vld [vmem:[%s7] sm:$0x1]
    %v1946 = vlaneseq
    %v1947 = vshrl.u32 %v1946, 7
    %v1948 = vsub.s32 0, %v1947
    %v1949 = vrot.slane %v1944, %v1948
    %vm1951 = vcmask 523264
    %v1953 = vsel %vm1951, %v1934, 0
    %v1956 = vsel %vm1951, %v1935, 0
    %1958 = vmatprep.subr.mxu0 0.0
    %1959 = vmatpush1.msra.mxu0 %v1936
    %1960 = vmatprep.subr.mxu0 0.0
    %1961 = vmatpush1.msra.mxu0 %v1937
    %1962 = vmatprep.subr.mxu0 0.0
    %1963 = vmatpush1.msra.mxu0 %v1938
    %1964 = vmatprep.subr.mxu0 0.0
    %1965 = vmatpush1.msra.mxu0 %v1939
    %1966 = vmatprep.subr.mxu0 0.0
    %1967 = vmatpush1.msra.mxu0 %v1940
    %1968 = vmatprep.subr.mxu0 0.0
    %1969 = vmatpush1.msra.mxu0 %v1941
    %1970 = vmatprep.subr.mxu0 0.0
    %1971 = vmatpush1.msra.mxu0 %v1942
    %1972 = vmatprep.subr.mxu0 0.0
    %1973 = vmatpush1.msra.mxu0 %v1943
    %1974 = vmatprep.subr.mxu0 0.0
    %1975 = vmatpush1.msra.mxu0 0.0
    %1976 = vmatprep.subr.mxu0 0.0
    %1977 = vmatpush1.msra.mxu0 0.0
    %1978 = vmatprep.subr.mxu0 0.0
    %1979 = vmatpush1.msra.mxu0 0.0
    %1980 = vmatprep.subr.mxu0 0.0
    %1981 = vmatpush1.msra.mxu0 0.0
    %1982 = vmatprep.subr.mxu0 0.0
    %1983 = vmatpush1.msra.mxu0 0.0
    %1984 = vmatprep.subr.mxu0 0.0
    %1985 = vmatpush1.msra.mxu0 0.0
    %1986 = vmatprep.subr.mxu0 0.0
    %1987 = vmatpush1.msra.mxu0 0.0
    %1988 = vmatprep.subr.mxu0 0.0
    %1989 = vmatpush1.msra.mxu0 0.0
    %1990 = vmatprep.subr.mxu0 0.0
    %1991 = vmatpush1.msra.mxu0 0.0
    %1992 = vmatprep.subr.mxu0 0.0
    %1993 = vmatpush1.msra.mxu0 0.0
    %1994 = vmatprep.subr.mxu0 0.0
    %1995 = vmatpush1.msra.mxu0 0.0
    %1996 = vmatprep.subr.mxu0 0.0
    %1997 = vmatpush1.msra.mxu0 0.0
    %1998 = vmatprep.subr.mxu0 0.0
    %1999 = vmatpush1.msra.mxu0 0.0
    %2000 = vmatprep.subr.mxu0 0.0
    %2001 = vmatpush1.msra.mxu0 0.0
    %2002 = vmatprep.subr.mxu0 0.0
    %2003 = vmatpush1.msra.mxu0 0.0
    %2004 = vmatprep.subr.mxu0 0.0
    %2005 = vmatpush1.msra.mxu0 0.0
    %2006 = vmatprep.subr.mxu0 0.0
    %2007 = vmatpush1.msra.mxu0 0.0
    %2008 = vmatprep.subr.mxu0 0.0
    %2009 = vmatpush1.msra.mxu0 0.0
    %2010 = vmatprep.subr.mxu0 0.0
    %2011 = vmatpush1.msra.mxu0 0.0
    %2012 = vmatprep.subr.mxu0 0.0
    %2013 = vmatpush1.msra.mxu0 0.0
    %2014 = vmatprep.subr.mxu0 0.0
    %2015 = vmatpush1.msra.mxu0 0.0
    %2016 = vmatprep.subr.mxu0 0.0
    %2017 = vmatpush1.msra.mxu0 0.0
    %2018 = vmatprep.subr.mxu0 0.0
    %2019 = vmatpush1.msra.mxu0 0.0
    %2020 = vmatprep.subr.mxu0 0.0
    %2021 = vmatpush1.msra.mxu0 0.0
    %2022 = vmatprep.mubr.f32.mxu0 0.0
    %2023 = vmatmul.mubr.f32.gmra.mrb[0].mxu0 %v1953
    %v2024 = vpop.f32.mrb[0].mxu0
    %v2025 = vadd.f32 %v1949, %v2024
    %v2026 = vpop.f32.mrb[0].mxu0
    %2027 = vmatprep.mubr.f32.mxu0 0.0
    %2028 = vmatmul.mubr.f32.gmra.mrb[0].mxu0 %v1956
    %v2029 = vpop.f32.mrb[0].mxu0
    %v2030 = vadd.f32 %v1949, %v2029
    %v2031 = vpop.f32.mrb[0].mxu0
    %2032 = vdwg.mxu0
    %vm2033 = vcmask 785408
    %2034 = vst.msk [vmem:[#allocation3] sm:$0xff] %vm2033, %v2025
    %2035 = vst.msk [vmem:[#allocation3 + $0x10] sm:$0xff] %vm2033, %v2030
    %v2036 = vld [vmem:[%s6] sm:$0xff]
    %v2037 = vld [vmem:[%s6 + $0x8] sm:$0xff]
    %v2038 = vld [vmem:[%s6 + $0x10] sm:$0xff]
    %v2039 = vld [vmem:[%s6 + $0x18] sm:$0xff]
    %v2040 = vld [vmem:[%s8] sm:$0x1]
    %v2042 = vlaneseq
    %v2043 = vshrl.u32 %v2042, 7
    %v2044 = vsub.s32 0, %v2043
    %v2045 = vrot.slane %v2040, %v2044
    %2046 = vmatprep.subr.mxu0 0.0
    %2047 = vmatpush1.msra.mxu0 %v2036
    %2048 = vmatprep.subr.mxu0 0.0
    %2049 = vmatpush1.msra.mxu0 %v2037
    %2050 = vmatprep.subr.mxu0 0.0
    %2051 = vmatpush1.msra.mxu0 %v2038
    %2052 = vmatprep.subr.mxu0 0.0
    %2053 = vmatpush1.msra.mxu0 %v2039
    %2054 = vmatprep.subr.mxu0 0.0
    %2055 = vmatpush1.msra.mxu0 0.0
    %2056 = vmatprep.subr.mxu0 0.0
    %2057 = vmatpush1.msra.mxu0 0.0
    %2058 = vmatprep.subr.mxu0 0.0
    %2059 = vmatpush1.msra.mxu0 0.0
    %2060 = vmatprep.subr.mxu0 0.0
    %2061 = vmatpush1.msra.mxu0 0.0
    %2062 = vmatprep.subr.mxu0 0.0
    %2063 = vmatpush1.msra.mxu0 0.0
    %2064 = vmatprep.subr.mxu0 0.0
    %2065 = vmatpush1.msra.mxu0 0.0
    %2066 = vmatprep.subr.mxu0 0.0
    %2067 = vmatpush1.msra.mxu0 0.0
    %2068 = vmatprep.subr.mxu0 0.0
    %2069 = vmatpush1.msra.mxu0 0.0
    %2070 = vmatprep.subr.mxu0 0.0
    %2071 = vmatpush1.msra.mxu0 0.0
    %2072 = vmatprep.subr.mxu0 0.0
    %2073 = vmatpush1.msra.mxu0 0.0
    %2074 = vmatprep.subr.mxu0 0.0
    %2075 = vmatpush1.msra.mxu0 0.0
    %2076 = vmatprep.subr.mxu0 0.0
    %2077 = vmatpush1.msra.mxu0 0.0
    %2078 = vmatprep.subr.mxu0 0.0
    %2079 = vmatpush1.msra.mxu0 0.0
    %2080 = vmatprep.subr.mxu0 0.0
    %2081 = vmatpush1.msra.mxu0 0.0
    %2082 = vmatprep.subr.mxu0 0.0
    %2083 = vmatpush1.msra.mxu0 0.0
    %2084 = vmatprep.subr.mxu0 0.0
    %2085 = vmatpush1.msra.mxu0 0.0
    %2086 = vmatprep.subr.mxu0 0.0
    %2087 = vmatpush1.msra.mxu0 0.0
    %2088 = vmatprep.subr.mxu0 0.0
    %2089 = vmatpush1.msra.mxu0 0.0
    %2090 = vmatprep.subr.mxu0 0.0
    %2091 = vmatpush1.msra.mxu0 0.0
    %2092 = vmatprep.subr.mxu0 0.0
    %2093 = vmatpush1.msra.mxu0 0.0
    %2094 = vmatprep.subr.mxu0 0.0
    %2095 = vmatpush1.msra.mxu0 0.0
    %2096 = vmatprep.subr.mxu0 0.0
    %2097 = vmatpush1.msra.mxu0 0.0
    %2098 = vmatprep.subr.mxu0 0.0
    %2099 = vmatpush1.msra.mxu0 0.0
    %2100 = vmatprep.subr.mxu0 0.0
    %2101 = vmatpush1.msra.mxu0 0.0
    %2102 = vmatprep.subr.mxu0 0.0
    %2103 = vmatpush1.msra.mxu0 0.0
    %2104 = vmatprep.subr.mxu0 0.0
    %2105 = vmatpush1.msra.mxu0 0.0
    %2106 = vmatprep.subr.mxu0 0.0
    %2107 = vmatpush1.msra.mxu0 0.0
    %2108 = vmatprep.subr.mxu0 0.0
    %2109 = vmatpush1.msra.mxu0 0.0
    %2110 = vmatprep.mubr.f32.mxu0 0.0
    %2111 = vmatmul.mubr.f32.gmra.mrb[0].mxu0 %v162
    %v2112 = vpop.f32.mrb[0].mxu0
    %v2113 = vadd.f32 0.0, %v2112
    %v2114 = vpop.f32.mrb[0].mxu0
    %2115 = vdwg.mxu0
    %v2116 = vld [vmem:[#allocation3] sm:$0x3]
    %v2117 = vadd.f32 %v2116, %v2113
    %v2118 = vxor.u32 %v2117, 2147483648
    %v2119 = vmul.f32 %v2118, 1.442695
    %v2120 = vpow.pop %v2119
    %v2121 = vadd.f32 %v2120, 1.0
    %v2122 = vrcp.pop %v2121
    %v2123 = vmul.f32 1.0, %v2122
    %2124 = vrot.lane.b32.xlu0 %v2045, 64
    %v2125 = vpop.permute.xlu0 %2124
    %v2127 = vadd.f32 %v2113, %v2125
    %2129 = vrot.lane.b32.xlu0 %v2127, 64
    %v2130 = vpop.permute.xlu0 %2129
    %v2132 = vmul.f32 %v2123, %v2130
    %2134 = vrot.lane.b32.xlu0 %v2132, 64
    %v2135 = vpop.permute.xlu0 %2134
    %v2137 = vadd.f32 %v2116, %v2135
    %v2138 = vtanh.pop %v2137
    %v2139 = vsub.f32 1.0, %v2123
    %2141 = vrot.lane.b32.xlu0 %v2138, 96
    %v2142 = vpop.permute.xlu0 %2141
    %v2144 = vmul.f32 %v2139, %v2142
    %v2145 = vmul.f32 %v2123, 0.0
    %v2146 = vadd.f32 %v2144, %v2145
    %2148 = vrot.lane.b32.xlu0 %v2146, 96
    %v2149 = vpop.permute.xlu0 %2148
    %v2150 = vsel %vm160, %v2149, 0
    %2152 = vmatprep.subr.mxu0 0.0
    %2153 = vmatpush1.msra.mxu0 %v2036
    %2154 = vmatprep.subr.mxu0 0.0
    %2155 = vmatpush1.msra.mxu0 %v2037
    %2156 = vmatprep.subr.mxu0 0.0
    %2157 = vmatpush1.msra.mxu0 %v2038
    %2158 = vmatprep.subr.mxu0 0.0
    %2159 = vmatpush1.msra.mxu0 %v2039
    %2160 = vmatprep.subr.mxu0 0.0
    %2161 = vmatpush1.msra.mxu0 0.0
    %2162 = vmatprep.subr.mxu0 0.0
    %2163 = vmatpush1.msra.mxu0 0.0
    %2164 = vmatprep.subr.mxu0 0.0
    %2165 = vmatpush1.msra.mxu0 0.0
    %2166 = vmatprep.subr.mxu0 0.0
    %2167 = vmatpush1.msra.mxu0 0.0
    %2168 = vmatprep.subr.mxu0 0.0
    %2169 = vmatpush1.msra.mxu0 0.0
    %2170 = vmatprep.subr.mxu0 0.0
    %2171 = vmatpush1.msra.mxu0 0.0
    %2172 = vmatprep.subr.mxu0 0.0
    %2173 = vmatpush1.msra.mxu0 0.0
    %2174 = vmatprep.subr.mxu0 0.0
    %2175 = vmatpush1.msra.mxu0 0.0
    %2176 = vmatprep.subr.mxu0 0.0
    %2177 = vmatpush1.msra.mxu0 0.0
    %2178 = vmatprep.subr.mxu0 0.0
    %2179 = vmatpush1.msra.mxu0 0.0
    %2180 = vmatprep.subr.mxu0 0.0
    %2181 = vmatpush1.msra.mxu0 0.0
    %2182 = vmatprep.subr.mxu0 0.0
    %2183 = vmatpush1.msra.mxu0 0.0
    %2184 = vmatprep.subr.mxu0 0.0
    %2185 = vmatpush1.msra.mxu0 0.0
    %2186 = vmatprep.subr.mxu0 0.0
    %2187 = vmatpush1.msra.mxu0 0.0
    %2188 = vmatprep.subr.mxu0 0.0
    %2189 = vmatpush1.msra.mxu0 0.0
    %2190 = vmatprep.subr.mxu0 0.0
    %2191 = vmatpush1.msra.mxu0 0.0
    %2192 = vmatprep.subr.mxu0 0.0
    %2193 = vmatpush1.msra.mxu0 0.0
    %2194 = vmatprep.subr.mxu0 0.0
    %2195 = vmatpush1.msra.mxu0 0.0
    %2196 = vmatprep.subr.mxu0 0.0
    %2197 = vmatpush1.msra.mxu0 0.0
    %2198 = vmatprep.subr.mxu0 0.0
    %2199 = vmatpush1.msra.mxu0 0.0
    %2200 = vmatprep.subr.mxu0 0.0
    %2201 = vmatpush1.msra.mxu0 0.0
    %2202 = vmatprep.subr.mxu0 0.0
    %2203 = vmatpush1.msra.mxu0 0.0
    %2204 = vmatprep.subr.mxu0 0.0
    %2205 = vmatpush1.msra.mxu0 0.0
    %2206 = vmatprep.subr.mxu0 0.0
    %2207 = vmatpush1.msra.mxu0 0.0
    %2208 = vmatprep.subr.mxu0 0.0
    %2209 = vmatpush1.msra.mxu0 0.0
    %2210 = vmatprep.subr.mxu0 0.0
    %2211 = vmatpush1.msra.mxu0 0.0
    %2212 = vmatprep.subr.mxu0 0.0
    %2213 = vmatpush1.msra.mxu0 0.0
    %2214 = vmatprep.subr.mxu0 0.0
    %2215 = vmatpush1.msra.mxu0 0.0
    %2216 = vmatprep.mubr.f32.mxu0 0.0
    %2217 = vmatmul.mubr.f32.gmra.mrb[0].mxu0 %v2150
    %v2218 = vpop.f32.mrb[0].mxu0
    %v2219 = vadd.f32 0.0, %v2218
    %v2220 = vpop.f32.mrb[0].mxu0
    %2221 = vdwg.mxu0
    %v2222 = vld [vmem:[#allocation3] sm:$0xc]
    %v2224 = vrot.slane %v2219, 6
    %v2226 = vadd.f32 %v2222, %v2224
    %v2227 = vxor.u32 %v2226, 2147483648
    %v2228 = vmul.f32 %v2227, 1.442695
    %v2229 = vpow.pop %v2228
    %v2230 = vadd.f32 %v2229, 1.0
    %v2231 = vrcp.pop %v2230
    %v2232 = vmul.f32 1.0, %v2231
    %v2233 = vadd.f32 %v2219, %v2125
    %v2235 = vrot.slane %v2233, 6
    %2236 = vrot.lane.b32.xlu0 %v2235, 64
    %v2237 = vpop.permute.xlu0 %2236
    %v2239 = vmul.f32 %v2232, %v2237
    %2241 = vrot.lane.b32.xlu0 %v2239, 64
    %v2242 = vpop.permute.xlu0 %2241
    %v2244 = vadd.f32 %v2222, %v2242
    %v2245 = vtanh.pop %v2244
    %v2246 = vsub.f32 1.0, %v2232
    %2248 = vrot.lane.b32.xlu0 %v2245, 96
    %v2249 = vpop.permute.xlu0 %2248
    %v2251 = vmul.f32 %v2246, %v2249
    %v2252 = vrot.slane %v2146, 6
    %v2254 = vmul.f32 %v2232, %v2252
    %v2255 = vadd.f32 %v2251, %v2254
    %v2257 = vrot.slane %v2255, 2
    %2258 = vrot.lane.b32.xlu0 %v2257, 96
    %v2259 = vpop.permute.xlu0 %2258
    %v2260 = vsel %vm160, %v2259, 0
    %2262 = vmatprep.subr.mxu0 0.0
    %2263 = vmatpush1.msra.mxu0 %v2036
    %2264 = vmatprep.subr.mxu0 0.0
    %2265 = vmatpush1.msra.mxu0 %v2037
    %2266 = vmatprep.subr.mxu0 0.0
    %2267 = vmatpush1.msra.mxu0 %v2038
    %2268 = vmatprep.subr.mxu0 0.0
    %2269 = vmatpush1.msra.mxu0 %v2039
    %2270 = vmatprep.subr.mxu0 0.0
    %2271 = vmatpush1.msra.mxu0 0.0
    %2272 = vmatprep.subr.mxu0 0.0
    %2273 = vmatpush1.msra.mxu0 0.0
    %2274 = vmatprep.subr.mxu0 0.0
    %2275 = vmatpush1.msra.mxu0 0.0
    %2276 = vmatprep.subr.mxu0 0.0
    %2277 = vmatpush1.msra.mxu0 0.0
    %2278 = vmatprep.subr.mxu0 0.0
    %2279 = vmatpush1.msra.mxu0 0.0
    %2280 = vmatprep.subr.mxu0 0.0
    %2281 = vmatpush1.msra.mxu0 0.0
    %2282 = vmatprep.subr.mxu0 0.0
    %2283 = vmatpush1.msra.mxu0 0.0
    %2284 = vmatprep.subr.mxu0 0.0
    %2285 = vmatpush1.msra.mxu0 0.0
    %2286 = vmatprep.subr.mxu0 0.0
    %2287 = vmatpush1.msra.mxu0 0.0
    %2288 = vmatprep.subr.mxu0 0.0
    %2289 = vmatpush1.msra.mxu0 0.0
    %2290 = vmatprep.subr.mxu0 0.0
    %2291 = vmatpush1.msra.mxu0 0.0
    %2292 = vmatprep.subr.mxu0 0.0
    %2293 = vmatpush1.msra.mxu0 0.0
    %2294 = vmatprep.subr.mxu0 0.0
    %2295 = vmatpush1.msra.mxu0 0.0
    %2296 = vmatprep.subr.mxu0 0.0
    %2297 = vmatpush1.msra.mxu0 0.0
    %2298 = vmatprep.subr.mxu0 0.0
    %2299 = vmatpush1.msra.mxu0 0.0
    %2300 = vmatprep.subr.mxu0 0.0
    %2301 = vmatpush1.msra.mxu0 0.0
    %2302 = vmatprep.subr.mxu0 0.0
    %2303 = vmatpush1.msra.mxu0 0.0
    %2304 = vmatprep.subr.mxu0 0.0
    %2305 = vmatpush1.msra.mxu0 0.0
    %2306 = vmatprep.subr.mxu0 0.0
    %2307 = vmatpush1.msra.mxu0 0.0
    %2308 = vmatprep.subr.mxu0 0.0
    %2309 = vmatpush1.msra.mxu0 0.0
    %2310 = vmatprep.subr.mxu0 0.0
    %2311 = vmatpush1.msra.mxu0 0.0
    %2312 = vmatprep.subr.mxu0 0.0
    %2313 = vmatpush1.msra.mxu0 0.0
    %2314 = vmatprep.subr.mxu0 0.0
    %2315 = vmatpush1.msra.mxu0 0.0
    %2316 = vmatprep.subr.mxu0 0.0
    %2317 = vmatpush1.msra.mxu0 0.0
    %2318 = vmatprep.subr.mxu0 0.0
    %2319 = vmatpush1.msra.mxu0 0.0
    %2320 = vmatprep.subr.mxu0 0.0
    %2321 = vmatpush1.msra.mxu0 0.0
    %2322 = vmatprep.subr.mxu0 0.0
    %2323 = vmatpush1.msra.mxu0 0.0
    %2324 = vmatprep.subr.mxu0 0.0
    %2325 = vmatpush1.msra.mxu0 0.0
    %2326 = vmatprep.mubr.f32.mxu0 0.0
    %2327 = vmatmul.mubr.f32.gmra.mrb[0].mxu0 %v2260
    %v2328 = vpop.f32.mrb[0].mxu0
    %v2329 = vadd.f32 0.0, %v2328
    %v2330 = vpop.f32.mrb[0].mxu0
    %2331 = vdwg.mxu0
    %v2332 = vld [vmem:[#allocation3] sm:$0x30]
    %v2334 = vrot.slane %v2329, 4
    %v2336 = vadd.f32 %v2332, %v2334
    %v2337 = vxor.u32 %v2336, 2147483648
    %v2338 = vmul.f32 %v2337, 1.442695
    %v2339 = vpow.pop %v2338
    %v2340 = vadd.f32 %v2339, 1.0
    %v2341 = vrcp.pop %v2340
    %v2342 = vmul.f32 1.0, %v2341
    %v2343 = vadd.f32 %v2329, %v2125
    %v2345 = vrot.slane %v2343, 4
    %2346 = vrot.lane.b32.xlu0 %v2345, 64
    %v2347 = vpop.permute.xlu0 %2346
    %v2349 = vmul.f32 %v2342, %v2347
    %2351 = vrot.lane.b32.xlu0 %v2349, 64
    %v2352 = vpop.permute.xlu0 %2351
    %v2354 = vadd.f32 %v2332, %v2352
    %v2355 = vtanh.pop %v2354
    %v2356 = vsub.f32 1.0, %v2342
    %2358 = vrot.lane.b32.xlu0 %v2355, 96
    %v2359 = vpop.permute.xlu0 %2358
    %v2361 = vmul.f32 %v2356, %v2359
    %v2362 = vrot.slane %v2255, 6
    %v2364 = vmul.f32 %v2342, %v2362
    %v2365 = vadd.f32 %v2361, %v2364
    %v2367 = vrot.slane %v2365, 4
    %2368 = vrot.lane.b32.xlu0 %v2367, 96
    %v2369 = vpop.permute.xlu0 %2368
    %v2370 = vsel %vm160, %v2369, 0
    %2372 = vmatprep.subr.mxu0 0.0
    %2373 = vmatpush1.msra.mxu0 %v2036
    %2374 = vmatprep.subr.mxu0 0.0
    %2375 = vmatpush1.msra.mxu0 %v2037
    %2376 = vmatprep.subr.mxu0 0.0
    %2377 = vmatpush1.msra.mxu0 %v2038
    %2378 = vmatprep.subr.mxu0 0.0
    %2379 = vmatpush1.msra.mxu0 %v2039
    %2380 = vmatprep.subr.mxu0 0.0
    %2381 = vmatpush1.msra.mxu0 0.0
    %2382 = vmatprep.subr.mxu0 0.0
    %2383 = vmatpush1.msra.mxu0 0.0
    %2384 = vmatprep.subr.mxu0 0.0
    %2385 = vmatpush1.msra.mxu0 0.0
    %2386 = vmatprep.subr.mxu0 0.0
    %2387 = vmatpush1.msra.mxu0 0.0
    %2388 = vmatprep.subr.mxu0 0.0
    %2389 = vmatpush1.msra.mxu0 0.0
    %2390 = vmatprep.subr.mxu0 0.0
    %2391 = vmatpush1.msra.mxu0 0.0
    %2392 = vmatprep.subr.mxu0 0.0
    %2393 = vmatpush1.msra.mxu0 0.0
    %2394 = vmatprep.subr.mxu0 0.0
    %2395 = vmatpush1.msra.mxu0 0.0
    %2396 = vmatprep.subr.mxu0 0.0
    %2397 = vmatpush1.msra.mxu0 0.0
    %2398 = vmatprep.subr.mxu0 0.0
    %2399 = vmatpush1.msra.mxu0 0.0
    %2400 = vmatprep.subr.mxu0 0.0
    %2401 = vmatpush1.msra.mxu0 0.0
    %2402 = vmatprep.subr.mxu0 0.0
    %2403 = vmatpush1.msra.mxu0 0.0
    %2404 = vmatprep.subr.mxu0 0.0
    %2405 = vmatpush1.msra.mxu0 0.0
    %2406 = vmatprep.subr.mxu0 0.0
    %2407 = vmatpush1.msra.mxu0 0.0
    %2408 = vmatprep.subr.mxu0 0.0
    %2409 = vmatpush1.msra.mxu0 0.0
    %2410 = vmatprep.subr.mxu0 0.0
    %2411 = vmatpush1.msra.mxu0 0.0
    %2412 = vmatprep.subr.mxu0 0.0
    %2413 = vmatpush1.msra.mxu0 0.0
    %2414 = vmatprep.subr.mxu0 0.0
    %2415 = vmatpush1.msra.mxu0 0.0
    %2416 = vmatprep.subr.mxu0 0.0
    %2417 = vmatpush1.msra.mxu0 0.0
    %2418 = vmatprep.subr.mxu0 0.0
    %2419 = vmatpush1.msra.mxu0 0.0
    %2420 = vmatprep.subr.mxu0 0.0
    %2421 = vmatpush1.msra.mxu0 0.0
    %2422 = vmatprep.subr.mxu0 0.0
    %2423 = vmatpush1.msra.mxu0 0.0
    %2424 = vmatprep.subr.mxu0 0.0
    %2425 = vmatpush1.msra.mxu0 0.0
    %2426 = vmatprep.subr.mxu0 0.0
    %2427 = vmatpush1.msra.mxu0 0.0
    %2428 = vmatprep.subr.mxu0 0.0
    %2429 = vmatpush1.msra.mxu0 0.0
    %2430 = vmatprep.subr.mxu0 0.0
    %2431 = vmatpush1.msra.mxu0 0.0
    %2432 = vmatprep.subr.mxu0 0.0
    %2433 = vmatpush1.msra.mxu0 0.0
    %2434 = vmatprep.subr.mxu0 0.0
    %2435 = vmatpush1.msra.mxu0 0.0
    %2436 = vmatprep.mubr.f32.mxu0 0.0
    %2437 = vmatmul.mubr.f32.gmra.mrb[0].mxu0 %v2370
    %v2438 = vpop.f32.mrb[0].mxu0
    %v2439 = vadd.f32 0.0, %v2438
    %v2440 = vpop.f32.mrb[0].mxu0
    %2441 = vdwg.mxu0
    %v2442 = vld [vmem:[#allocation3] sm:$0xc0]
    %v2444 = vrot.slane %v2439, 2
    %v2446 = vadd.f32 %v2442, %v2444
    %v2447 = vxor.u32 %v2446, 2147483648
    %v2448 = vmul.f32 %v2447, 1.442695
    %v2449 = vpow.pop %v2448
    %v2450 = vadd.f32 %v2449, 1.0
    %v2451 = vrcp.pop %v2450
    %v2452 = vmul.f32 1.0, %v2451
    %v2453 = vadd.f32 %v2439, %v2125
    %v2455 = vrot.slane %v2453, 2
    %2456 = vrot.lane.b32.xlu0 %v2455, 64
    %v2457 = vpop.permute.xlu0 %2456
    %v2459 = vmul.f32 %v2452, %v2457
    %2461 = vrot.lane.b32.xlu0 %v2459, 64
    %v2462 = vpop.permute.xlu0 %2461
    %v2464 = vadd.f32 %v2442, %v2462
    %v2465 = vtanh.pop %v2464
    %v2466 = vsub.f32 1.0, %v2452
    %2468 = vrot.lane.b32.xlu0 %v2465, 96
    %v2469 = vpop.permute.xlu0 %2468
    %v2471 = vmul.f32 %v2466, %v2469
    %v2472 = vrot.slane %v2365, 6
    %v2474 = vmul.f32 %v2452, %v2472
    %v2475 = vadd.f32 %v2471, %v2474
    %v2477 = vrot.slane %v2475, 6
    %2478 = vrot.lane.b32.xlu0 %v2477, 96
    %v2479 = vpop.permute.xlu0 %2478
    %v2480 = vsel %vm160, %v2479, 0
    %2482 = vmatprep.subr.mxu0 0.0
    %2483 = vmatpush1.msra.mxu0 %v2036
    %2484 = vmatprep.subr.mxu0 0.0
    %2485 = vmatpush1.msra.mxu0 %v2037
    %2486 = vmatprep.subr.mxu0 0.0
    %2487 = vmatpush1.msra.mxu0 %v2038
    %2488 = vmatprep.subr.mxu0 0.0
    %2489 = vmatpush1.msra.mxu0 %v2039
    %2490 = vmatprep.subr.mxu0 0.0
    %2491 = vmatpush1.msra.mxu0 0.0
    %2492 = vmatprep.subr.mxu0 0.0
    %2493 = vmatpush1.msra.mxu0 0.0
    %2494 = vmatprep.subr.mxu0 0.0
    %2495 = vmatpush1.msra.mxu0 0.0
    %2496 = vmatprep.subr.mxu0 0.0
    %2497 = vmatpush1.msra.mxu0 0.0
    %2498 = vmatprep.subr.mxu0 0.0
    %2499 = vmatpush1.msra.mxu0 0.0
    %2500 = vmatprep.subr.mxu0 0.0
    %2501 = vmatpush1.msra.mxu0 0.0
    %2502 = vmatprep.subr.mxu0 0.0
    %2503 = vmatpush1.msra.mxu0 0.0
    %2504 = vmatprep.subr.mxu0 0.0
    %2505 = vmatpush1.msra.mxu0 0.0
    %2506 = vmatprep.subr.mxu0 0.0
    %2507 = vmatpush1.msra.mxu0 0.0
    %2508 = vmatprep.subr.mxu0 0.0
    %2509 = vmatpush1.msra.mxu0 0.0
    %2510 = vmatprep.subr.mxu0 0.0
    %2511 = vmatpush1.msra.mxu0 0.0
    %2512 = vmatprep.subr.mxu0 0.0
    %2513 = vmatpush1.msra.mxu0 0.0
    %2514 = vmatprep.subr.mxu0 0.0
    %2515 = vmatpush1.msra.mxu0 0.0
    %2516 = vmatprep.subr.mxu0 0.0
    %2517 = vmatpush1.msra.mxu0 0.0
    %2518 = vmatprep.subr.mxu0 0.0
    %2519 = vmatpush1.msra.mxu0 0.0
    %2520 = vmatprep.subr.mxu0 0.0
    %2521 = vmatpush1.msra.mxu0 0.0
    %2522 = vmatprep.subr.mxu0 0.0
    %2523 = vmatpush1.msra.mxu0 0.0
    %2524 = vmatprep.subr.mxu0 0.0
    %2525 = vmatpush1.msra.mxu0 0.0
    %2526 = vmatprep.subr.mxu0 0.0
    %2527 = vmatpush1.msra.mxu0 0.0
    %2528 = vmatprep.subr.mxu0 0.0
    %2529 = vmatpush1.msra.mxu0 0.0
    %2530 = vmatprep.subr.mxu0 0.0
    %2531 = vmatpush1.msra.mxu0 0.0
    %2532 = vmatprep.subr.mxu0 0.0
    %2533 = vmatpush1.msra.mxu0 0.0
    %2534 = vmatprep.subr.mxu0 0.0
    %2535 = vmatpush1.msra.mxu0 0.0
    %2536 = vmatprep.subr.mxu0 0.0
    %2537 = vmatpush1.msra.mxu0 0.0
    %2538 = vmatprep.subr.mxu0 0.0
    %2539 = vmatpush1.msra.mxu0 0.0
    %2540 = vmatprep.subr.mxu0 0.0
    %2541 = vmatpush1.msra.mxu0 0.0
    %2542 = vmatprep.subr.mxu0 0.0
    %2543 = vmatpush1.msra.mxu0 0.0
    %2544 = vmatprep.subr.mxu0 0.0
    %2545 = vmatpush1.msra.mxu0 0.0
    %2546 = vmatprep.mubr.f32.mxu0 0.0
    %2547 = vmatmul.mubr.f32.gmra.mrb[0].mxu0 %v2480
    %v2548 = vpop.f32.mrb[0].mxu0
    %v2549 = vadd.f32 0.0, %v2548
    %v2550 = vpop.f32.mrb[0].mxu0
    %2551 = vdwg.mxu0
    %v2552 = vld [vmem:[#allocation3 + $0x10] sm:$0x3]
    %v2553 = vadd.f32 %v2552, %v2549
    %v2554 = vxor.u32 %v2553, 2147483648
    %v2555 = vmul.f32 %v2554, 1.442695
    %v2556 = vpow.pop %v2555
    %v2557 = vadd.f32 %v2556, 1.0
    %v2558 = vrcp.pop %v2557
    %v2559 = vmul.f32 1.0, %v2558
    %v2560 = vadd.f32 %v2549, %v2125
    %2562 = vrot.lane.b32.xlu0 %v2560, 64
    %v2563 = vpop.permute.xlu0 %2562
    %v2565 = vmul.f32 %v2559, %v2563
    %2567 = vrot.lane.b32.xlu0 %v2565, 64
    %v2568 = vpop.permute.xlu0 %2567
    %v2570 = vadd.f32 %v2552, %v2568
    %v2571 = vtanh.pop %v2570
    %v2572 = vsub.f32 1.0, %v2559
    %2574 = vrot.lane.b32.xlu0 %v2571, 96
    %v2575 = vpop.permute.xlu0 %2574
    %v2577 = vmul.f32 %v2572, %v2575
    %v2579 = vmul.f32 %v2559, %v2477
    %v2580 = vadd.f32 %v2577, %v2579
    %2582 = vrot.lane.b32.xlu0 %v2580, 96
    %v2583 = vpop.permute.xlu0 %2582
    %v2584 = vsel %vm160, %v2583, 0
    %2586 = vmatprep.subr.mxu0 0.0
    %2587 = vmatpush1.msra.mxu0 %v2036
    %2588 = vmatprep.subr.mxu0 0.0
    %2589 = vmatpush1.msra.mxu0 %v2037
    %2590 = vmatprep.subr.mxu0 0.0
    %2591 = vmatpush1.msra.mxu0 %v2038
    %2592 = vmatprep.subr.mxu0 0.0
    %2593 = vmatpush1.msra.mxu0 %v2039
    %2594 = vmatprep.subr.mxu0 0.0
    %2595 = vmatpush1.msra.mxu0 0.0
    %2596 = vmatprep.subr.mxu0 0.0
    %2597 = vmatpush1.msra.mxu0 0.0
    %2598 = vmatprep.subr.mxu0 0.0
    %2599 = vmatpush1.msra.mxu0 0.0
    %2600 = vmatprep.subr.mxu0 0.0
    %2601 = vmatpush1.msra.mxu0 0.0
    %2602 = vmatprep.subr.mxu0 0.0
    %2603 = vmatpush1.msra.mxu0 0.0
    %2604 = vmatprep.subr.mxu0 0.0
    %2605 = vmatpush1.msra.mxu0 0.0
    %2606 = vmatprep.subr.mxu0 0.0
    %2607 = vmatpush1.msra.mxu0 0.0
    %2608 = vmatprep.subr.mxu0 0.0
    %2609 = vmatpush1.msra.mxu0 0.0
    %2610 = vmatprep.subr.mxu0 0.0
    %2611 = vmatpush1.msra.mxu0 0.0
    %2612 = vmatprep.subr.mxu0 0.0
    %2613 = vmatpush1.msra.mxu0 0.0
    %2614 = vmatprep.subr.mxu0 0.0
    %2615 = vmatpush1.msra.mxu0 0.0
    %2616 = vmatprep.subr.mxu0 0.0
    %2617 = vmatpush1.msra.mxu0 0.0
    %2618 = vmatprep.subr.mxu0 0.0
    %2619 = vmatpush1.msra.mxu0 0.0
    %2620 = vmatprep.subr.mxu0 0.0
    %2621 = vmatpush1.msra.mxu0 0.0
    %2622 = vmatprep.subr.mxu0 0.0
    %2623 = vmatpush1.msra.mxu0 0.0
    %2624 = vmatprep.subr.mxu0 0.0
    %2625 = vmatpush1.msra.mxu0 0.0
    %2626 = vmatprep.subr.mxu0 0.0
    %2627 = vmatpush1.msra.mxu0 0.0
    %2628 = vmatprep.subr.mxu0 0.0
    %2629 = vmatpush1.msra.mxu0 0.0
    %2630 = vmatprep.subr.mxu0 0.0
    %2631 = vmatpush1.msra.mxu0 0.0
    %2632 = vmatprep.subr.mxu0 0.0
    %2633 = vmatpush1.msra.mxu0 0.0
    %2634 = vmatprep.subr.mxu0 0.0
    %2635 = vmatpush1.msra.mxu0 0.0
    %2636 = vmatprep.subr.mxu0 0.0
    %2637 = vmatpush1.msra.mxu0 0.0
    %2638 = vmatprep.subr.mxu0 0.0
    %2639 = vmatpush1.msra.mxu0 0.0
    %2640 = vmatprep.subr.mxu0 0.0
    %2641 = vmatpush1.msra.mxu0 0.0
    %2642 = vmatprep.subr.mxu0 0.0
    %2643 = vmatpush1.msra.mxu0 0.0
    %2644 = vmatprep.subr.mxu0 0.0
    %2645 = vmatpush1.msra.mxu0 0.0
    %2646 = vmatprep.subr.mxu0 0.0
    %2647 = vmatpush1.msra.mxu0 0.0
    %2648 = vmatprep.subr.mxu0 0.0
    %2649 = vmatpush1.msra.mxu0 0.0
    %2650 = vmatprep.mubr.f32.mxu0 0.0
    %2651 = vmatmul.mubr.f32.gmra.mrb[0].mxu0 %v2584
    %v2652 = vpop.f32.mrb[0].mxu0
    %v2653 = vadd.f32 0.0, %v2652
    %v2654 = vpop.f32.mrb[0].mxu0
    %2655 = vdwg.mxu0
    %v2656 = vld [vmem:[#allocation3 + $0x10] sm:$0xc]
    %v2658 = vrot.slane %v2653, 6
    %v2660 = vadd.f32 %v2656, %v2658
    %v2661 = vxor.u32 %v2660, 2147483648
    %v2662 = vmul.f32 %v2661, 1.442695
    %v2663 = vpow.pop %v2662
    %v2664 = vadd.f32 %v2663, 1.0
    %v2665 = vrcp.pop %v2664
    %v2666 = vmul.f32 1.0, %v2665
    %v2667 = vadd.f32 %v2653, %v2125
    %v2669 = vrot.slane %v2667, 6
    %2670 = vrot.lane.b32.xlu0 %v2669, 64
    %v2671 = vpop.permute.xlu0 %2670
    %v2673 = vmul.f32 %v2666, %v2671
    %2675 = vrot.lane.b32.xlu0 %v2673, 64
    %v2676 = vpop.permute.xlu0 %2675
    %v2678 = vadd.f32 %v2656, %v2676
    %v2679 = vtanh.pop %v2678
    %v2680 = vsub.f32 1.0, %v2666
    %2682 = vrot.lane.b32.xlu0 %v2679, 96
    %v2683 = vpop.permute.xlu0 %2682
    %v2685 = vmul.f32 %v2680, %v2683
    %v2686 = vrot.slane %v2580, 6
    %v2688 = vmul.f32 %v2666, %v2686
    %v2689 = vadd.f32 %v2685, %v2688
    %v2691 = vrot.slane %v2689, 2
    %2692 = vrot.lane.b32.xlu0 %v2691, 96
    %v2693 = vpop.permute.xlu0 %2692
    %v2694 = vsel %vm160, %v2693, 0
    %2696 = vmatprep.subr.mxu0 0.0
    %2697 = vmatpush1.msra.mxu0 %v2036
    %2698 = vmatprep.subr.mxu0 0.0
    %2699 = vmatpush1.msra.mxu0 %v2037
    %2700 = vmatprep.subr.mxu0 0.0
    %2701 = vmatpush1.msra.mxu0 %v2038
    %2702 = vmatprep.subr.mxu0 0.0
    %2703 = vmatpush1.msra.mxu0 %v2039
    %2704 = vmatprep.subr.mxu0 0.0
    %2705 = vmatpush1.msra.mxu0 0.0
    %2706 = vmatprep.subr.mxu0 0.0
    %2707 = vmatpush1.msra.mxu0 0.0
    %2708 = vmatprep.subr.mxu0 0.0
    %2709 = vmatpush1.msra.mxu0 0.0
    %2710 = vmatprep.subr.mxu0 0.0
    %2711 = vmatpush1.msra.mxu0 0.0
    %2712 = vmatprep.subr.mxu0 0.0
    %2713 = vmatpush1.msra.mxu0 0.0
    %2714 = vmatprep.subr.mxu0 0.0
    %2715 = vmatpush1.msra.mxu0 0.0
    %2716 = vmatprep.subr.mxu0 0.0
    %2717 = vmatpush1.msra.mxu0 0.0
    %2718 = vmatprep.subr.mxu0 0.0
    %2719 = vmatpush1.msra.mxu0 0.0
    %2720 = vmatprep.subr.mxu0 0.0
    %2721 = vmatpush1.msra.mxu0 0.0
    %2722 = vmatprep.subr.mxu0 0.0
    %2723 = vmatpush1.msra.mxu0 0.0
    %2724 = vmatprep.subr.mxu0 0.0
    %2725 = vmatpush1.msra.mxu0 0.0
    %2726 = vmatprep.subr.mxu0 0.0
    %2727 = vmatpush1.msra.mxu0 0.0
    %2728 = vmatprep.subr.mxu0 0.0
    %2729 = vmatpush1.msra.mxu0 0.0
    %2730 = vmatprep.subr.mxu0 0.0
    %2731 = vmatpush1.msra.mxu0 0.0
    %2732 = vmatprep.subr.mxu0 0.0
    %2733 = vmatpush1.msra.mxu0 0.0
    %2734 = vmatprep.subr.mxu0 0.0
    %2735 = vmatpush1.msra.mxu0 0.0
    %2736 = vmatprep.subr.mxu0 0.0
    %2737 = vmatpush1.msra.mxu0 0.0
    %2738 = vmatprep.subr.mxu0 0.0
    %2739 = vmatpush1.msra.mxu0 0.0
    %2740 = vmatprep.subr.mxu0 0.0
    %2741 = vmatpush1.msra.mxu0 0.0
    %2742 = vmatprep.subr.mxu0 0.0
    %2743 = vmatpush1.msra.mxu0 0.0
    %2744 = vmatprep.subr.mxu0 0.0
    %2745 = vmatpush1.msra.mxu0 0.0
    %2746 = vmatprep.subr.mxu0 0.0
    %2747 = vmatpush1.msra.mxu0 0.0
    %2748 = vmatprep.subr.mxu0 0.0
    %2749 = vmatpush1.msra.mxu0 0.0
    %2750 = vmatprep.subr.mxu0 0.0
    %2751 = vmatpush1.msra.mxu0 0.0
    %2752 = vmatprep.subr.mxu0 0.0
    %2753 = vmatpush1.msra.mxu0 0.0
    %2754 = vmatprep.subr.mxu0 0.0
    %2755 = vmatpush1.msra.mxu0 0.0
    %2756 = vmatprep.subr.mxu0 0.0
    %2757 = vmatpush1.msra.mxu0 0.0
    %2758 = vmatprep.subr.mxu0 0.0
    %2759 = vmatpush1.msra.mxu0 0.0
    %2760 = vmatprep.mubr.f32.mxu0 0.0
    %2761 = vmatmul.mubr.f32.gmra.mrb[0].mxu0 %v2694
    %v2762 = vpop.f32.mrb[0].mxu0
    %v2763 = vadd.f32 0.0, %v2762
    %v2764 = vpop.f32.mrb[0].mxu0
    %2765 = vdwg.mxu0
    %v2766 = vld [vmem:[#allocation3 + $0x10] sm:$0x30]
    %v2768 = vrot.slane %v2763, 4
    %v2770 = vadd.f32 %v2766, %v2768
    %v2771 = vxor.u32 %v2770, 2147483648
    %v2772 = vmul.f32 %v2771, 1.442695
    %v2773 = vpow.pop %v2772
    %v2774 = vadd.f32 %v2773, 1.0
    %v2775 = vrcp.pop %v2774
    %v2776 = vmul.f32 1.0, %v2775
    %v2777 = vadd.f32 %v2763, %v2125
    %v2779 = vrot.slane %v2777, 4
    %2780 = vrot.lane.b32.xlu0 %v2779, 64
    %v2781 = vpop.permute.xlu0 %2780
    %v2783 = vmul.f32 %v2776, %v2781
    %2785 = vrot.lane.b32.xlu0 %v2783, 64
    %v2786 = vpop.permute.xlu0 %2785
    %v2788 = vadd.f32 %v2766, %v2786
    %v2789 = vtanh.pop %v2788
    %v2790 = vsub.f32 1.0, %v2776
    %2792 = vrot.lane.b32.xlu0 %v2789, 96
    %v2793 = vpop.permute.xlu0 %2792
    %v2795 = vmul.f32 %v2790, %v2793
    %v2796 = vrot.slane %v2689, 6
    %v2798 = vmul.f32 %v2776, %v2796
    %v2799 = vadd.f32 %v2795, %v2798
    %v2801 = vrot.slane %v2799, 4
    %2802 = vrot.lane.b32.xlu0 %v2801, 96
    %v2803 = vpop.permute.xlu0 %2802
    %v2804 = vsel %vm160, %v2803, 0
    %2806 = vmatprep.subr.mxu0 0.0
    %2807 = vmatpush1.msra.mxu0 %v2036
    %2808 = vmatprep.subr.mxu0 0.0
    %2809 = vmatpush1.msra.mxu0 %v2037
    %2810 = vmatprep.subr.mxu0 0.0
    %2811 = vmatpush1.msra.mxu0 %v2038
    %2812 = vmatprep.subr.mxu0 0.0
    %2813 = vmatpush1.msra.mxu0 %v2039
    %2814 = vmatprep.subr.mxu0 0.0
    %2815 = vmatpush1.msra.mxu0 0.0
    %2816 = vmatprep.subr.mxu0 0.0
    %2817 = vmatpush1.msra.mxu0 0.0
    %2818 = vmatprep.subr.mxu0 0.0
    %2819 = vmatpush1.msra.mxu0 0.0
    %2820 = vmatprep.subr.mxu0 0.0
    %2821 = vmatpush1.msra.mxu0 0.0
    %2822 = vmatprep.subr.mxu0 0.0
    %2823 = vmatpush1.msra.mxu0 0.0
    %2824 = vmatprep.subr.mxu0 0.0
    %2825 = vmatpush1.msra.mxu0 0.0
    %2826 = vmatprep.subr.mxu0 0.0
    %2827 = vmatpush1.msra.mxu0 0.0
    %2828 = vmatprep.subr.mxu0 0.0
    %2829 = vmatpush1.msra.mxu0 0.0
    %2830 = vmatprep.subr.mxu0 0.0
    %2831 = vmatpush1.msra.mxu0 0.0
    %2832 = vmatprep.subr.mxu0 0.0
    %2833 = vmatpush1.msra.mxu0 0.0
    %2834 = vmatprep.subr.mxu0 0.0
    %2835 = vmatpush1.msra.mxu0 0.0
    %2836 = vmatprep.subr.mxu0 0.0
    %2837 = vmatpush1.msra.mxu0 0.0
    %2838 = vmatprep.subr.mxu0 0.0
    %2839 = vmatpush1.msra.mxu0 0.0
    %2840 = vmatprep.subr.mxu0 0.0
    %2841 = vmatpush1.msra.mxu0 0.0
    %2842 = vmatprep.subr.mxu0 0.0
    %2843 = vmatpush1.msra.mxu0 0.0
    %2844 = vmatprep.subr.mxu0 0.0
    %2845 = vmatpush1.msra.mxu0 0.0
    %2846 = vmatprep.subr.mxu0 0.0
    %2847 = vmatpush1.msra.mxu0 0.0
    %2848 = vmatprep.subr.mxu0 0.0
    %2849 = vmatpush1.msra.mxu0 0.0
    %2850 = vmatprep.subr.mxu0 0.0
    %2851 = vmatpush1.msra.mxu0 0.0
    %2852 = vmatprep.subr.mxu0 0.0
    %2853 = vmatpush1.msra.mxu0 0.0
    %2854 = vmatprep.subr.mxu0 0.0
    %2855 = vmatpush1.msra.mxu0 0.0
    %2856 = vmatprep.subr.mxu0 0.0
    %2857 = vmatpush1.msra.mxu0 0.0
    %2858 = vmatprep.subr.mxu0 0.0
    %2859 = vmatpush1.msra.mxu0 0.0
    %2860 = vmatprep.subr.mxu0 0.0
    %2861 = vmatpush1.msra.mxu0 0.0
    %2862 = vmatprep.subr.mxu0 0.0
    %2863 = vmatpush1.msra.mxu0 0.0
    %2864 = vmatprep.subr.mxu0 0.0
    %2865 = vmatpush1.msra.mxu0 0.0
    %2866 = vmatprep.subr.mxu0 0.0
    %2867 = vmatpush1.msra.mxu0 0.0
    %2868 = vmatprep.subr.mxu0 0.0
    %2869 = vmatpush1.msra.mxu0 0.0
    %2870 = vmatprep.mubr.f32.mxu0 0.0
    %2871 = vmatmul.mubr.f32.gmra.mrb[0].mxu0 %v2804
    %v2872 = vpop.f32.mrb[0].mxu0
    %v2873 = vadd.f32 0.0, %v2872
    %v2874 = vpop.f32.mrb[0].mxu0
    %2875 = vdwg.mxu0
    %v2876 = vld [vmem:[#allocation3 + $0x10] sm:$0xc0]
    %v2878 = vrot.slane %v2873, 2
    %v2880 = vadd.f32 %v2876, %v2878
    %v2881 = vxor.u32 %v2880, 2147483648
    %v2882 = vmul.f32 %v2881, 1.442695
    %v2883 = vpow.pop %v2882
    %v2884 = vadd.f32 %v2883, 1.0
    %v2885 = vrcp.pop %v2884
    %v2886 = vmul.f32 1.0, %v2885
    %v2887 = vadd.f32 %v2873, %v2125
    %v2889 = vrot.slane %v2887, 2
    %2890 = vrot.lane.b32.xlu0 %v2889, 64
    %v2891 = vpop.permute.xlu0 %2890
    %v2893 = vmul.f32 %v2886, %v2891
    %2895 = vrot.lane.b32.xlu0 %v2893, 64
    %v2896 = vpop.permute.xlu0 %2895
    %v2898 = vadd.f32 %v2876, %v2896
    %v2899 = vtanh.pop %v2898
    %v2900 = vsub.f32 1.0, %v2886
    %2902 = vrot.lane.b32.xlu0 %v2899, 96
    %v2903 = vpop.permute.xlu0 %2902
    %v2905 = vmul.f32 %v2900, %v2903
    %v2906 = vrot.slane %v2799, 6
    %v2908 = vmul.f32 %v2886, %v2906
    %v2909 = vadd.f32 %v2905, %v2908
    %vm2910 = vcmp.ge.f32.partialorder %v2909, 0.0
    %v2911 = vmul.f32 %v2909, 0.01
    %v2912 = vsel %vm2910, %v2909, %v2911
    %v2913 = vld [vmem:[%s9] sm:$0xff]
    %v2914 = vld [vmem:[%s9 + $0x8] sm:$0xff]
    %v2915 = vld [vmem:[%s9 + $0x10] sm:$0xff]
    %v2916 = vld [vmem:[%s9 + $0x18] sm:$0xff]
    %v2917 = vld [vmem:[%s10] sm:$0x1]
    %v2919 = vlaneseq
    %v2920 = vshrl.u32 %v2919, 7
    %v2921 = vsub.s32 0, %v2920
    %v2922 = vrot.slane %v2917, %v2921
    %v2925 = vrot.slane %v2912, 6
    %2926 = vrot.lane.b32.xlu0 %v2925, 96
    %v2927 = vpop.permute.xlu0 %2926
    %v2928 = vsel %vm160, %v2927, 0
    %2930 = vmatprep.subr.mxu0 0.0
    %2931 = vmatpush1.msra.mxu0 %v2913
    %2932 = vmatprep.subr.mxu0 0.0
    %2933 = vmatpush1.msra.mxu0 %v2914
    %2934 = vmatprep.subr.mxu0 0.0
    %2935 = vmatpush1.msra.mxu0 %v2915
    %2936 = vmatprep.subr.mxu0 0.0
    %2937 = vmatpush1.msra.mxu0 %v2916
    %2938 = vmatprep.subr.mxu0 0.0
    %2939 = vmatpush1.msra.mxu0 0.0
    %2940 = vmatprep.subr.mxu0 0.0
    %2941 = vmatpush1.msra.mxu0 0.0
    %2942 = vmatprep.subr.mxu0 0.0
    %2943 = vmatpush1.msra.mxu0 0.0
    %2944 = vmatprep.subr.mxu0 0.0
    %2945 = vmatpush1.msra.mxu0 0.0
    %2946 = vmatprep.subr.mxu0 0.0
    %2947 = vmatpush1.msra.mxu0 0.0
    %2948 = vmatprep.subr.mxu0 0.0
    %2949 = vmatpush1.msra.mxu0 0.0
    %2950 = vmatprep.subr.mxu0 0.0
    %2951 = vmatpush1.msra.mxu0 0.0
    %2952 = vmatprep.subr.mxu0 0.0
    %2953 = vmatpush1.msra.mxu0 0.0
    %2954 = vmatprep.subr.mxu0 0.0
    %2955 = vmatpush1.msra.mxu0 0.0
    %2956 = vmatprep.subr.mxu0 0.0
    %2957 = vmatpush1.msra.mxu0 0.0
    %2958 = vmatprep.subr.mxu0 0.0
    %2959 = vmatpush1.msra.mxu0 0.0
    %2960 = vmatprep.subr.mxu0 0.0
    %2961 = vmatpush1.msra.mxu0 0.0
    %2962 = vmatprep.subr.mxu0 0.0
    %2963 = vmatpush1.msra.mxu0 0.0
    %2964 = vmatprep.subr.mxu0 0.0
    %2965 = vmatpush1.msra.mxu0 0.0
    %2966 = vmatprep.subr.mxu0 0.0
    %2967 = vmatpush1.msra.mxu0 0.0
    %2968 = vmatprep.subr.mxu0 0.0
    %2969 = vmatpush1.msra.mxu0 0.0
    %2970 = vmatprep.subr.mxu0 0.0
    %2971 = vmatpush1.msra.mxu0 0.0
    %2972 = vmatprep.subr.mxu0 0.0
    %2973 = vmatpush1.msra.mxu0 0.0
    %2974 = vmatprep.subr.mxu0 0.0
    %2975 = vmatpush1.msra.mxu0 0.0
    %2976 = vmatprep.subr.mxu0 0.0
    %2977 = vmatpush1.msra.mxu0 0.0
    %2978 = vmatprep.subr.mxu0 0.0
    %2979 = vmatpush1.msra.mxu0 0.0
    %2980 = vmatprep.subr.mxu0 0.0
    %2981 = vmatpush1.msra.mxu0 0.0
    %2982 = vmatprep.subr.mxu0 0.0
    %2983 = vmatpush1.msra.mxu0 0.0
    %2984 = vmatprep.subr.mxu0 0.0
    %2985 = vmatpush1.msra.mxu0 0.0
    %2986 = vmatprep.subr.mxu0 0.0
    %2987 = vmatpush1.msra.mxu0 0.0
    %2988 = vmatprep.subr.mxu0 0.0
    %2989 = vmatpush1.msra.mxu0 0.0
    %2990 = vmatprep.subr.mxu0 0.0
    %2991 = vmatpush1.msra.mxu0 0.0
    %2992 = vmatprep.subr.mxu0 0.0
    %2993 = vmatpush1.msra.mxu0 0.0
    %2994 = vmatprep.mubr.f32.mxu0 0.0
    %2995 = vmatmul.mubr.f32.gmra.mrb[0].mxu0 %v2928
    %v2996 = vpop.f32.mrb[0].mxu0
    %v2997 = vadd.f32 %v2922, %v2996
    %v2998 = vpop.f32.mrb[0].mxu0
    %2999 = vdwg.mxu0
    %vm3000 = vcmp.ge.f32.partialorder %v2997, 0.0
    %v3001 = vmul.f32 %v2997, 0.01
    %v3002 = vsel %vm3000, %v2997, %v3001
    %v3003 = vld [vmem:[%s11] sm:$0xff]
    %v3004 = vld [vmem:[%s11 + $0x8] sm:$0xff]
    %v3005 = vld [vmem:[%s11 + $0x10] sm:$0xff]
    %v3006 = vld [vmem:[%s12] sm:$0x1]
    %v3008 = vlaneseq
    %v3009 = vshrl.u32 %v3008, 7
    %v3010 = vsub.s32 0, %v3009
    %v3011 = vrot.slane %v3006, %v3010
    %vm3013 = vcmask 195584
    %v3015 = vsel %vm3013, %v3002, 0
    %3017 = vmatprep.subr.mxu0 0.0
    %3018 = vmatpush1.msra.mxu0 %v3003
    %3019 = vmatprep.subr.mxu0 0.0
    %3020 = vmatpush1.msra.mxu0 %v3004
    %3021 = vmatprep.subr.mxu0 0.0
    %3022 = vmatpush1.msra.mxu0 %v3005
    %3023 = vmatprep.subr.mxu0 0.0
    %3024 = vmatpush1.msra.mxu0 0.0
    %3025 = vmatprep.subr.mxu0 0.0
    %3026 = vmatpush1.msra.mxu0 0.0
    %3027 = vmatprep.subr.mxu0 0.0
    %3028 = vmatpush1.msra.mxu0 0.0
    %3029 = vmatprep.subr.mxu0 0.0
    %3030 = vmatpush1.msra.mxu0 0.0
    %3031 = vmatprep.subr.mxu0 0.0
    %3032 = vmatpush1.msra.mxu0 0.0
    %3033 = vmatprep.subr.mxu0 0.0
    %3034 = vmatpush1.msra.mxu0 0.0
    %3035 = vmatprep.subr.mxu0 0.0
    %3036 = vmatpush1.msra.mxu0 0.0
    %3037 = vmatprep.subr.mxu0 0.0
    %3038 = vmatpush1.msra.mxu0 0.0
    %3039 = vmatprep.subr.mxu0 0.0
    %3040 = vmatpush1.msra.mxu0 0.0
    %3041 = vmatprep.subr.mxu0 0.0
    %3042 = vmatpush1.msra.mxu0 0.0
    %3043 = vmatprep.subr.mxu0 0.0
    %3044 = vmatpush1.msra.mxu0 0.0
    %3045 = vmatprep.subr.mxu0 0.0
    %3046 = vmatpush1.msra.mxu0 0.0
    %3047 = vmatprep.subr.mxu0 0.0
    %3048 = vmatpush1.msra.mxu0 0.0
    %3049 = vmatprep.subr.mxu0 0.0
    %3050 = vmatpush1.msra.mxu0 0.0
    %3051 = vmatprep.subr.mxu0 0.0
    %3052 = vmatpush1.msra.mxu0 0.0
    %3053 = vmatprep.subr.mxu0 0.0
    %3054 = vmatpush1.msra.mxu0 0.0
    %3055 = vmatprep.subr.mxu0 0.0
    %3056 = vmatpush1.msra.mxu0 0.0
    %3057 = vmatprep.subr.mxu0 0.0
    %3058 = vmatpush1.msra.mxu0 0.0
    %3059 = vmatprep.subr.mxu0 0.0
    %3060 = vmatpush1.msra.mxu0 0.0
    %3061 = vmatprep.subr.mxu0 0.0
    %3062 = vmatpush1.msra.mxu0 0.0
    %3063 = vmatprep.subr.mxu0 0.0
    %3064 = vmatpush1.msra.mxu0 0.0
    %3065 = vmatprep.subr.mxu0 0.0
    %3066 = vmatpush1.msra.mxu0 0.0
    %3067 = vmatprep.subr.mxu0 0.0
    %3068 = vmatpush1.msra.mxu0 0.0
    %3069 = vmatprep.subr.mxu0 0.0
    %3070 = vmatpush1.msra.mxu0 0.0
    %3071 = vmatprep.subr.mxu0 0.0
    %3072 = vmatpush1.msra.mxu0 0.0
    %3073 = vmatprep.subr.mxu0 0.0
    %3074 = vmatpush1.msra.mxu0 0.0
    %3075 = vmatprep.subr.mxu0 0.0
    %3076 = vmatpush1.msra.mxu0 0.0
    %3077 = vmatprep.subr.mxu0 0.0
    %3078 = vmatpush1.msra.mxu0 0.0
    %3079 = vmatprep.subr.mxu0 0.0
    %3080 = vmatpush1.msra.mxu0 0.0
    %3081 = vmatprep.mubr.f32.mxu0 0.0
    %3082 = vmatmul.mubr.f32.gmra.mrb[0].mxu0 %v3015
    %v3083 = vpop.f32.mrb[0].mxu0
    %v3084 = vadd.f32 %v3011, %v3083
    %v3085 = vpop.f32.mrb[0].mxu0
    %3086 = vdwg.mxu0
    %3087 = vst [vmem:[#allocation4] sm:$0x3] %v3084
    // Predicated region
    $region54: #{generator_forward.1} parent=1 // pred_check
      _
    $region55: #{generator_forward.1} parent=1 // pred_check_branch
      %3089 = sbr.rel (0) target = $region57
    $region56: #{generator_forward.1} parent=1 // pred_region
      %s3091 = ssub.s32 32, 32
      %3092 = vsyncadd [#allocation5], %s3091
      %s3094 = sshll.u32 [#allocation4], 4
      %s3095 = int_to_ptr.vmem [resolvable:$true] %s3094
      %3097 = dma.vmem_to_hbm [thread:$0]  %s3095, 32, %s13, [#allocation5]
    $region57: #{generator_forward.1} parent=1 // pred_fallthru
      _
    // Predicated region
    $region58: #{generator_forward.1} parent=1 // pred_check
      _
    $region59: #{generator_forward.1} parent=1 // pred_check_branch
      %3099 = sbr.rel (0) target = $region61
    $region60: #{generator_forward.1} parent=1 // pred_region
      %3100 = dma.done [#allocation5], 32
    $region61: #{generator_forward.1} parent=1 // pred_fallthru
      _
    %3101 = vsyncpa [#allocation5], 1

</llo_original>
